<compile_context>
chip_gen: v7x
topology: tpu7x:2x2x1
jax: 0.10.0
libtpu: 0.0.40
codegen_flags: <defaults>
</compile_context>

<pallas_src>
import functools

import jax
import jax.numpy as jnp
from jax.experimental import pallas as pl
from jax.experimental.pallas import tpu as pltpu

LANE = 128


def _round_up(n, m):
    return (n + m - 1) // m * m


def mlp_kernel(x_ref,
               w1_ref, b1_ref,
               w2_ref, b2_ref,
               w3_ref, b3_ref,
               w4_ref, b4_ref,
               w5_ref, b5_ref,
               o_ref):
    """Fused 5-layer MLP on one batch tile. Weights are bf16, math accumulates f32."""

    def linear(h_f32, w_ref, b_ref):
        return (jnp.dot(h_f32.astype(jnp.bfloat16), w_ref[...],
                        preferred_element_type=jnp.float32)
                + b_ref[...])

    h = x_ref[...]                                       # [tm, F]   f32
    h = jnp.maximum(linear(h, w1_ref, b1_ref), 0.0)      # [tm, 512]
    h = jnp.maximum(linear(h, w2_ref, b2_ref), 0.0)      # [tm, 1024]
    h = jnp.maximum(linear(h, w3_ref, b3_ref), 0.0)      # [tm, 1024]
    h = jnp.maximum(linear(h, w4_ref, b4_ref), 0.0)      # [tm, 64]
    o_ref[...] = linear(h, w5_ref, b5_ref)               # [tm, 128] (lane-padded)


@functools.partial(jax.jit, static_argnums=(1,))
def _mlp_forward_padded(x, tm, *flat_params):
    """x: [B_pad, F] f32 with B_pad % tm == 0. flat_params: prepared (bf16 W, f32 b)."""
    B_pad, F = x.shape
    out_pad = flat_params[-1].shape[-1]                  # lane-padded class dim

    in_specs = [pl.BlockSpec((tm, F), lambda i: (i, 0))]
    for p in flat_params:
        # Full-array block, constant index -> loaded once, VMEM-resident.
        in_specs.append(pl.BlockSpec(p.shape, lambda i: (0, 0)))

    return pl.pallas_call(
        mlp_kernel,
        out_shape=jax.ShapeDtypeStruct((B_pad, out_pad), jnp.float32),
        grid=(B_pad // tm,),
        in_specs=in_specs,
        out_specs=pl.BlockSpec((tm, out_pad), lambda i: (i, 0)),
        compiler_params=pltpu.CompilerParams(
            dimension_semantics=("parallel",),           # shard batch across TCs (v7x)
            vmem_limit_bytes=32 << 20,                   # actual use < ~10 MiB at tm=256
        ),
    )(x, *flat_params)


def prepare_params(params):
    """Cast weights to bf16, keep biases f32, lane-pad the final layer to 128 cols."""
    flat = []
    last = len(params) - 1
    for i, (w, b) in enumerate(params):
        if i == last:
            pad = (-w.shape[1]) % LANE
            if pad:
                w = jnp.pad(w, ((0, 0), (0, pad)))
                b = jnp.pad(b, ((0, 0), (0, pad)))
        flat.append(w.astype(jnp.bfloat16))
        flat.append(b.astype(jnp.float32))
    return flat


def mlp_forward(x, flat_params, class_num):
    B = x.shape[0]
    tm = min(256, _round_up(max(B, 1), 8))               # >=256 rows/MXU pass when B allows
    B_pad = _round_up(B, tm)
    if B_pad != B:
        x = jnp.pad(x, ((0, B_pad - B), (0, 0)))
    out = _mlp_forward_padded(x, tm, *flat_params)
    return out[:B, :class_num]


def init_mlp_params(key, in_features, class_num):
    """Mimics torch.nn.Linear default init: U(-1/sqrt(fan_in), 1/sqrt(fan_in)).
    Weights stored [in, out] (transposed from PyTorch's [out, in])."""
    dims = [in_features, 512, 1024, 1024, 64, class_num]
    params = []
    for i in range(5):
        fan_in, fan_out = dims[i], dims[i + 1]
        key, kw, kb = jax.random.split(key, 3)
        bound = 1.0 / (fan_in ** 0.5)
        w = jax.random.uniform(kw, (fan_in, fan_out), jnp.float32, -bound, bound)
        b = jax.random.uniform(kb, (1, fan_out), jnp.float32, -bound, bound)
        params.append((w, b))
    return params


def mlp_reference(x, params):
    """Pure-JAX reference mimicking the kernel's math (bf16 operands, f32 accum)."""
    h = x
    last = len(params) - 1
    for i, (w, b) in enumerate(params):
        h = jnp.dot(h.astype(jnp.bfloat16), w.astype(jnp.bfloat16),
                    preferred_element_type=jnp.float32) + b
        if i < last:
            h = jnp.maximum(h, 0.0)
    return h


if __name__ == "__main__":
    key = jax.random.PRNGKey(0)
    batch, in_features, class_num = 8, 32, 10

    k_x, k_p = jax.random.split(key)
    x = jax.random.normal(k_x, (batch, in_features), dtype=jnp.float32)
    params = init_mlp_params(k_p, in_features, class_num)
    flat_params = prepare_params(params)

    out = mlp_forward(x, flat_params, class_num)
    out = jax.block_until_ready(out)

    ref = mlp_reference(x, params)
    assert out.shape == (batch, class_num), out.shape
    assert jnp.allclose(out, ref, atol=5e-3, rtol=5e-3), \
        f"mismatch vs JAX reference, max abs err = {jnp.max(jnp.abs(out - ref))}"

    print("KERNEL_OK")
</pallas_src>

<mosaic_0001>
module attributes {stable_mosaic.version = 11 : i64} {
  func.func @mlp_kernel(%arg0: i32, %arg1: memref<8x32xf32, #tpu.memory_space<vmem>>, %arg2: memref<32x512xbf16, #tpu.memory_space<vmem>>, %arg3: memref<1x512xf32, #tpu.memory_space<vmem>>, %arg4: memref<512x1024xbf16, #tpu.memory_space<vmem>>, %arg5: memref<1x1024xf32, #tpu.memory_space<vmem>>, %arg6: memref<1024x1024xbf16, #tpu.memory_space<vmem>>, %arg7: memref<1x1024xf32, #tpu.memory_space<vmem>>, %arg8: memref<1024x64xbf16, #tpu.memory_space<vmem>>, %arg9: memref<1x64xf32, #tpu.memory_space<vmem>>, %arg10: memref<64x128xbf16, #tpu.memory_space<vmem>>, %arg11: memref<1x128xf32, #tpu.memory_space<vmem>>, %arg12: memref<8x128xf32, #tpu.memory_space<vmem>>) attributes {dimension_semantics = [#tpu.dimension_semantics<parallel>], iteration_bounds = array<i64: 1>, scalar_prefetch = 0 : i64, scratch_operands = 0 : i64, tpu.core_type = #tpu.core_type<tc>, window_params = [{transform_indices = @transform_0, window_bounds = array<i64: 8, 32>}, {pipeline_mode = #tpu.pipeline_mode<synchronous>, transform_indices = @transform_1, window_bounds = array<i64: 32, 512>}, {pipeline_mode = #tpu.pipeline_mode<synchronous>, transform_indices = @transform_2, window_bounds = array<i64: 1, 512>}, {pipeline_mode = #tpu.pipeline_mode<synchronous>, transform_indices = @transform_3, window_bounds = array<i64: 512, 1024>}, {pipeline_mode = #tpu.pipeline_mode<synchronous>, transform_indices = @transform_4, window_bounds = array<i64: 1, 1024>}, {pipeline_mode = #tpu.pipeline_mode<synchronous>, transform_indices = @transform_5, window_bounds = array<i64: 1024, 1024>}, {pipeline_mode = #tpu.pipeline_mode<synchronous>, transform_indices = @transform_6, window_bounds = array<i64: 1, 1024>}, {pipeline_mode = #tpu.pipeline_mode<synchronous>, transform_indices = @transform_7, window_bounds = array<i64: 1024, 64>}, {pipeline_mode = #tpu.pipeline_mode<synchronous>, transform_indices = @transform_8, window_bounds = array<i64: 1, 64>}, {pipeline_mode = #tpu.pipeline_mode<synchronous>, transform_indices = @transform_9, window_bounds = array<i64: 64, 128>}, {pipeline_mode = #tpu.pipeline_mode<synchronous>, transform_indices = @transform_10, window_bounds = array<i64: 1, 128>}, {transform_indices = @transform_11, window_bounds = array<i64: 8, 128>}]} {
    %c0 = arith.constant 0 : index
    %c0_0 = arith.constant 0 : index
    %0 = vector.load %arg1[%c0, %c0_0] : memref<8x32xf32, #tpu.memory_space<vmem>>, vector<8x32xf32>
    %1 = arith.truncf %0 : vector<8x32xf32> to vector<8x32xbf16>
    %c0_1 = arith.constant 0 : index
    %c0_2 = arith.constant 0 : index
    %2 = vector.load %arg2[%c0_1, %c0_2] : memref<32x512xbf16, #tpu.memory_space<vmem>>, vector<32x512xbf16>
    %cst = arith.constant dense<0.000000e+00> : vector<8x512xf32>
    %3 = tpu.matmul %1, %2, %cst {dimension_numbers = #tpu.dot_dimension_numbers<[1], [0], [0], [1], [0, 0, 1, 1], [], []>} : vector<8x32xbf16>, vector<32x512xbf16>, vector<8x512xf32> -> vector<8x512xf32>
    %c0_3 = arith.constant 0 : index
    %c0_4 = arith.constant 0 : index
    %4 = vector.load %arg3[%c0_3, %c0_4] : memref<1x512xf32, #tpu.memory_space<vmem>>, vector<1x512xf32>
    %5 = vector.broadcast %4 : vector<1x512xf32> to vector<8x512xf32>
    %6 = arith.addf %3, %5 : vector<8x512xf32>
    %cst_5 = arith.constant 0.000000e+00 : f32
    %7 = vector.broadcast %cst_5 : f32 to vector<8x512xf32>
    %8 = arith.maximumf %6, %7 : vector<8x512xf32>
    %9 = arith.truncf %8 : vector<8x512xf32> to vector<8x512xbf16>
    %c0_6 = arith.constant 0 : index
    %c0_7 = arith.constant 0 : index
    %10 = vector.load %arg4[%c0_6, %c0_7] : memref<512x1024xbf16, #tpu.memory_space<vmem>>, vector<512x1024xbf16>
    %cst_8 = arith.constant dense<0.000000e+00> : vector<8x1024xf32>
    %11 = tpu.matmul %9, %10, %cst_8 {dimension_numbers = #tpu.dot_dimension_numbers<[1], [0], [0], [1], [0, 0, 1, 1], [], []>} : vector<8x512xbf16>, vector<512x1024xbf16>, vector<8x1024xf32> -> vector<8x1024xf32>
    %c0_9 = arith.constant 0 : index
    %c0_10 = arith.constant 0 : index
    %12 = vector.load %arg5[%c0_9, %c0_10] : memref<1x1024xf32, #tpu.memory_space<vmem>>, vector<1x1024xf32>
    %13 = vector.broadcast %12 : vector<1x1024xf32> to vector<8x1024xf32>
    %14 = arith.addf %11, %13 : vector<8x1024xf32>
    %cst_11 = arith.constant 0.000000e+00 : f32
    %15 = vector.broadcast %cst_11 : f32 to vector<8x1024xf32>
    %16 = arith.maximumf %14, %15 : vector<8x1024xf32>
    %17 = arith.truncf %16 : vector<8x1024xf32> to vector<8x1024xbf16>
    %c0_12 = arith.constant 0 : index
    %c0_13 = arith.constant 0 : index
    %18 = vector.load %arg6[%c0_12, %c0_13] : memref<1024x1024xbf16, #tpu.memory_space<vmem>>, vector<1024x1024xbf16>
    %cst_14 = arith.constant dense<0.000000e+00> : vector<8x1024xf32>
    %19 = tpu.matmul %17, %18, %cst_14 {dimension_numbers = #tpu.dot_dimension_numbers<[1], [0], [0], [1], [0, 0, 1, 1], [], []>} : vector<8x1024xbf16>, vector<1024x1024xbf16>, vector<8x1024xf32> -> vector<8x1024xf32>
    %c0_15 = arith.constant 0 : index
    %c0_16 = arith.constant 0 : index
    %20 = vector.load %arg7[%c0_15, %c0_16] : memref<1x1024xf32, #tpu.memory_space<vmem>>, vector<1x1024xf32>
    %21 = vector.broadcast %20 : vector<1x1024xf32> to vector<8x1024xf32>
    %22 = arith.addf %19, %21 : vector<8x1024xf32>
    %cst_17 = arith.constant 0.000000e+00 : f32
    %23 = vector.broadcast %cst_17 : f32 to vector<8x1024xf32>
    %24 = arith.maximumf %22, %23 : vector<8x1024xf32>
    %25 = arith.truncf %24 : vector<8x1024xf32> to vector<8x1024xbf16>
    %c0_18 = arith.constant 0 : index
    %c0_19 = arith.constant 0 : index
    %26 = vector.load %arg8[%c0_18, %c0_19] : memref<1024x64xbf16, #tpu.memory_space<vmem>>, vector<1024x64xbf16>
    %cst_20 = arith.constant dense<0.000000e+00> : vector<8x64xf32>
    %27 = tpu.matmul %25, %26, %cst_20 {dimension_numbers = #tpu.dot_dimension_numbers<[1], [0], [0], [1], [0, 0, 1, 1], [], []>} : vector<8x1024xbf16>, vector<1024x64xbf16>, vector<8x64xf32> -> vector<8x64xf32>
    %c0_21 = arith.constant 0 : index
    %c0_22 = arith.constant 0 : index
    %28 = vector.load %arg9[%c0_21, %c0_22] : memref<1x64xf32, #tpu.memory_space<vmem>>, vector<1x64xf32>
    %29 = vector.broadcast %28 : vector<1x64xf32> to vector<8x64xf32>
    %30 = arith.addf %27, %29 : vector<8x64xf32>
    %cst_23 = arith.constant 0.000000e+00 : f32
    %31 = vector.broadcast %cst_23 : f32 to vector<8x64xf32>
    %32 = arith.maximumf %30, %31 : vector<8x64xf32>
    %33 = arith.truncf %32 : vector<8x64xf32> to vector<8x64xbf16>
    %c0_24 = arith.constant 0 : index
    %c0_25 = arith.constant 0 : index
    %34 = vector.load %arg10[%c0_24, %c0_25] : memref<64x128xbf16, #tpu.memory_space<vmem>>, vector<64x128xbf16>
    %cst_26 = arith.constant dense<0.000000e+00> : vector<8x128xf32>
    %35 = tpu.matmul %33, %34, %cst_26 {dimension_numbers = #tpu.dot_dimension_numbers<[1], [0], [0], [1], [0, 0, 1, 1], [], []>} : vector<8x64xbf16>, vector<64x128xbf16>, vector<8x128xf32> -> vector<8x128xf32>
    %c0_27 = arith.constant 0 : index
    %c0_28 = arith.constant 0 : index
    %36 = vector.load %arg11[%c0_27, %c0_28] : memref<1x128xf32, #tpu.memory_space<vmem>>, vector<1x128xf32>
    %37 = vector.broadcast %36 : vector<1x128xf32> to vector<8x128xf32>
    %38 = arith.addf %35, %37 : vector<8x128xf32>
    %c0_29 = arith.constant 0 : index
    %c0_30 = arith.constant 0 : index
    %39 = vector.load %arg12[%c0_29, %c0_30] : memref<8x128xf32, #tpu.memory_space<vmem>>, vector<8x128xf32>
    tpu.vector_store %arg12[%c0_29, %c0_30], %38 {strides = array<i32>} : memref<8x128xf32, #tpu.memory_space<vmem>>, vector<8x128xf32>,
    return
  }
  func.func @transform_0(%arg0: i32) -> (i32, i32) {
    %c0_i32 = arith.constant 0 : i32
    %c0_i32_0 = arith.constant 0 : i32
    return %arg0, %c0_i32 : i32, i32
  }
  func.func @transform_1(%arg0: i32) -> (i32, i32) {
    %c0_i32 = arith.constant 0 : i32
    %c0_i32_0 = arith.constant 0 : i32
    %c0_i32_1 = arith.constant 0 : i32
    return %c0_i32, %c0_i32_0 : i32, i32
  }
  func.func @transform_2(%arg0: i32) -> (i32, i32) {
    %c0_i32 = arith.constant 0 : i32
    %c0_i32_0 = arith.constant 0 : i32
    %c0_i32_1 = arith.constant 0 : i32
    return %c0_i32, %c0_i32_0 : i32, i32
  }
  func.func @transform_3(%arg0: i32) -> (i32, i32) {
    %c0_i32 = arith.constant 0 : i32
    %c0_i32_0 = arith.constant 0 : i32
    %c0_i32_1 = arith.constant 0 : i32
    return %c0_i32, %c0_i32_0 : i32, i32
  }
  func.func @transform_4(%arg0: i32) -> (i32, i32) {
    %c0_i32 = arith.constant 0 : i32
    %c0_i32_0 = arith.constant 0 : i32
    %c0_i32_1 = arith.constant 0 : i32
    return %c0_i32, %c0_i32_0 : i32, i32
  }
  func.func @transform_5(%arg0: i32) -> (i32, i32) {
    %c0_i32 = arith.constant 0 : i32
    %c0_i32_0 = arith.constant 0 : i32
    %c0_i32_1 = arith.constant 0 : i32
    return %c0_i32, %c0_i32_0 : i32, i32
  }
  func.func @transform_6(%arg0: i32) -> (i32, i32) {
    %c0_i32 = arith.constant 0 : i32
    %c0_i32_0 = arith.constant 0 : i32
    %c0_i32_1 = arith.constant 0 : i32
    return %c0_i32, %c0_i32_0 : i32, i32
  }
  func.func @transform_7(%arg0: i32) -> (i32, i32) {
    %c0_i32 = arith.constant 0 : i32
    %c0_i32_0 = arith.constant 0 : i32
    %c0_i32_1 = arith.constant 0 : i32
    return %c0_i32, %c0_i32_0 : i32, i32
  }
  func.func @transform_8(%arg0: i32) -> (i32, i32) {
    %c0_i32 = arith.constant 0 : i32
    %c0_i32_0 = arith.constant 0 : i32
    %c0_i32_1 = arith.constant 0 : i32
    return %c0_i32, %c0_i32_0 : i32, i32
  }
  func.func @transform_9(%arg0: i32) -> (i32, i32) {
    %c0_i32 = arith.constant 0 : i32
    %c0_i32_0 = arith.constant 0 : i32
    %c0_i32_1 = arith.constant 0 : i32
    return %c0_i32, %c0_i32_0 : i32, i32
  }
  func.func @transform_10(%arg0: i32) -> (i32, i32) {
    %c0_i32 = arith.constant 0 : i32
    %c0_i32_0 = arith.constant 0 : i32
    %c0_i32_1 = arith.constant 0 : i32
    return %c0_i32, %c0_i32_0 : i32, i32
  }
  func.func @transform_11(%arg0: i32) -> (i32, i32) {
    %c0_i32 = arith.constant 0 : i32
    %c0_i32_0 = arith.constant 0 : i32
    return %arg0, %c0_i32 : i32, i32
  }
}

</mosaic_0001>

<llo_original>
// kernel: _mlp_forward_padded.1
$region0: #{_mlp_forward_padded.1}
  #allocation0 [shape = 'u32[]', space=smem, size = 0x4, offset = 0x4, fixed_abs, tag = 'smem constant byte address 0x4 - core index']
  #allocation1 [shape = 'u32[144,128]{1,0:T(1,128)}', space=vmem, size = 0x12000, scoped, tag = 'internal scratch']
  %s0 = inlined_call_operand.hbm [shape: f32[8,32], index: 0, kind: input, shape index: {}]
  %s1 = inlined_call_operand.hbm [shape: bf16[32,512], index: 1, kind: input, shape index: {}]
  %s2 = inlined_call_operand.hbm [shape: f32[1,512], index: 2, kind: input, shape index: {}]
  %s3 = inlined_call_operand.hbm [shape: bf16[512,1024], index: 3, kind: input, shape index: {}]
  %s4 = inlined_call_operand.hbm [shape: f32[1,1024], index: 4, kind: input, shape index: {}]
  %s5 = inlined_call_operand.hbm [shape: bf16[1024,1024], index: 5, kind: input, shape index: {}]
  %s6 = inlined_call_operand.hbm [shape: f32[1,1024], index: 6, kind: input, shape index: {}]
  %s7 = inlined_call_operand.vmem [shape: bf16[1024,64], index: 7, kind: input, shape index: {}]
  %s8 = inlined_call_operand.hbm [shape: f32[1,64], index: 8, kind: input, shape index: {}]
  %s9 = inlined_call_operand.hbm [shape: bf16[64,128], index: 9, kind: input, shape index: {}]
  %s10 = inlined_call_operand.hbm [shape: f32[1,128], index: 10, kind: input, shape index: {}]
  %s11 = inlined_call_operand.hbm [shape: f32[8,128], index: 11, kind: output, shape index: {}]
  %s12 = sld [smem:[#allocation0]]
  $region94: #{_mlp_forward_padded.1} parent=0
    _
  %s14 = ssub.s32 1, %s12
  %s15 = scalar_select 0, %s14, %s12
  $region1: #{_mlp_forward_padded.1} parent=0
    #allocation2 [shape = 'u8[4096]{0}', space=vmem, size = 0x1000, scoped, tag = 'input window, operand 0, single buffered']
    #allocation3 [shape = 's32[1]{0}', space=sflag, size = 0x4, scoped, tag = 'scoped memory for _mlp_forward_padded.1']
    #allocation4 [shape = 's32[1]{0}', space=sflag, size = 0x4, scoped, tag = 'scoped memory for _mlp_forward_padded.1']
    #allocation5 [shape = 'u8[32768]{0}', space=vmem, size = 0x8000, scoped, tag = 'input window, operand 1, single buffered']
    #allocation6 [shape = 's32[1]{0}', space=sflag, size = 0x4, scoped, tag = 'scoped memory for _mlp_forward_padded.1']
    #allocation7 [shape = 'u8[2048]{0}', space=vmem, size = 0x800, scoped, tag = 'input window, operand 2, single buffered']
    #allocation8 [shape = 'u8[1048576]{0}', space=vmem, size = 0x100000, scoped, tag = 'input window, operand 3, single buffered']
    #allocation9 [shape = 's32[1]{0}', space=sflag, size = 0x4, scoped, tag = 'scoped memory for _mlp_forward_padded.1']
    #allocation10 [shape = 'u8[4096]{0}', space=vmem, size = 0x1000, scoped, tag = 'input window, operand 4, single buffered']
    #allocation11 [shape = 'u8[2097152]{0}', space=vmem, size = 0x200000, scoped, tag = 'input window, operand 5, single buffered']
    #allocation12 [shape = 's32[1]{0}', space=sflag, size = 0x4, scoped, tag = 'scoped memory for _mlp_forward_padded.1']
    #allocation13 [shape = 'u8[4096]{0}', space=vmem, size = 0x1000, scoped, tag = 'input window, operand 6, single buffered']
    #allocation14 [shape = 'u8[512]{0}', space=vmem, size = 0x400, scoped, tag = 'input window, operand 8, single buffered']
    #allocation15 [shape = 's32[1]{0}', space=sflag, size = 0x4, scoped, tag = 'scoped memory for _mlp_forward_padded.1']
    #allocation16 [shape = 'u8[16384]{0}', space=vmem, size = 0x4000, scoped, tag = 'input window, operand 9, single buffered']
    #allocation17 [shape = 'u8[512]{0}', space=vmem, size = 0x400, scoped, tag = 'input window, operand 10, single buffered']
    #allocation18 [shape = 's32[1]{0}', space=sflag, size = 0x4, scoped, tag = 'scoped memory for _mlp_forward_padded.1']
    #allocation19 [shape = 'u8[4096]{0}', space=vmem, size = 0x1000, scoped, tag = 'output window, operand 0, single buffered']
    %16 = vsyncpa [#allocation3], 0
    %17 = vsyncpa [#allocation6], 0
    %18 = vsyncpa [#allocation9], 0
    %19 = vsyncpa [#allocation12], 0
    %20 = vsyncpa [#allocation15], 0
    %21 = vsyncpa [#allocation18], 0
    %22 = vsyncpa [#allocation4], 0
    // Predicated region
    $region2: #{_mlp_forward_padded.1} parent=1 // pred_check
      _
    $region3: #{_mlp_forward_padded.1} parent=1 // pred_check_branch
      %24 = sbr.rel (0) target = $region5
    $region4: #{_mlp_forward_padded.1} parent=1 // pred_region
      %s26 = ssub.s32 128, 128
      %27 = vsyncadd [#allocation3], %s26
      %s29 = sshll.u32 [#allocation2], 4
      %s30 = int_to_ptr.vmem [resolvable:$true] %s29
      %32 = dma.hbm_to_vmem [thread:$0]  %s0, 128, %s30, [#allocation3]
    $region5: #{_mlp_forward_padded.1} parent=1 // pred_fallthru
      _
    // Predicated region
    $region6: #{_mlp_forward_padded.1} parent=1 // pred_check
      _
    $region7: #{_mlp_forward_padded.1} parent=1 // pred_check_branch
      %34 = sbr.rel (0) target = $region9
    $region8: #{_mlp_forward_padded.1} parent=1 // pred_region
      %s36 = ssub.s32 1024, 1024
      %37 = vsyncadd [#allocation6], %s36
      %s38 = sshll.u32 [#allocation5], 4
      %s39 = int_to_ptr.vmem [resolvable:$true] %s38
      %44 = dma.hbm_to_vmem [thread:$0]  %s1, 1024, %s39, [#allocation6], 256, 256, 16
    $region9: #{_mlp_forward_padded.1} parent=1 // pred_fallthru
      _
    // Predicated region
    $region10: #{_mlp_forward_padded.1} parent=1 // pred_check
      _
    $region11: #{_mlp_forward_padded.1} parent=1 // pred_check_branch
      %46 = sbr.rel (0) target = $region13
    $region12: #{_mlp_forward_padded.1} parent=1 // pred_region
      %s48 = ssub.s32 64, 64
      %49 = vsyncadd [#allocation6], %s48
      %s51 = sshll.u32 [#allocation7], 4
      %s52 = int_to_ptr.vmem [resolvable:$true] %s51
      %54 = dma.hbm_to_vmem [thread:$0]  %s2, 64, %s52, [#allocation6]
    $region13: #{_mlp_forward_padded.1} parent=1 // pred_fallthru
      _
    // Predicated region
    $region14: #{_mlp_forward_padded.1} parent=1 // pred_check
      _
    $region15: #{_mlp_forward_padded.1} parent=1 // pred_check_branch
      %56 = sbr.rel (0) target = $region17
    $region16: #{_mlp_forward_padded.1} parent=1 // pred_region
      %s58 = ssub.s32 32768, 32768
      %59 = vsyncadd [#allocation9], %s58
      %s60 = sshll.u32 [#allocation8], 4
      %s61 = int_to_ptr.vmem [resolvable:$true] %s60
      %66 = dma.hbm_to_vmem [thread:$0]  %s3, 32768, %s61, [#allocation9], 512, 512, 32
    $region17: #{_mlp_forward_padded.1} parent=1 // pred_fallthru
      _
    // Predicated region
    $region18: #{_mlp_forward_padded.1} parent=1 // pred_check
      _
    $region19: #{_mlp_forward_padded.1} parent=1 // pred_check_branch
      %68 = sbr.rel (0) target = $region21
    $region20: #{_mlp_forward_padded.1} parent=1 // pred_region
      %s70 = ssub.s32 128, 128
      %71 = vsyncadd [#allocation9], %s70
      %s73 = sshll.u32 [#allocation10], 4
      %s74 = int_to_ptr.vmem [resolvable:$true] %s73
      %76 = dma.hbm_to_vmem [thread:$0]  %s4, 128, %s74, [#allocation9]
    $region21: #{_mlp_forward_padded.1} parent=1 // pred_fallthru
      _
    // Predicated region
    $region22: #{_mlp_forward_padded.1} parent=1 // pred_check
      _
    $region23: #{_mlp_forward_padded.1} parent=1 // pred_check_branch
      %78 = sbr.rel (0) target = $region25
    $region24: #{_mlp_forward_padded.1} parent=1 // pred_region
      %s80 = ssub.s32 65536, 65536
      %81 = vsyncadd [#allocation12], %s80
      %s82 = sshll.u32 [#allocation11], 4
      %s83 = int_to_ptr.vmem [resolvable:$true] %s82
      %88 = dma.hbm_to_vmem [thread:$0]  %s5, 65536, %s83, [#allocation12], 512, 512, 32
    $region25: #{_mlp_forward_padded.1} parent=1 // pred_fallthru
      _
    // Predicated region
    $region26: #{_mlp_forward_padded.1} parent=1 // pred_check
      _
    $region27: #{_mlp_forward_padded.1} parent=1 // pred_check_branch
      %90 = sbr.rel (0) target = $region29
    $region28: #{_mlp_forward_padded.1} parent=1 // pred_region
      %s92 = ssub.s32 128, 128
      %93 = vsyncadd [#allocation12], %s92
      %s95 = sshll.u32 [#allocation13], 4
      %s96 = int_to_ptr.vmem [resolvable:$true] %s95
      %98 = dma.hbm_to_vmem [thread:$0]  %s6, 128, %s96, [#allocation12]
    $region29: #{_mlp_forward_padded.1} parent=1 // pred_fallthru
      _
    // Predicated region
    $region30: #{_mlp_forward_padded.1} parent=1 // pred_check
      _
    $region31: #{_mlp_forward_padded.1} parent=1 // pred_check_branch
      %100 = sbr.rel (0) target = $region33
    $region32: #{_mlp_forward_padded.1} parent=1 // pred_region
      _
    $region33: #{_mlp_forward_padded.1} parent=1 // pred_fallthru
      _
    // Predicated region
    $region34: #{_mlp_forward_padded.1} parent=1 // pred_check
      _
    $region35: #{_mlp_forward_padded.1} parent=1 // pred_check_branch
      %102 = sbr.rel (0) target = $region37
    $region36: #{_mlp_forward_padded.1} parent=1 // pred_region
      %s104 = ssub.s32 16, 16
      %105 = vsyncadd [#allocation15], %s104
      %s107 = sshll.u32 [#allocation14], 4
      %s108 = int_to_ptr.vmem [resolvable:$true] %s107
      %110 = dma.hbm_to_vmem [thread:$0]  %s8, 16, %s108, [#allocation15]
    $region37: #{_mlp_forward_padded.1} parent=1 // pred_fallthru
      _
    // Predicated region
    $region38: #{_mlp_forward_padded.1} parent=1 // pred_check
      _
    $region39: #{_mlp_forward_padded.1} parent=1 // pred_check_branch
      %112 = sbr.rel (0) target = $region41
    $region40: #{_mlp_forward_padded.1} parent=1 // pred_region
      %s114 = ssub.s32 512, 512
      %115 = vsyncadd [#allocation15], %s114
      %s116 = sshll.u32 [#allocation16], 4
      %s117 = int_to_ptr.vmem [resolvable:$true] %s116
      %122 = dma.hbm_to_vmem [thread:$0]  %s9, 512, %s117, [#allocation15], 64, 64, 4
    $region41: #{_mlp_forward_padded.1} parent=1 // pred_fallthru
      _
    // Predicated region
    $region42: #{_mlp_forward_padded.1} parent=1 // pred_check
      _
    $region43: #{_mlp_forward_padded.1} parent=1 // pred_check_branch
      %124 = sbr.rel (0) target = $region45
    $region44: #{_mlp_forward_padded.1} parent=1 // pred_region
      %s126 = ssub.s32 16, 16
      %127 = vsyncadd [#allocation18], %s126
      %s129 = sshll.u32 [#allocation17], 4
      %s130 = int_to_ptr.vmem [resolvable:$true] %s129
      %132 = dma.hbm_to_vmem [thread:$0]  %s10, 16, %s130, [#allocation18]
    $region45: #{_mlp_forward_padded.1} parent=1 // pred_fallthru
      _
    // Predicated region
    $region46: #{_mlp_forward_padded.1} parent=1 // pred_check
      _
    $region47: #{_mlp_forward_padded.1} parent=1 // pred_check_branch
      %134 = sbr.rel (0) target = $region49
    $region48: #{_mlp_forward_padded.1} parent=1 // pred_region
      %135 = dma.done [#allocation3], 128
    $region49: #{_mlp_forward_padded.1} parent=1 // pred_fallthru
      _
    // Predicated region
    $region50: #{_mlp_forward_padded.1} parent=1 // pred_check
      _
    $region51: #{_mlp_forward_padded.1} parent=1 // pred_check_branch
      %137 = sbr.rel (0) target = $region53
    $region52: #{_mlp_forward_padded.1} parent=1 // pred_region
      %138 = dma.done [#allocation6], 1024
    $region53: #{_mlp_forward_padded.1} parent=1 // pred_fallthru
      _
    // Predicated region
    $region54: #{_mlp_forward_padded.1} parent=1 // pred_check
      _
    $region55: #{_mlp_forward_padded.1} parent=1 // pred_check_branch
      %140 = sbr.rel (0) target = $region57
    $region56: #{_mlp_forward_padded.1} parent=1 // pred_region
      %141 = dma.done [#allocation6], 64
    $region57: #{_mlp_forward_padded.1} parent=1 // pred_fallthru
      _
    // Predicated region
    $region58: #{_mlp_forward_padded.1} parent=1 // pred_check
      _
    $region59: #{_mlp_forward_padded.1} parent=1 // pred_check_branch
      %143 = sbr.rel (0) target = $region61
    $region60: #{_mlp_forward_padded.1} parent=1 // pred_region
      %144 = dma.done [#allocation9], 32768
    $region61: #{_mlp_forward_padded.1} parent=1 // pred_fallthru
      _
    // Predicated region
    $region62: #{_mlp_forward_padded.1} parent=1 // pred_check
      _
    $region63: #{_mlp_forward_padded.1} parent=1 // pred_check_branch
      %146 = sbr.rel (0) target = $region65
    $region64: #{_mlp_forward_padded.1} parent=1 // pred_region
      %147 = dma.done [#allocation9], 128
    $region65: #{_mlp_forward_padded.1} parent=1 // pred_fallthru
      _
    // Predicated region
    $region66: #{_mlp_forward_padded.1} parent=1 // pred_check
      _
    $region67: #{_mlp_forward_padded.1} parent=1 // pred_check_branch
      %149 = sbr.rel (0) target = $region69
    $region68: #{_mlp_forward_padded.1} parent=1 // pred_region
      %150 = dma.done [#allocation12], 65536
    $region69: #{_mlp_forward_padded.1} parent=1 // pred_fallthru
      _
    // Predicated region
    $region70: #{_mlp_forward_padded.1} parent=1 // pred_check
      _
    $region71: #{_mlp_forward_padded.1} parent=1 // pred_check_branch
      %152 = sbr.rel (0) target = $region73
    $region72: #{_mlp_forward_padded.1} parent=1 // pred_region
      %153 = dma.done [#allocation12], 128
    $region73: #{_mlp_forward_padded.1} parent=1 // pred_fallthru
      _
    // Predicated region
    $region74: #{_mlp_forward_padded.1} parent=1 // pred_check
      _
    $region75: #{_mlp_forward_padded.1} parent=1 // pred_check_branch
      %155 = sbr.rel (0) target = $region77
    $region76: #{_mlp_forward_padded.1} parent=1 // pred_region
      %156 = dma.done [#allocation15], 16
    $region77: #{_mlp_forward_padded.1} parent=1 // pred_fallthru
      _
    // Predicated region
    $region78: #{_mlp_forward_padded.1} parent=1 // pred_check
      _
    $region79: #{_mlp_forward_padded.1} parent=1 // pred_check_branch
      %158 = sbr.rel (0) target = $region81
    $region80: #{_mlp_forward_padded.1} parent=1 // pred_region
      %159 = dma.done [#allocation15], 512
    $region81: #{_mlp_forward_padded.1} parent=1 // pred_fallthru
      _
    // Predicated region
    $region82: #{_mlp_forward_padded.1} parent=1 // pred_check
      _
    $region83: #{_mlp_forward_padded.1} parent=1 // pred_check_branch
      %161 = sbr.rel (0) target = $region85
    $region84: #{_mlp_forward_padded.1} parent=1 // pred_region
      %162 = dma.done [#allocation18], 16
    $region85: #{_mlp_forward_padded.1} parent=1 // pred_fallthru
      _
    %v164 = vld [vmem:[#allocation2] sm:$0xff]
    %v165 = vpack.c.bf16 %v164, %v164
    %v166 = vld [vmem:[#allocation5] sm:$0xff]
    %v167 = vld [vmem:[#allocation5 + $0x8] sm:$0xff]
    %v168 = vld [vmem:[#allocation5 + $0x10] sm:$0xff]
    %v169 = vld [vmem:[#allocation5 + $0x18] sm:$0xff]
    %v170 = vld [vmem:[#allocation5 + $0x20] sm:$0xff]
    %v171 = vld [vmem:[#allocation5 + $0x28] sm:$0xff]
    %v172 = vld [vmem:[#allocation5 + $0x30] sm:$0xff]
    %v173 = vld [vmem:[#allocation5 + $0x38] sm:$0xff]
    %v174 = vld [vmem:[#allocation7] sm:$0xf]
    %v176 = vlaneseq
    %v177 = vshrl.u32 %v176, 7
    %v178 = vsub.s32 0, %v177
    %v179 = vrot.slane %v174, %v178
    %v180 = vlaneseq
    %v181 = vshrl.u32 %v180, 7
    %v182 = vsub.s32 1, %v181
    %v183 = vrot.slane %v174, %v182
    %v184 = vlaneseq
    %v185 = vshrl.u32 %v184, 7
    %v186 = vsub.s32 2, %v185
    %v187 = vrot.slane %v174, %v186
    %v188 = vlaneseq
    %v189 = vshrl.u32 %v188, 7
    %v190 = vsub.s32 3, %v189
    %v191 = vrot.slane %v174, %v190
    %v204 = vunpack.c.l.b16 %v166
    %v205 = vunpack.c.h.b16 %v166
    %v206 = vunpack.c.l.b16 %v167
    %v207 = vunpack.c.h.b16 %v167
    %v208 = vunpack.c.l.b16 %v168
    %v209 = vunpack.c.h.b16 %v168
    %v210 = vunpack.c.l.b16 %v169
    %v211 = vunpack.c.h.b16 %v169
    %v212 = vunpack.c.l.b16 %v170
    %v213 = vunpack.c.h.b16 %v170
    %v214 = vunpack.c.l.b16 %v171
    %v215 = vunpack.c.h.b16 %v171
    %v216 = vunpack.c.l.b16 %v172
    %v217 = vunpack.c.h.b16 %v172
    %v218 = vunpack.c.l.b16 %v173
    %v219 = vunpack.c.h.b16 %v173
    %v220 = vpack.c.b16 %v208, %v204
    %v221 = vpack.c.b16 %v209, %v205
    %v222 = vpack.c.b16 %v210, %v206
    %v223 = vpack.c.b16 %v211, %v207
    %v224 = vpack.c.b16 %v216, %v212
    %v225 = vpack.c.b16 %v217, %v213
    %v226 = vpack.c.b16 %v218, %v214
    %v227 = vpack.c.b16 %v219, %v215
    %vm236 = vcmask 261120
    %v238 = vsel %vm236, %v165, 0
    %240 = vmatprep.subr.bf16.mxu0 %v221
    %241 = vmatpush1.bf16.msra.mxu0 %v220
    %242 = vmatprep.subr.bf16.mxu0 %v225
    %243 = vmatpush1.bf16.msra.mxu0 %v224
    %244 = vmatprep.subr.bf16.mxu0 0
    %245 = vmatpush1.bf16.msra.mxu0 0
    %246 = vmatprep.subr.bf16.mxu0 0
    %247 = vmatpush1.bf16.msra.mxu0 0
    %248 = vmatprep.subr.bf16.mxu0 0
    %249 = vmatpush1.bf16.msra.mxu0 0
    %250 = vmatprep.subr.bf16.mxu0 0
    %251 = vmatpush1.bf16.msra.mxu0 0
    %252 = vmatprep.subr.bf16.mxu0 0
    %253 = vmatpush1.bf16.msra.mxu0 0
    %254 = vmatprep.subr.bf16.mxu0 0
    %255 = vmatpush1.bf16.msra.mxu0 0
    %256 = vmatprep.subr.bf16.mxu0 0
    %257 = vmatpush1.bf16.msra.mxu0 0
    %258 = vmatprep.subr.bf16.mxu0 0
    %259 = vmatpush1.bf16.msra.mxu0 0
    %260 = vmatprep.subr.bf16.mxu0 0
    %261 = vmatpush1.bf16.msra.mxu0 0
    %262 = vmatprep.subr.bf16.mxu0 0
    %263 = vmatpush1.bf16.msra.mxu0 0
    %264 = vmatprep.subr.bf16.mxu0 0
    %265 = vmatpush1.bf16.msra.mxu0 0
    %266 = vmatprep.subr.bf16.mxu0 0
    %267 = vmatpush1.bf16.msra.mxu0 0
    %268 = vmatprep.subr.bf16.mxu0 0
    %269 = vmatpush1.bf16.msra.mxu0 0
    %270 = vmatprep.subr.bf16.mxu0 0
    %271 = vmatpush1.bf16.msra.mxu0 0
    %272 = vmatprep.mubr.bf16.mxu0 0
    %273 = vmatmul.mubr.bf16.gmra.mrb[0].mxu0 %v238
    %v274 = vpop.f32.mrb[0].mxu0
    %v275 = vadd.f32 %v179, %v274
    %v276 = vpop.f32.mrb[0].mxu0
    %v277 = vadd.f32 %v183, %v276
    %v278 = vpop.f32.mrb[0].mxu0
    %v279 = vpop.f32.mrb[0].mxu0
    %280 = vdwg.mxu0
    %281 = vmatprep.subr.bf16.mxu0 %v223
    %282 = vmatpush1.bf16.msra.mxu0 %v222
    %283 = vmatprep.subr.bf16.mxu0 %v227
    %284 = vmatpush1.bf16.msra.mxu0 %v226
    %285 = vmatprep.subr.bf16.mxu0 0
    %286 = vmatpush1.bf16.msra.mxu0 0
    %287 = vmatprep.subr.bf16.mxu0 0
    %288 = vmatpush1.bf16.msra.mxu0 0
    %289 = vmatprep.subr.bf16.mxu0 0
    %290 = vmatpush1.bf16.msra.mxu0 0
    %291 = vmatprep.subr.bf16.mxu0 0
    %292 = vmatpush1.bf16.msra.mxu0 0
    %293 = vmatprep.subr.bf16.mxu0 0
    %294 = vmatpush1.bf16.msra.mxu0 0
    %295 = vmatprep.subr.bf16.mxu0 0
    %296 = vmatpush1.bf16.msra.mxu0 0
    %297 = vmatprep.subr.bf16.mxu0 0
    %298 = vmatpush1.bf16.msra.mxu0 0
    %299 = vmatprep.subr.bf16.mxu0 0
    %300 = vmatpush1.bf16.msra.mxu0 0
    %301 = vmatprep.subr.bf16.mxu0 0
    %302 = vmatpush1.bf16.msra.mxu0 0
    %303 = vmatprep.subr.bf16.mxu0 0
    %304 = vmatpush1.bf16.msra.mxu0 0
    %305 = vmatprep.subr.bf16.mxu0 0
    %306 = vmatpush1.bf16.msra.mxu0 0
    %307 = vmatprep.subr.bf16.mxu0 0
    %308 = vmatpush1.bf16.msra.mxu0 0
    %309 = vmatprep.subr.bf16.mxu0 0
    %310 = vmatpush1.bf16.msra.mxu0 0
    %311 = vmatprep.subr.bf16.mxu0 0
    %312 = vmatpush1.bf16.msra.mxu0 0
    %313 = vmatprep.mubr.bf16.mxu0 0
    %314 = vmatmul.mubr.bf16.gmra.mrb[0].mxu0 %v238
    %v315 = vpop.f32.mrb[0].mxu0
    %v316 = vadd.f32 %v187, %v315
    %v317 = vpop.f32.mrb[0].mxu0
    %v318 = vadd.f32 %v191, %v317
    %v319 = vpop.f32.mrb[0].mxu0
    %v320 = vpop.f32.mrb[0].mxu0
    %321 = vdwg.mxu0
    %v322 = vmax.f32 %v275, 0.0
    %v323 = vmax.f32 %v277, 0.0
    %v324 = vmax.f32 %v316, 0.0
    %v325 = vmax.f32 %v318, 0.0
    %v326 = vpack.c.bf16 %v322, %v322
    %v327 = vpack.c.bf16 %v323, %v323
    %v328 = vpack.c.bf16 %v324, %v324
    %v329 = vpack.c.bf16 %v325, %v325
    %v330 = vld [vmem:[#allocation8] sm:$0xff]
    %v331 = vld [vmem:[#allocation8 + $0x8] sm:$0xff]
    %v332 = vld [vmem:[#allocation8 + $0x10] sm:$0xff]
    %v333 = vld [vmem:[#allocation8 + $0x18] sm:$0xff]
    %v334 = vld [vmem:[#allocation8 + $0x20] sm:$0xff]
    %v335 = vld [vmem:[#allocation8 + $0x28] sm:$0xff]
    %v336 = vld [vmem:[#allocation8 + $0x30] sm:$0xff]
    %v337 = vld [vmem:[#allocation8 + $0x38] sm:$0xff]
    %v338 = vld [vmem:[#allocation8 + $0x40] sm:$0xff]
    %v339 = vld [vmem:[#allocation8 + $0x48] sm:$0xff]
    %v340 = vld [vmem:[#allocation8 + $0x50] sm:$0xff]
    %v341 = vld [vmem:[#allocation8 + $0x58] sm:$0xff]
    %v342 = vld [vmem:[#allocation8 + $0x60] sm:$0xff]
    %v343 = vld [vmem:[#allocation8 + $0x68] sm:$0xff]
    %v344 = vld [vmem:[#allocation8 + $0x70] sm:$0xff]
    %v345 = vld [vmem:[#allocation8 + $0x78] sm:$0xff]
    %v346 = vld [vmem:[#allocation8 + $0x80] sm:$0xff]
    %v347 = vld [vmem:[#allocation8 + $0x88] sm:$0xff]
    %v348 = vld [vmem:[#allocation8 + $0x90] sm:$0xff]
    %v349 = vld [vmem:[#allocation8 + $0x98] sm:$0xff]
    %v350 = vld [vmem:[#allocation8 + $0xa0] sm:$0xff]
    %v351 = vld [vmem:[#allocation8 + $0xa8] sm:$0xff]
    %v352 = vld [vmem:[#allocation8 + $0xb0] sm:$0xff]
    %v353 = vld [vmem:[#allocation8 + $0xb8] sm:$0xff]
    %v354 = vld [vmem:[#allocation8 + $0xc0] sm:$0xff]
    %v355 = vld [vmem:[#allocation8 + $0xc8] sm:$0xff]
    %v356 = vld [vmem:[#allocation8 + $0xd0] sm:$0xff]
    %v357 = vld [vmem:[#allocation8 + $0xd8] sm:$0xff]
    %v358 = vld [vmem:[#allocation8 + $0xe0] sm:$0xff]
    %v359 = vld [vmem:[#allocation8 + $0xe8] sm:$0xff]
    %v360 = vld [vmem:[#allocation8 + $0xf0] sm:$0xff]
    %v361 = vld [vmem:[#allocation8 + $0xf8] sm:$0xff]
    %v362 = vld [vmem:[#allocation8 + $0x100] sm:$0xff]
    %v363 = vld [vmem:[#allocation8 + $0x108] sm:$0xff]
    %v364 = vld [vmem:[#allocation8 + $0x110] sm:$0xff]
    %v365 = vld [vmem:[#allocation8 + $0x118] sm:$0xff]
    %v366 = vld [vmem:[#allocation8 + $0x120] sm:$0xff]
    %v367 = vld [vmem:[#allocation8 + $0x128] sm:$0xff]
    %v368 = vld [vmem:[#allocation8 + $0x130] sm:$0xff]
    %v369 = vld [vmem:[#allocation8 + $0x138] sm:$0xff]
    %v370 = vld [vmem:[#allocation8 + $0x140] sm:$0xff]
    %v371 = vld [vmem:[#allocation8 + $0x148] sm:$0xff]
    %v372 = vld [vmem:[#allocation8 + $0x150] sm:$0xff]
    %v373 = vld [vmem:[#allocation8 + $0x158] sm:$0xff]
    %v374 = vld [vmem:[#allocation8 + $0x160] sm:$0xff]
    %v375 = vld [vmem:[#allocation8 + $0x168] sm:$0xff]
    %v376 = vld [vmem:[#allocation8 + $0x170] sm:$0xff]
    %v377 = vld [vmem:[#allocation8 + $0x178] sm:$0xff]
    %v378 = vld [vmem:[#allocation8 + $0x180] sm:$0xff]
    %v379 = vld [vmem:[#allocation8 + $0x188] sm:$0xff]
    %v380 = vld [vmem:[#allocation8 + $0x190] sm:$0xff]
    %v381 = vld [vmem:[#allocation8 + $0x198] sm:$0xff]
    %v382 = vld [vmem:[#allocation8 + $0x1a0] sm:$0xff]
    %v383 = vld [vmem:[#allocation8 + $0x1a8] sm:$0xff]
    %v384 = vld [vmem:[#allocation8 + $0x1b0] sm:$0xff]
    %v385 = vld [vmem:[#allocation8 + $0x1b8] sm:$0xff]
    %v386 = vld [vmem:[#allocation8 + $0x1c0] sm:$0xff]
    %v387 = vld [vmem:[#allocation8 + $0x1c8] sm:$0xff]
    %v388 = vld [vmem:[#allocation8 + $0x1d0] sm:$0xff]
    %v389 = vld [vmem:[#allocation8 + $0x1d8] sm:$0xff]
    %v390 = vld [vmem:[#allocation8 + $0x1e0] sm:$0xff]
    %v391 = vld [vmem:[#allocation8 + $0x1e8] sm:$0xff]
    %v392 = vld [vmem:[#allocation8 + $0x1f0] sm:$0xff]
    %v393 = vld [vmem:[#allocation8 + $0x1f8] sm:$0xff]
    %v394 = vld [vmem:[#allocation8 + $0x200] sm:$0xff]
    %v395 = vld [vmem:[#allocation8 + $0x208] sm:$0xff]
    %v396 = vld [vmem:[#allocation8 + $0x210] sm:$0xff]
    %v397 = vld [vmem:[#allocation8 + $0x218] sm:$0xff]
    %v398 = vld [vmem:[#allocation8 + $0x220] sm:$0xff]
    %v399 = vld [vmem:[#allocation8 + $0x228] sm:$0xff]
    %v400 = vld [vmem:[#allocation8 + $0x230] sm:$0xff]
    %v401 = vld [vmem:[#allocation8 + $0x238] sm:$0xff]
    %v402 = vld [vmem:[#allocation8 + $0x240] sm:$0xff]
    %v403 = vld [vmem:[#allocation8 + $0x248] sm:$0xff]
    %v404 = vld [vmem:[#allocation8 + $0x250] sm:$0xff]
    %v405 = vld [vmem:[#allocation8 + $0x258] sm:$0xff]
    %v406 = vld [vmem:[#allocation8 + $0x260] sm:$0xff]
    %v407 = vld [vmem:[#allocation8 + $0x268] sm:$0xff]
    %v408 = vld [vmem:[#allocation8 + $0x270] sm:$0xff]
    %v409 = vld [vmem:[#allocation8 + $0x278] sm:$0xff]
    %v410 = vld [vmem:[#allocation8 + $0x280] sm:$0xff]
    %v411 = vld [vmem:[#allocation8 + $0x288] sm:$0xff]
    %v412 = vld [vmem:[#allocation8 + $0x290] sm:$0xff]
    %v413 = vld [vmem:[#allocation8 + $0x298] sm:$0xff]
    %v414 = vld [vmem:[#allocation8 + $0x2a0] sm:$0xff]
    %v415 = vld [vmem:[#allocation8 + $0x2a8] sm:$0xff]
    %v416 = vld [vmem:[#allocation8 + $0x2b0] sm:$0xff]
    %v417 = vld [vmem:[#allocation8 + $0x2b8] sm:$0xff]
    %v418 = vld [vmem:[#allocation8 + $0x2c0] sm:$0xff]
    %v419 = vld [vmem:[#allocation8 + $0x2c8] sm:$0xff]
    %v420 = vld [vmem:[#allocation8 + $0x2d0] sm:$0xff]
    %v421 = vld [vmem:[#allocation8 + $0x2d8] sm:$0xff]
    %v422 = vld [vmem:[#allocation8 + $0x2e0] sm:$0xff]
    %v423 = vld [vmem:[#allocation8 + $0x2e8] sm:$0xff]
    %v424 = vld [vmem:[#allocation8 + $0x2f0] sm:$0xff]
    %v425 = vld [vmem:[#allocation8 + $0x2f8] sm:$0xff]
    %v426 = vld [vmem:[#allocation8 + $0x300] sm:$0xff]
    %v427 = vld [vmem:[#allocation8 + $0x308] sm:$0xff]
    %v428 = vld [vmem:[#allocation8 + $0x310] sm:$0xff]
    %v429 = vld [vmem:[#allocation8 + $0x318] sm:$0xff]
    %v430 = vld [vmem:[#allocation8 + $0x320] sm:$0xff]
    %v431 = vld [vmem:[#allocation8 + $0x328] sm:$0xff]
    %v432 = vld [vmem:[#allocation8 + $0x330] sm:$0xff]
    %v433 = vld [vmem:[#allocation8 + $0x338] sm:$0xff]
    %v434 = vld [vmem:[#allocation8 + $0x340] sm:$0xff]
    %v435 = vld [vmem:[#allocation8 + $0x348] sm:$0xff]
    %v436 = vld [vmem:[#allocation8 + $0x350] sm:$0xff]
    %v437 = vld [vmem:[#allocation8 + $0x358] sm:$0xff]
    %v438 = vld [vmem:[#allocation8 + $0x360] sm:$0xff]
    %v439 = vld [vmem:[#allocation8 + $0x368] sm:$0xff]
    %v440 = vld [vmem:[#allocation8 + $0x370] sm:$0xff]
    %v441 = vld [vmem:[#allocation8 + $0x378] sm:$0xff]
    %v442 = vld [vmem:[#allocation8 + $0x380] sm:$0xff]
    %v443 = vld [vmem:[#allocation8 + $0x388] sm:$0xff]
    %v444 = vld [vmem:[#allocation8 + $0x390] sm:$0xff]
    %v445 = vld [vmem:[#allocation8 + $0x398] sm:$0xff]
    %v446 = vld [vmem:[#allocation8 + $0x3a0] sm:$0xff]
    %v447 = vld [vmem:[#allocation8 + $0x3a8] sm:$0xff]
    %v448 = vld [vmem:[#allocation8 + $0x3b0] sm:$0xff]
    %v449 = vld [vmem:[#allocation8 + $0x3b8] sm:$0xff]
    %v450 = vld [vmem:[#allocation8 + $0x3c0] sm:$0xff]
    %v451 = vld [vmem:[#allocation8 + $0x3c8] sm:$0xff]
    %v452 = vld [vmem:[#allocation8 + $0x3d0] sm:$0xff]
    %v453 = vld [vmem:[#allocation8 + $0x3d8] sm:$0xff]
    %v454 = vld [vmem:[#allocation8 + $0x3e0] sm:$0xff]
    %v455 = vld [vmem:[#allocation8 + $0x3e8] sm:$0xff]
    %v456 = vld [vmem:[#allocation8 + $0x3f0] sm:$0xff]
    %v457 = vld [vmem:[#allocation8 + $0x3f8] sm:$0xff]
    %v458 = vld [vmem:[#allocation8 + $0x400] sm:$0xff]
    %v459 = vld [vmem:[#allocation8 + $0x408] sm:$0xff]
    %v460 = vld [vmem:[#allocation8 + $0x410] sm:$0xff]
    %v461 = vld [vmem:[#allocation8 + $0x418] sm:$0xff]
    %v462 = vld [vmem:[#allocation8 + $0x420] sm:$0xff]
    %v463 = vld [vmem:[#allocation8 + $0x428] sm:$0xff]
    %v464 = vld [vmem:[#allocation8 + $0x430] sm:$0xff]
    %v465 = vld [vmem:[#allocation8 + $0x438] sm:$0xff]
    %v466 = vld [vmem:[#allocation8 + $0x440] sm:$0xff]
    %v467 = vld [vmem:[#allocation8 + $0x448] sm:$0xff]
    %v468 = vld [vmem:[#allocation8 + $0x450] sm:$0xff]
    %v469 = vld [vmem:[#allocation8 + $0x458] sm:$0xff]
    %v470 = vld [vmem:[#allocation8 + $0x460] sm:$0xff]
    %v471 = vld [vmem:[#allocation8 + $0x468] sm:$0xff]
    %v472 = vld [vmem:[#allocation8 + $0x470] sm:$0xff]
    %v473 = vld [vmem:[#allocation8 + $0x478] sm:$0xff]
    %v474 = vld [vmem:[#allocation8 + $0x480] sm:$0xff]
    %v475 = vld [vmem:[#allocation8 + $0x488] sm:$0xff]
    %v476 = vld [vmem:[#allocation8 + $0x490] sm:$0xff]
    %v477 = vld [vmem:[#allocation8 + $0x498] sm:$0xff]
    %v478 = vld [vmem:[#allocation8 + $0x4a0] sm:$0xff]
    %v479 = vld [vmem:[#allocation8 + $0x4a8] sm:$0xff]
    %v480 = vld [vmem:[#allocation8 + $0x4b0] sm:$0xff]
    %v481 = vld [vmem:[#allocation8 + $0x4b8] sm:$0xff]
    %v482 = vld [vmem:[#allocation8 + $0x4c0] sm:$0xff]
    %v483 = vld [vmem:[#allocation8 + $0x4c8] sm:$0xff]
    %v484 = vld [vmem:[#allocation8 + $0x4d0] sm:$0xff]
    %v485 = vld [vmem:[#allocation8 + $0x4d8] sm:$0xff]
    %v486 = vld [vmem:[#allocation8 + $0x4e0] sm:$0xff]
    %v487 = vld [vmem:[#allocation8 + $0x4e8] sm:$0xff]
    %v488 = vld [vmem:[#allocation8 + $0x4f0] sm:$0xff]
    %v489 = vld [vmem:[#allocation8 + $0x4f8] sm:$0xff]
    %v490 = vld [vmem:[#allocation8 + $0x500] sm:$0xff]
    %v491 = vld [vmem:[#allocation8 + $0x508] sm:$0xff]
    %v492 = vld [vmem:[#allocation8 + $0x510] sm:$0xff]
    %v493 = vld [vmem:[#allocation8 + $0x518] sm:$0xff]
    %v494 = vld [vmem:[#allocation8 + $0x520] sm:$0xff]
    %v495 = vld [vmem:[#allocation8 + $0x528] sm:$0xff]
    %v496 = vld [vmem:[#allocation8 + $0x530] sm:$0xff]
    %v497 = vld [vmem:[#allocation8 + $0x538] sm:$0xff]
    %v498 = vld [vmem:[#allocation8 + $0x540] sm:$0xff]
    %v499 = vld [vmem:[#allocation8 + $0x548] sm:$0xff]
    %v500 = vld [vmem:[#allocation8 + $0x550] sm:$0xff]
    %v501 = vld [vmem:[#allocation8 + $0x558] sm:$0xff]
    %v502 = vld [vmem:[#allocation8 + $0x560] sm:$0xff]
    %v503 = vld [vmem:[#allocation8 + $0x568] sm:$0xff]
    %v504 = vld [vmem:[#allocation8 + $0x570] sm:$0xff]
    %v505 = vld [vmem:[#allocation8 + $0x578] sm:$0xff]
    %v506 = vld [vmem:[#allocation8 + $0x580] sm:$0xff]
    %v507 = vld [vmem:[#allocation8 + $0x588] sm:$0xff]
    %v508 = vld [vmem:[#allocation8 + $0x590] sm:$0xff]
    %v509 = vld [vmem:[#allocation8 + $0x598] sm:$0xff]
    %v510 = vld [vmem:[#allocation8 + $0x5a0] sm:$0xff]
    %v511 = vld [vmem:[#allocation8 + $0x5a8] sm:$0xff]
    %v512 = vld [vmem:[#allocation8 + $0x5b0] sm:$0xff]
    %v513 = vld [vmem:[#allocation8 + $0x5b8] sm:$0xff]
    %v514 = vld [vmem:[#allocation8 + $0x5c0] sm:$0xff]
    %v515 = vld [vmem:[#allocation8 + $0x5c8] sm:$0xff]
    %v516 = vld [vmem:[#allocation8 + $0x5d0] sm:$0xff]
    %v517 = vld [vmem:[#allocation8 + $0x5d8] sm:$0xff]
    %v518 = vld [vmem:[#allocation8 + $0x5e0] sm:$0xff]
    %v519 = vld [vmem:[#allocation8 + $0x5e8] sm:$0xff]
    %v520 = vld [vmem:[#allocation8 + $0x5f0] sm:$0xff]
    %v521 = vld [vmem:[#allocation8 + $0x5f8] sm:$0xff]
    %v522 = vld [vmem:[#allocation8 + $0x600] sm:$0xff]
    %v523 = vld [vmem:[#allocation8 + $0x608] sm:$0xff]
    %v524 = vld [vmem:[#allocation8 + $0x610] sm:$0xff]
    %v525 = vld [vmem:[#allocation8 + $0x618] sm:$0xff]
    %v526 = vld [vmem:[#allocation8 + $0x620] sm:$0xff]
    %v527 = vld [vmem:[#allocation8 + $0x628] sm:$0xff]
    %v528 = vld [vmem:[#allocation8 + $0x630] sm:$0xff]
    %v529 = vld [vmem:[#allocation8 + $0x638] sm:$0xff]
    %v530 = vld [vmem:[#allocation8 + $0x640] sm:$0xff]
    %v531 = vld [vmem:[#allocation8 + $0x648] sm:$0xff]
    %v532 = vld [vmem:[#allocation8 + $0x650] sm:$0xff]
    %v533 = vld [vmem:[#allocation8 + $0x658] sm:$0xff]
    %v534 = vld [vmem:[#allocation8 + $0x660] sm:$0xff]
    %v535 = vld [vmem:[#allocation8 + $0x668] sm:$0xff]
    %v536 = vld [vmem:[#allocation8 + $0x670] sm:$0xff]
    %v537 = vld [vmem:[#allocation8 + $0x678] sm:$0xff]
    %v538 = vld [vmem:[#allocation8 + $0x680] sm:$0xff]
    %v539 = vld [vmem:[#allocation8 + $0x688] sm:$0xff]
    %v540 = vld [vmem:[#allocation8 + $0x690] sm:$0xff]
    %v541 = vld [vmem:[#allocation8 + $0x698] sm:$0xff]
    %v542 = vld [vmem:[#allocation8 + $0x6a0] sm:$0xff]
    %v543 = vld [vmem:[#allocation8 + $0x6a8] sm:$0xff]
    %v544 = vld [vmem:[#allocation8 + $0x6b0] sm:$0xff]
    %v545 = vld [vmem:[#allocation8 + $0x6b8] sm:$0xff]
    %v546 = vld [vmem:[#allocation8 + $0x6c0] sm:$0xff]
    %v547 = vld [vmem:[#allocation8 + $0x6c8] sm:$0xff]
    %v548 = vld [vmem:[#allocation8 + $0x6d0] sm:$0xff]
    %v549 = vld [vmem:[#allocation8 + $0x6d8] sm:$0xff]
    %v550 = vld [vmem:[#allocation8 + $0x6e0] sm:$0xff]
    %v551 = vld [vmem:[#allocation8 + $0x6e8] sm:$0xff]
    %v552 = vld [vmem:[#allocation8 + $0x6f0] sm:$0xff]
    %v553 = vld [vmem:[#allocation8 + $0x6f8] sm:$0xff]
    %v554 = vld [vmem:[#allocation8 + $0x700] sm:$0xff]
    %v555 = vld [vmem:[#allocation8 + $0x708] sm:$0xff]
    %v556 = vld [vmem:[#allocation8 + $0x710] sm:$0xff]
    %v557 = vld [vmem:[#allocation8 + $0x718] sm:$0xff]
    %v558 = vld [vmem:[#allocation8 + $0x720] sm:$0xff]
    %v559 = vld [vmem:[#allocation8 + $0x728] sm:$0xff]
    %v560 = vld [vmem:[#allocation8 + $0x730] sm:$0xff]
    %v561 = vld [vmem:[#allocation8 + $0x738] sm:$0xff]
    %v562 = vld [vmem:[#allocation8 + $0x740] sm:$0xff]
    %v563 = vld [vmem:[#allocation8 + $0x748] sm:$0xff]
    %v564 = vld [vmem:[#allocation8 + $0x750] sm:$0xff]
    %v565 = vld [vmem:[#allocation8 + $0x758] sm:$0xff]
    %v566 = vld [vmem:[#allocation8 + $0x760] sm:$0xff]
    %v567 = vld [vmem:[#allocation8 + $0x768] sm:$0xff]
    %v568 = vld [vmem:[#allocation8 + $0x770] sm:$0xff]
    %v569 = vld [vmem:[#allocation8 + $0x778] sm:$0xff]
    %v570 = vld [vmem:[#allocation8 + $0x780] sm:$0xff]
    %v571 = vld [vmem:[#allocation8 + $0x788] sm:$0xff]
    %v572 = vld [vmem:[#allocation8 + $0x790] sm:$0xff]
    %v573 = vld [vmem:[#allocation8 + $0x798] sm:$0xff]
    %v574 = vld [vmem:[#allocation8 + $0x7a0] sm:$0xff]
    %v575 = vld [vmem:[#allocation8 + $0x7a8] sm:$0xff]
    %v576 = vld [vmem:[#allocation8 + $0x7b0] sm:$0xff]
    %v577 = vld [vmem:[#allocation8 + $0x7b8] sm:$0xff]
    %v578 = vld [vmem:[#allocation8 + $0x7c0] sm:$0xff]
    %v579 = vld [vmem:[#allocation8 + $0x7c8] sm:$0xff]
    %v580 = vld [vmem:[#allocation8 + $0x7d0] sm:$0xff]
    %v581 = vld [vmem:[#allocation8 + $0x7d8] sm:$0xff]
    %v582 = vld [vmem:[#allocation8 + $0x7e0] sm:$0xff]
    %v583 = vld [vmem:[#allocation8 + $0x7e8] sm:$0xff]
    %v584 = vld [vmem:[#allocation8 + $0x7f0] sm:$0xff]
    %v585 = vld [vmem:[#allocation8 + $0x7f8] sm:$0xff]
    %v586 = vld [vmem:[#allocation10] sm:$0xff]
    %v588 = vlaneseq
    %v589 = vshrl.u32 %v588, 7
    %v590 = vsub.s32 0, %v589
    %v591 = vrot.slane %v586, %v590
    %v592 = vlaneseq
    %v593 = vshrl.u32 %v592, 7
    %v594 = vsub.s32 1, %v593
    %v595 = vrot.slane %v586, %v594
    %v596 = vlaneseq
    %v597 = vshrl.u32 %v596, 7
    %v598 = vsub.s32 2, %v597
    %v599 = vrot.slane %v586, %v598
    %v600 = vlaneseq
    %v601 = vshrl.u32 %v600, 7
    %v602 = vsub.s32 3, %v601
    %v603 = vrot.slane %v586, %v602
    %v604 = vlaneseq
    %v605 = vshrl.u32 %v604, 7
    %v606 = vsub.s32 4, %v605
    %v607 = vrot.slane %v586, %v606
    %v608 = vlaneseq
    %v609 = vshrl.u32 %v608, 7
    %v610 = vsub.s32 5, %v609
    %v611 = vrot.slane %v586, %v610
    %v612 = vlaneseq
    %v613 = vshrl.u32 %v612, 7
    %v614 = vsub.s32 6, %v613
    %v615 = vrot.slane %v586, %v614
    %v616 = vlaneseq
    %v617 = vshrl.u32 %v616, 7
    %v618 = vsub.s32 7, %v617
    %v619 = vrot.slane %v586, %v618
    %v884 = vunpack.c.l.b16 %v330
    %v885 = vunpack.c.h.b16 %v330
    %v886 = vunpack.c.l.b16 %v331
    %v887 = vunpack.c.h.b16 %v331
    %v888 = vunpack.c.l.b16 %v332
    %v889 = vunpack.c.h.b16 %v332
    %v890 = vunpack.c.l.b16 %v333
    %v891 = vunpack.c.h.b16 %v333
    %v892 = vunpack.c.l.b16 %v334
    %v893 = vunpack.c.h.b16 %v334
    %v894 = vunpack.c.l.b16 %v335
    %v895 = vunpack.c.h.b16 %v335
    %v896 = vunpack.c.l.b16 %v336
    %v897 = vunpack.c.h.b16 %v336
    %v898 = vunpack.c.l.b16 %v337
    %v899 = vunpack.c.h.b16 %v337
    %v900 = vunpack.c.l.b16 %v338
    %v901 = vunpack.c.h.b16 %v338
    %v902 = vunpack.c.l.b16 %v339
    %v903 = vunpack.c.h.b16 %v339
    %v904 = vunpack.c.l.b16 %v340
    %v905 = vunpack.c.h.b16 %v340
    %v906 = vunpack.c.l.b16 %v341
    %v907 = vunpack.c.h.b16 %v341
    %v908 = vunpack.c.l.b16 %v342
    %v909 = vunpack.c.h.b16 %v342
    %v910 = vunpack.c.l.b16 %v343
    %v911 = vunpack.c.h.b16 %v343
    %v912 = vunpack.c.l.b16 %v344
    %v913 = vunpack.c.h.b16 %v344
    %v914 = vunpack.c.l.b16 %v345
    %v915 = vunpack.c.h.b16 %v345
    %v916 = vunpack.c.l.b16 %v346
    %v917 = vunpack.c.h.b16 %v346
    %v918 = vunpack.c.l.b16 %v347
    %v919 = vunpack.c.h.b16 %v347
    %v920 = vunpack.c.l.b16 %v348
    %v921 = vunpack.c.h.b16 %v348
    %v922 = vunpack.c.l.b16 %v349
    %v923 = vunpack.c.h.b16 %v349
    %v924 = vunpack.c.l.b16 %v350
    %v925 = vunpack.c.h.b16 %v350
    %v926 = vunpack.c.l.b16 %v351
    %v927 = vunpack.c.h.b16 %v351
    %v928 = vunpack.c.l.b16 %v352
    %v929 = vunpack.c.h.b16 %v352
    %v930 = vunpack.c.l.b16 %v353
    %v931 = vunpack.c.h.b16 %v353
    %v932 = vunpack.c.l.b16 %v354
    %v933 = vunpack.c.h.b16 %v354
    %v934 = vunpack.c.l.b16 %v355
    %v935 = vunpack.c.h.b16 %v355
    %v936 = vunpack.c.l.b16 %v356
    %v937 = vunpack.c.h.b16 %v356
    %v938 = vunpack.c.l.b16 %v357
    %v939 = vunpack.c.h.b16 %v357
    %v940 = vunpack.c.l.b16 %v358
    %v941 = vunpack.c.h.b16 %v358
    %v942 = vunpack.c.l.b16 %v359
    %v943 = vunpack.c.h.b16 %v359
    %v944 = vunpack.c.l.b16 %v360
    %v945 = vunpack.c.h.b16 %v360
    %v946 = vunpack.c.l.b16 %v361
    %v947 = vunpack.c.h.b16 %v361
    %v948 = vunpack.c.l.b16 %v362
    %v949 = vunpack.c.h.b16 %v362
    %v950 = vunpack.c.l.b16 %v363
    %v951 = vunpack.c.h.b16 %v363
    %v952 = vunpack.c.l.b16 %v364
    %v953 = vunpack.c.h.b16 %v364
    %v954 = vunpack.c.l.b16 %v365
    %v955 = vunpack.c.h.b16 %v365
    %v956 = vunpack.c.l.b16 %v366
    %v957 = vunpack.c.h.b16 %v366
    %v958 = vunpack.c.l.b16 %v367
    %v959 = vunpack.c.h.b16 %v367
    %v960 = vunpack.c.l.b16 %v368
    %v961 = vunpack.c.h.b16 %v368
    %v962 = vunpack.c.l.b16 %v369
    %v963 = vunpack.c.h.b16 %v369
    %v964 = vunpack.c.l.b16 %v370
    %v965 = vunpack.c.h.b16 %v370
    %v966 = vunpack.c.l.b16 %v371
    %v967 = vunpack.c.h.b16 %v371
    %v968 = vunpack.c.l.b16 %v372
    %v969 = vunpack.c.h.b16 %v372
    %v970 = vunpack.c.l.b16 %v373
    %v971 = vunpack.c.h.b16 %v373
    %v972 = vunpack.c.l.b16 %v374
    %v973 = vunpack.c.h.b16 %v374
    %v974 = vunpack.c.l.b16 %v375
    %v975 = vunpack.c.h.b16 %v375
    %v976 = vunpack.c.l.b16 %v376
    %v977 = vunpack.c.h.b16 %v376
    %v978 = vunpack.c.l.b16 %v377
    %v979 = vunpack.c.h.b16 %v377
    %v980 = vunpack.c.l.b16 %v378
    %v981 = vunpack.c.h.b16 %v378
    %v982 = vunpack.c.l.b16 %v379
    %v983 = vunpack.c.h.b16 %v379
    %v984 = vunpack.c.l.b16 %v380
    %v985 = vunpack.c.h.b16 %v380
    %v986 = vunpack.c.l.b16 %v381
    %v987 = vunpack.c.h.b16 %v381
    %v988 = vunpack.c.l.b16 %v382
    %v989 = vunpack.c.h.b16 %v382
    %v990 = vunpack.c.l.b16 %v383
    %v991 = vunpack.c.h.b16 %v383
    %v992 = vunpack.c.l.b16 %v384
    %v993 = vunpack.c.h.b16 %v384
    %v994 = vunpack.c.l.b16 %v385
    %v995 = vunpack.c.h.b16 %v385
    %v996 = vunpack.c.l.b16 %v386
    %v997 = vunpack.c.h.b16 %v386
    %v998 = vunpack.c.l.b16 %v387
    %v999 = vunpack.c.h.b16 %v387
    %v1000 = vunpack.c.l.b16 %v388
    %v1001 = vunpack.c.h.b16 %v388
    %v1002 = vunpack.c.l.b16 %v389
    %v1003 = vunpack.c.h.b16 %v389
    %v1004 = vunpack.c.l.b16 %v390
    %v1005 = vunpack.c.h.b16 %v390
    %v1006 = vunpack.c.l.b16 %v391
    %v1007 = vunpack.c.h.b16 %v391
    %v1008 = vunpack.c.l.b16 %v392
    %v1009 = vunpack.c.h.b16 %v392
    %v1010 = vunpack.c.l.b16 %v393
    %v1011 = vunpack.c.h.b16 %v393
    %v1012 = vunpack.c.l.b16 %v394
    %v1013 = vunpack.c.h.b16 %v394
    %v1014 = vunpack.c.l.b16 %v395
    %v1015 = vunpack.c.h.b16 %v395
    %v1016 = vunpack.c.l.b16 %v396
    %v1017 = vunpack.c.h.b16 %v396
    %v1018 = vunpack.c.l.b16 %v397
    %v1019 = vunpack.c.h.b16 %v397
    %v1020 = vunpack.c.l.b16 %v398
    %v1021 = vunpack.c.h.b16 %v398
    %v1022 = vunpack.c.l.b16 %v399
    %v1023 = vunpack.c.h.b16 %v399
    %v1024 = vunpack.c.l.b16 %v400
    %v1025 = vunpack.c.h.b16 %v400
    %v1026 = vunpack.c.l.b16 %v401
    %v1027 = vunpack.c.h.b16 %v401
    %v1028 = vunpack.c.l.b16 %v402
    %v1029 = vunpack.c.h.b16 %v402
    %v1030 = vunpack.c.l.b16 %v403
    %v1031 = vunpack.c.h.b16 %v403
    %v1032 = vunpack.c.l.b16 %v404
    %v1033 = vunpack.c.h.b16 %v404
    %v1034 = vunpack.c.l.b16 %v405
    %v1035 = vunpack.c.h.b16 %v405
    %v1036 = vunpack.c.l.b16 %v406
    %v1037 = vunpack.c.h.b16 %v406
    %v1038 = vunpack.c.l.b16 %v407
    %v1039 = vunpack.c.h.b16 %v407
    %v1040 = vunpack.c.l.b16 %v408
    %v1041 = vunpack.c.h.b16 %v408
    %v1042 = vunpack.c.l.b16 %v409
    %v1043 = vunpack.c.h.b16 %v409
    %v1044 = vunpack.c.l.b16 %v410
    %v1045 = vunpack.c.h.b16 %v410
    %v1046 = vunpack.c.l.b16 %v411
    %v1047 = vunpack.c.h.b16 %v411
    %v1048 = vunpack.c.l.b16 %v412
    %v1049 = vunpack.c.h.b16 %v412
    %v1050 = vunpack.c.l.b16 %v413
    %v1051 = vunpack.c.h.b16 %v413
    %v1052 = vunpack.c.l.b16 %v414
    %v1053 = vunpack.c.h.b16 %v414
    %v1054 = vunpack.c.l.b16 %v415
    %v1055 = vunpack.c.h.b16 %v415
    %v1056 = vunpack.c.l.b16 %v416
    %v1057 = vunpack.c.h.b16 %v416
    %v1058 = vunpack.c.l.b16 %v417
    %v1059 = vunpack.c.h.b16 %v417
    %v1060 = vunpack.c.l.b16 %v418
    %v1061 = vunpack.c.h.b16 %v418
    %v1062 = vunpack.c.l.b16 %v419
    %v1063 = vunpack.c.h.b16 %v419
    %v1064 = vunpack.c.l.b16 %v420
    %v1065 = vunpack.c.h.b16 %v420
    %v1066 = vunpack.c.l.b16 %v421
    %v1067 = vunpack.c.h.b16 %v421
    %v1068 = vunpack.c.l.b16 %v422
    %v1069 = vunpack.c.h.b16 %v422
    %v1070 = vunpack.c.l.b16 %v423
    %v1071 = vunpack.c.h.b16 %v423
    %v1072 = vunpack.c.l.b16 %v424
    %v1073 = vunpack.c.h.b16 %v424
    %v1074 = vunpack.c.l.b16 %v425
    %v1075 = vunpack.c.h.b16 %v425
    %v1076 = vunpack.c.l.b16 %v426
    %v1077 = vunpack.c.h.b16 %v426
    %v1078 = vunpack.c.l.b16 %v427
    %v1079 = vunpack.c.h.b16 %v427
    %v1080 = vunpack.c.l.b16 %v428
    %v1081 = vunpack.c.h.b16 %v428
    %v1082 = vunpack.c.l.b16 %v429
    %v1083 = vunpack.c.h.b16 %v429
    %v1084 = vunpack.c.l.b16 %v430
    %v1085 = vunpack.c.h.b16 %v430
    %v1086 = vunpack.c.l.b16 %v431
    %v1087 = vunpack.c.h.b16 %v431
    %v1088 = vunpack.c.l.b16 %v432
    %v1089 = vunpack.c.h.b16 %v432
    %v1090 = vunpack.c.l.b16 %v433
    %v1091 = vunpack.c.h.b16 %v433
    %v1092 = vunpack.c.l.b16 %v434
    %v1093 = vunpack.c.h.b16 %v434
    %v1094 = vunpack.c.l.b16 %v435
    %v1095 = vunpack.c.h.b16 %v435
    %v1096 = vunpack.c.l.b16 %v436
    %v1097 = vunpack.c.h.b16 %v436
    %v1098 = vunpack.c.l.b16 %v437
    %v1099 = vunpack.c.h.b16 %v437
    %v1100 = vunpack.c.l.b16 %v438
    %v1101 = vunpack.c.h.b16 %v438
    %v1102 = vunpack.c.l.b16 %v439
    %v1103 = vunpack.c.h.b16 %v439
    %v1104 = vunpack.c.l.b16 %v440
    %v1105 = vunpack.c.h.b16 %v440
    %v1106 = vunpack.c.l.b16 %v441
    %v1107 = vunpack.c.h.b16 %v441
    %v1108 = vunpack.c.l.b16 %v442
    %v1109 = vunpack.c.h.b16 %v442
    %v1110 = vunpack.c.l.b16 %v443
    %v1111 = vunpack.c.h.b16 %v443
    %v1112 = vunpack.c.l.b16 %v444
    %v1113 = vunpack.c.h.b16 %v444
    %v1114 = vunpack.c.l.b16 %v445
    %v1115 = vunpack.c.h.b16 %v445
    %v1116 = vunpack.c.l.b16 %v446
    %v1117 = vunpack.c.h.b16 %v446
    %v1118 = vunpack.c.l.b16 %v447
    %v1119 = vunpack.c.h.b16 %v447
    %v1120 = vunpack.c.l.b16 %v448
    %v1121 = vunpack.c.h.b16 %v448
    %v1122 = vunpack.c.l.b16 %v449
    %v1123 = vunpack.c.h.b16 %v449
    %v1124 = vunpack.c.l.b16 %v450
    %v1125 = vunpack.c.h.b16 %v450
    %v1126 = vunpack.c.l.b16 %v451
    %v1127 = vunpack.c.h.b16 %v451
    %v1128 = vunpack.c.l.b16 %v452
    %v1129 = vunpack.c.h.b16 %v452
    %v1130 = vunpack.c.l.b16 %v453
    %v1131 = vunpack.c.h.b16 %v453
    %v1132 = vunpack.c.l.b16 %v454
    %v1133 = vunpack.c.h.b16 %v454
    %v1134 = vunpack.c.l.b16 %v455
    %v1135 = vunpack.c.h.b16 %v455
    %v1136 = vunpack.c.l.b16 %v456
    %v1137 = vunpack.c.h.b16 %v456
    %v1138 = vunpack.c.l.b16 %v457
    %v1139 = vunpack.c.h.b16 %v457
    %v1140 = vunpack.c.l.b16 %v458
    %v1141 = vunpack.c.h.b16 %v458
    %v1142 = vunpack.c.l.b16 %v459
    %v1143 = vunpack.c.h.b16 %v459
    %v1144 = vunpack.c.l.b16 %v460
    %v1145 = vunpack.c.h.b16 %v460
    %v1146 = vunpack.c.l.b16 %v461
    %v1147 = vunpack.c.h.b16 %v461
    %v1148 = vunpack.c.l.b16 %v462
    %v1149 = vunpack.c.h.b16 %v462
    %v1150 = vunpack.c.l.b16 %v463
    %v1151 = vunpack.c.h.b16 %v463
    %v1152 = vunpack.c.l.b16 %v464
    %v1153 = vunpack.c.h.b16 %v464
    %v1154 = vunpack.c.l.b16 %v465
    %v1155 = vunpack.c.h.b16 %v465
    %v1156 = vunpack.c.l.b16 %v466
    %v1157 = vunpack.c.h.b16 %v466
    %v1158 = vunpack.c.l.b16 %v467
    %v1159 = vunpack.c.h.b16 %v467
    %v1160 = vunpack.c.l.b16 %v468
    %v1161 = vunpack.c.h.b16 %v468
    %v1162 = vunpack.c.l.b16 %v469
    %v1163 = vunpack.c.h.b16 %v469
    %v1164 = vunpack.c.l.b16 %v470
    %v1165 = vunpack.c.h.b16 %v470
    %v1166 = vunpack.c.l.b16 %v471
    %v1167 = vunpack.c.h.b16 %v471
    %v1168 = vunpack.c.l.b16 %v472
    %v1169 = vunpack.c.h.b16 %v472
    %v1170 = vunpack.c.l.b16 %v473
    %v1171 = vunpack.c.h.b16 %v473
    %v1172 = vunpack.c.l.b16 %v474
    %v1173 = vunpack.c.h.b16 %v474
    %v1174 = vunpack.c.l.b16 %v475
    %v1175 = vunpack.c.h.b16 %v475
    %v1176 = vunpack.c.l.b16 %v476
    %v1177 = vunpack.c.h.b16 %v476
    %v1178 = vunpack.c.l.b16 %v477
    %v1179 = vunpack.c.h.b16 %v477
    %v1180 = vunpack.c.l.b16 %v478
    %v1181 = vunpack.c.h.b16 %v478
    %v1182 = vunpack.c.l.b16 %v479
    %v1183 = vunpack.c.h.b16 %v479
    %v1184 = vunpack.c.l.b16 %v480
    %v1185 = vunpack.c.h.b16 %v480
    %v1186 = vunpack.c.l.b16 %v481
    %v1187 = vunpack.c.h.b16 %v481
    %v1188 = vunpack.c.l.b16 %v482
    %v1189 = vunpack.c.h.b16 %v482
    %v1190 = vunpack.c.l.b16 %v483
    %v1191 = vunpack.c.h.b16 %v483
    %v1192 = vunpack.c.l.b16 %v484
    %v1193 = vunpack.c.h.b16 %v484
    %v1194 = vunpack.c.l.b16 %v485
    %v1195 = vunpack.c.h.b16 %v485
    %v1196 = vunpack.c.l.b16 %v486
    %v1197 = vunpack.c.h.b16 %v486
    %v1198 = vunpack.c.l.b16 %v487
    %v1199 = vunpack.c.h.b16 %v487
    %v1200 = vunpack.c.l.b16 %v488
    %v1201 = vunpack.c.h.b16 %v488
    %v1202 = vunpack.c.l.b16 %v489
    %v1203 = vunpack.c.h.b16 %v489
    %v1204 = vunpack.c.l.b16 %v490
    %v1205 = vunpack.c.h.b16 %v490
    %v1206 = vunpack.c.l.b16 %v491
    %v1207 = vunpack.c.h.b16 %v491
    %v1208 = vunpack.c.l.b16 %v492
    %v1209 = vunpack.c.h.b16 %v492
    %v1210 = vunpack.c.l.b16 %v493
    %v1211 = vunpack.c.h.b16 %v493
    %v1212 = vunpack.c.l.b16 %v494
    %v1213 = vunpack.c.h.b16 %v494
    %v1214 = vunpack.c.l.b16 %v495
    %v1215 = vunpack.c.h.b16 %v495
    %v1216 = vunpack.c.l.b16 %v496
    %v1217 = vunpack.c.h.b16 %v496
    %v1218 = vunpack.c.l.b16 %v497
    %v1219 = vunpack.c.h.b16 %v497
    %v1220 = vunpack.c.l.b16 %v498
    %v1221 = vunpack.c.h.b16 %v498
    %v1222 = vunpack.c.l.b16 %v499
    %v1223 = vunpack.c.h.b16 %v499
    %v1224 = vunpack.c.l.b16 %v500
    %v1225 = vunpack.c.h.b16 %v500
    %v1226 = vunpack.c.l.b16 %v501
    %v1227 = vunpack.c.h.b16 %v501
    %v1228 = vunpack.c.l.b16 %v502
    %v1229 = vunpack.c.h.b16 %v502
    %v1230 = vunpack.c.l.b16 %v503
    %v1231 = vunpack.c.h.b16 %v503
    %v1232 = vunpack.c.l.b16 %v504
    %v1233 = vunpack.c.h.b16 %v504
    %v1234 = vunpack.c.l.b16 %v505
    %v1235 = vunpack.c.h.b16 %v505
    %v1236 = vunpack.c.l.b16 %v506
    %v1237 = vunpack.c.h.b16 %v506
    %v1238 = vunpack.c.l.b16 %v507
    %v1239 = vunpack.c.h.b16 %v507
    %v1240 = vunpack.c.l.b16 %v508
    %v1241 = vunpack.c.h.b16 %v508
    %v1242 = vunpack.c.l.b16 %v509
    %v1243 = vunpack.c.h.b16 %v509
    %v1244 = vunpack.c.l.b16 %v510
    %v1245 = vunpack.c.h.b16 %v510
    %v1246 = vunpack.c.l.b16 %v511
    %v1247 = vunpack.c.h.b16 %v511
    %v1248 = vunpack.c.l.b16 %v512
    %v1249 = vunpack.c.h.b16 %v512
    %v1250 = vunpack.c.l.b16 %v513
    %v1251 = vunpack.c.h.b16 %v513
    %v1252 = vunpack.c.l.b16 %v514
    %v1253 = vunpack.c.h.b16 %v514
    %v1254 = vunpack.c.l.b16 %v515
    %v1255 = vunpack.c.h.b16 %v515
    %v1256 = vunpack.c.l.b16 %v516
    %v1257 = vunpack.c.h.b16 %v516
    %v1258 = vunpack.c.l.b16 %v517
    %v1259 = vunpack.c.h.b16 %v517
    %v1260 = vunpack.c.l.b16 %v518
    %v1261 = vunpack.c.h.b16 %v518
    %v1262 = vunpack.c.l.b16 %v519
    %v1263 = vunpack.c.h.b16 %v519
    %v1264 = vunpack.c.l.b16 %v520
    %v1265 = vunpack.c.h.b16 %v520
    %v1266 = vunpack.c.l.b16 %v521
    %v1267 = vunpack.c.h.b16 %v521
    %v1268 = vunpack.c.l.b16 %v522
    %v1269 = vunpack.c.h.b16 %v522
    %v1270 = vunpack.c.l.b16 %v523
    %v1271 = vunpack.c.h.b16 %v523
    %v1272 = vunpack.c.l.b16 %v524
    %v1273 = vunpack.c.h.b16 %v524
    %v1274 = vunpack.c.l.b16 %v525
    %v1275 = vunpack.c.h.b16 %v525
    %v1276 = vunpack.c.l.b16 %v526
    %v1277 = vunpack.c.h.b16 %v526
    %v1278 = vunpack.c.l.b16 %v527
    %v1279 = vunpack.c.h.b16 %v527
    %v1280 = vunpack.c.l.b16 %v528
    %v1281 = vunpack.c.h.b16 %v528
    %v1282 = vunpack.c.l.b16 %v529
    %v1283 = vunpack.c.h.b16 %v529
    %v1284 = vunpack.c.l.b16 %v530
    %v1285 = vunpack.c.h.b16 %v530
    %v1286 = vunpack.c.l.b16 %v531
    %v1287 = vunpack.c.h.b16 %v531
    %v1288 = vunpack.c.l.b16 %v532
    %v1289 = vunpack.c.h.b16 %v532
    %v1290 = vunpack.c.l.b16 %v533
    %v1291 = vunpack.c.h.b16 %v533
    %v1292 = vunpack.c.l.b16 %v534
    %v1293 = vunpack.c.h.b16 %v534
    %v1294 = vunpack.c.l.b16 %v535
    %v1295 = vunpack.c.h.b16 %v535
    %v1296 = vunpack.c.l.b16 %v536
    %v1297 = vunpack.c.h.b16 %v536
    %v1298 = vunpack.c.l.b16 %v537
    %v1299 = vunpack.c.h.b16 %v537
    %v1300 = vunpack.c.l.b16 %v538
    %v1301 = vunpack.c.h.b16 %v538
    %v1302 = vunpack.c.l.b16 %v539
    %v1303 = vunpack.c.h.b16 %v539
    %v1304 = vunpack.c.l.b16 %v540
    %v1305 = vunpack.c.h.b16 %v540
    %v1306 = vunpack.c.l.b16 %v541
    %v1307 = vunpack.c.h.b16 %v541
    %v1308 = vunpack.c.l.b16 %v542
    %v1309 = vunpack.c.h.b16 %v542
    %v1310 = vunpack.c.l.b16 %v543
    %v1311 = vunpack.c.h.b16 %v543
    %v1312 = vunpack.c.l.b16 %v544
    %v1313 = vunpack.c.h.b16 %v544
    %v1314 = vunpack.c.l.b16 %v545
    %v1315 = vunpack.c.h.b16 %v545
    %v1316 = vunpack.c.l.b16 %v546
    %v1317 = vunpack.c.h.b16 %v546
    %v1318 = vunpack.c.l.b16 %v547
    %v1319 = vunpack.c.h.b16 %v547
    %v1320 = vunpack.c.l.b16 %v548
    %v1321 = vunpack.c.h.b16 %v548
    %v1322 = vunpack.c.l.b16 %v549
    %v1323 = vunpack.c.h.b16 %v549
    %v1324 = vunpack.c.l.b16 %v550
    %v1325 = vunpack.c.h.b16 %v550
    %v1326 = vunpack.c.l.b16 %v551
    %v1327 = vunpack.c.h.b16 %v551
    %v1328 = vunpack.c.l.b16 %v552
    %v1329 = vunpack.c.h.b16 %v552
    %v1330 = vunpack.c.l.b16 %v553
    %v1331 = vunpack.c.h.b16 %v553
    %v1332 = vunpack.c.l.b16 %v554
    %v1333 = vunpack.c.h.b16 %v554
    %v1334 = vunpack.c.l.b16 %v555
    %v1335 = vunpack.c.h.b16 %v555
    %v1336 = vunpack.c.l.b16 %v556
    %v1337 = vunpack.c.h.b16 %v556
    %v1338 = vunpack.c.l.b16 %v557
    %v1339 = vunpack.c.h.b16 %v557
    %v1340 = vunpack.c.l.b16 %v558
    %v1341 = vunpack.c.h.b16 %v558
    %v1342 = vunpack.c.l.b16 %v559
    %v1343 = vunpack.c.h.b16 %v559
    %v1344 = vunpack.c.l.b16 %v560
    %v1345 = vunpack.c.h.b16 %v560
    %v1346 = vunpack.c.l.b16 %v561
    %v1347 = vunpack.c.h.b16 %v561
    %v1348 = vunpack.c.l.b16 %v562
    %v1349 = vunpack.c.h.b16 %v562
    %v1350 = vunpack.c.l.b16 %v563
    %v1351 = vunpack.c.h.b16 %v563
    %v1352 = vunpack.c.l.b16 %v564
    %v1353 = vunpack.c.h.b16 %v564
    %v1354 = vunpack.c.l.b16 %v565
    %v1355 = vunpack.c.h.b16 %v565
    %v1356 = vunpack.c.l.b16 %v566
    %v1357 = vunpack.c.h.b16 %v566
    %v1358 = vunpack.c.l.b16 %v567
    %v1359 = vunpack.c.h.b16 %v567
    %v1360 = vunpack.c.l.b16 %v568
    %v1361 = vunpack.c.h.b16 %v568
    %v1362 = vunpack.c.l.b16 %v569
    %v1363 = vunpack.c.h.b16 %v569
    %v1364 = vunpack.c.l.b16 %v570
    %v1365 = vunpack.c.h.b16 %v570
    %v1366 = vunpack.c.l.b16 %v571
    %v1367 = vunpack.c.h.b16 %v571
    %v1368 = vunpack.c.l.b16 %v572
    %v1369 = vunpack.c.h.b16 %v572
    %v1370 = vunpack.c.l.b16 %v573
    %v1371 = vunpack.c.h.b16 %v573
    %v1372 = vunpack.c.l.b16 %v574
    %v1373 = vunpack.c.h.b16 %v574
    %v1374 = vunpack.c.l.b16 %v575
    %v1375 = vunpack.c.h.b16 %v575
    %v1376 = vunpack.c.l.b16 %v576
    %v1377 = vunpack.c.h.b16 %v576
    %v1378 = vunpack.c.l.b16 %v577
    %v1379 = vunpack.c.h.b16 %v577
    %v1380 = vunpack.c.l.b16 %v578
    %v1381 = vunpack.c.h.b16 %v578
    %v1382 = vunpack.c.l.b16 %v579
    %v1383 = vunpack.c.h.b16 %v579
    %v1384 = vunpack.c.l.b16 %v580
    %v1385 = vunpack.c.h.b16 %v580
    %v1386 = vunpack.c.l.b16 %v581
    %v1387 = vunpack.c.h.b16 %v581
    %v1388 = vunpack.c.l.b16 %v582
    %v1389 = vunpack.c.h.b16 %v582
    %v1390 = vunpack.c.l.b16 %v583
    %v1391 = vunpack.c.h.b16 %v583
    %v1392 = vunpack.c.l.b16 %v584
    %v1393 = vunpack.c.h.b16 %v584
    %v1394 = vunpack.c.l.b16 %v585
    %v1395 = vunpack.c.h.b16 %v585
    %v1396 = vpack.c.b16 %v892, %v884
    %v1397 = vpack.c.b16 %v893, %v885
    %v1398 = vpack.c.b16 %v894, %v886
    %v1399 = vpack.c.b16 %v895, %v887
    %v1400 = vpack.c.b16 %v896, %v888
    %v1401 = vpack.c.b16 %v897, %v889
    %v1402 = vpack.c.b16 %v898, %v890
    %v1403 = vpack.c.b16 %v899, %v891
    %v1404 = vpack.c.b16 %v908, %v900
    %v1405 = vpack.c.b16 %v909, %v901
    %v1406 = vpack.c.b16 %v910, %v902
    %v1407 = vpack.c.b16 %v911, %v903
    %v1408 = vpack.c.b16 %v912, %v904
    %v1409 = vpack.c.b16 %v913, %v905
    %v1410 = vpack.c.b16 %v914, %v906
    %v1411 = vpack.c.b16 %v915, %v907
    %v1412 = vpack.c.b16 %v924, %v916
    %v1413 = vpack.c.b16 %v925, %v917
    %v1414 = vpack.c.b16 %v926, %v918
    %v1415 = vpack.c.b16 %v927, %v919
    %v1416 = vpack.c.b16 %v928, %v920
    %v1417 = vpack.c.b16 %v929, %v921
    %v1418 = vpack.c.b16 %v930, %v922
    %v1419 = vpack.c.b16 %v931, %v923
    %v1420 = vpack.c.b16 %v940, %v932
    %v1421 = vpack.c.b16 %v941, %v933
    %v1422 = vpack.c.b16 %v942, %v934
    %v1423 = vpack.c.b16 %v943, %v935
    %v1424 = vpack.c.b16 %v944, %v936
    %v1425 = vpack.c.b16 %v945, %v937
    %v1426 = vpack.c.b16 %v946, %v938
    %v1427 = vpack.c.b16 %v947, %v939
    %v1428 = vpack.c.b16 %v956, %v948
    %v1429 = vpack.c.b16 %v957, %v949
    %v1430 = vpack.c.b16 %v958, %v950
    %v1431 = vpack.c.b16 %v959, %v951
    %v1432 = vpack.c.b16 %v960, %v952
    %v1433 = vpack.c.b16 %v961, %v953
    %v1434 = vpack.c.b16 %v962, %v954
    %v1435 = vpack.c.b16 %v963, %v955
    %v1436 = vpack.c.b16 %v972, %v964
    %v1437 = vpack.c.b16 %v973, %v965
    %v1438 = vpack.c.b16 %v974, %v966
    %v1439 = vpack.c.b16 %v975, %v967
    %v1440 = vpack.c.b16 %v976, %v968
    %v1441 = vpack.c.b16 %v977, %v969
    %v1442 = vpack.c.b16 %v978, %v970
    %v1443 = vpack.c.b16 %v979, %v971
    %v1444 = vpack.c.b16 %v988, %v980
    %v1445 = vpack.c.b16 %v989, %v981
    %v1446 = vpack.c.b16 %v990, %v982
    %v1447 = vpack.c.b16 %v991, %v983
    %v1448 = vpack.c.b16 %v992, %v984
    %v1449 = vpack.c.b16 %v993, %v985
    %v1450 = vpack.c.b16 %v994, %v986
    %v1451 = vpack.c.b16 %v995, %v987
    %v1452 = vpack.c.b16 %v1004, %v996
    %v1453 = vpack.c.b16 %v1005, %v997
    %v1454 = vpack.c.b16 %v1006, %v998
    %v1455 = vpack.c.b16 %v1007, %v999
    %v1456 = vpack.c.b16 %v1008, %v1000
    %v1457 = vpack.c.b16 %v1009, %v1001
    %v1458 = vpack.c.b16 %v1010, %v1002
    %v1459 = vpack.c.b16 %v1011, %v1003
    %v1460 = vpack.c.b16 %v1020, %v1012
    %v1461 = vpack.c.b16 %v1021, %v1013
    %v1462 = vpack.c.b16 %v1022, %v1014
    %v1463 = vpack.c.b16 %v1023, %v1015
    %v1464 = vpack.c.b16 %v1024, %v1016
    %v1465 = vpack.c.b16 %v1025, %v1017
    %v1466 = vpack.c.b16 %v1026, %v1018
    %v1467 = vpack.c.b16 %v1027, %v1019
    %v1468 = vpack.c.b16 %v1036, %v1028
    %v1469 = vpack.c.b16 %v1037, %v1029
    %v1470 = vpack.c.b16 %v1038, %v1030
    %v1471 = vpack.c.b16 %v1039, %v1031
    %v1472 = vpack.c.b16 %v1040, %v1032
    %v1473 = vpack.c.b16 %v1041, %v1033
    %v1474 = vpack.c.b16 %v1042, %v1034
    %v1475 = vpack.c.b16 %v1043, %v1035
    %v1476 = vpack.c.b16 %v1052, %v1044
    %v1477 = vpack.c.b16 %v1053, %v1045
    %v1478 = vpack.c.b16 %v1054, %v1046
    %v1479 = vpack.c.b16 %v1055, %v1047
    %v1480 = vpack.c.b16 %v1056, %v1048
    %v1481 = vpack.c.b16 %v1057, %v1049
    %v1482 = vpack.c.b16 %v1058, %v1050
    %v1483 = vpack.c.b16 %v1059, %v1051
    %v1484 = vpack.c.b16 %v1068, %v1060
    %v1485 = vpack.c.b16 %v1069, %v1061
    %v1486 = vpack.c.b16 %v1070, %v1062
    %v1487 = vpack.c.b16 %v1071, %v1063
    %v1488 = vpack.c.b16 %v1072, %v1064
    %v1489 = vpack.c.b16 %v1073, %v1065
    %v1490 = vpack.c.b16 %v1074, %v1066
    %v1491 = vpack.c.b16 %v1075, %v1067
    %v1492 = vpack.c.b16 %v1084, %v1076
    %v1493 = vpack.c.b16 %v1085, %v1077
    %v1494 = vpack.c.b16 %v1086, %v1078
    %v1495 = vpack.c.b16 %v1087, %v1079
    %v1496 = vpack.c.b16 %v1088, %v1080
    %v1497 = vpack.c.b16 %v1089, %v1081
    %v1498 = vpack.c.b16 %v1090, %v1082
    %v1499 = vpack.c.b16 %v1091, %v1083
    %v1500 = vpack.c.b16 %v1100, %v1092
    %v1501 = vpack.c.b16 %v1101, %v1093
    %v1502 = vpack.c.b16 %v1102, %v1094
    %v1503 = vpack.c.b16 %v1103, %v1095
    %v1504 = vpack.c.b16 %v1104, %v1096
    %v1505 = vpack.c.b16 %v1105, %v1097
    %v1506 = vpack.c.b16 %v1106, %v1098
    %v1507 = vpack.c.b16 %v1107, %v1099
    %v1508 = vpack.c.b16 %v1116, %v1108
    %v1509 = vpack.c.b16 %v1117, %v1109
    %v1510 = vpack.c.b16 %v1118, %v1110
    %v1511 = vpack.c.b16 %v1119, %v1111
    %v1512 = vpack.c.b16 %v1120, %v1112
    %v1513 = vpack.c.b16 %v1121, %v1113
    %v1514 = vpack.c.b16 %v1122, %v1114
    %v1515 = vpack.c.b16 %v1123, %v1115
    %v1516 = vpack.c.b16 %v1132, %v1124
    %v1517 = vpack.c.b16 %v1133, %v1125
    %v1518 = vpack.c.b16 %v1134, %v1126
    %v1519 = vpack.c.b16 %v1135, %v1127
    %v1520 = vpack.c.b16 %v1136, %v1128
    %v1521 = vpack.c.b16 %v1137, %v1129
    %v1522 = vpack.c.b16 %v1138, %v1130
    %v1523 = vpack.c.b16 %v1139, %v1131
    %v1524 = vpack.c.b16 %v1148, %v1140
    %v1525 = vpack.c.b16 %v1149, %v1141
    %v1526 = vpack.c.b16 %v1150, %v1142
    %v1527 = vpack.c.b16 %v1151, %v1143
    %v1528 = vpack.c.b16 %v1152, %v1144
    %v1529 = vpack.c.b16 %v1153, %v1145
    %v1530 = vpack.c.b16 %v1154, %v1146
    %v1531 = vpack.c.b16 %v1155, %v1147
    %v1532 = vpack.c.b16 %v1164, %v1156
    %v1533 = vpack.c.b16 %v1165, %v1157
    %v1534 = vpack.c.b16 %v1166, %v1158
    %v1535 = vpack.c.b16 %v1167, %v1159
    %v1536 = vpack.c.b16 %v1168, %v1160
    %v1537 = vpack.c.b16 %v1169, %v1161
    %v1538 = vpack.c.b16 %v1170, %v1162
    %v1539 = vpack.c.b16 %v1171, %v1163
    %v1540 = vpack.c.b16 %v1180, %v1172
    %v1541 = vpack.c.b16 %v1181, %v1173
    %v1542 = vpack.c.b16 %v1182, %v1174
    %v1543 = vpack.c.b16 %v1183, %v1175
    %v1544 = vpack.c.b16 %v1184, %v1176
    %v1545 = vpack.c.b16 %v1185, %v1177
    %v1546 = vpack.c.b16 %v1186, %v1178
    %v1547 = vpack.c.b16 %v1187, %v1179
    %v1548 = vpack.c.b16 %v1196, %v1188
    %v1549 = vpack.c.b16 %v1197, %v1189
    %v1550 = vpack.c.b16 %v1198, %v1190
    %v1551 = vpack.c.b16 %v1199, %v1191
    %v1552 = vpack.c.b16 %v1200, %v1192
    %v1553 = vpack.c.b16 %v1201, %v1193
    %v1554 = vpack.c.b16 %v1202, %v1194
    %v1555 = vpack.c.b16 %v1203, %v1195
    %v1556 = vpack.c.b16 %v1212, %v1204
    %v1557 = vpack.c.b16 %v1213, %v1205
    %v1558 = vpack.c.b16 %v1214, %v1206
    %v1559 = vpack.c.b16 %v1215, %v1207
    %v1560 = vpack.c.b16 %v1216, %v1208
    %v1561 = vpack.c.b16 %v1217, %v1209
    %v1562 = vpack.c.b16 %v1218, %v1210
    %v1563 = vpack.c.b16 %v1219, %v1211
    %v1564 = vpack.c.b16 %v1228, %v1220
    %v1565 = vpack.c.b16 %v1229, %v1221
    %v1566 = vpack.c.b16 %v1230, %v1222
    %v1567 = vpack.c.b16 %v1231, %v1223
    %v1568 = vpack.c.b16 %v1232, %v1224
    %v1569 = vpack.c.b16 %v1233, %v1225
    %v1570 = vpack.c.b16 %v1234, %v1226
    %v1571 = vpack.c.b16 %v1235, %v1227
    %v1572 = vpack.c.b16 %v1244, %v1236
    %v1573 = vpack.c.b16 %v1245, %v1237
    %v1574 = vpack.c.b16 %v1246, %v1238
    %v1575 = vpack.c.b16 %v1247, %v1239
    %v1576 = vpack.c.b16 %v1248, %v1240
    %v1577 = vpack.c.b16 %v1249, %v1241
    %v1578 = vpack.c.b16 %v1250, %v1242
    %v1579 = vpack.c.b16 %v1251, %v1243
    %v1580 = vpack.c.b16 %v1260, %v1252
    %v1581 = vpack.c.b16 %v1261, %v1253
    %v1582 = vpack.c.b16 %v1262, %v1254
    %v1583 = vpack.c.b16 %v1263, %v1255
    %v1584 = vpack.c.b16 %v1264, %v1256
    %v1585 = vpack.c.b16 %v1265, %v1257
    %v1586 = vpack.c.b16 %v1266, %v1258
    %v1587 = vpack.c.b16 %v1267, %v1259
    %v1588 = vpack.c.b16 %v1276, %v1268
    %v1589 = vpack.c.b16 %v1277, %v1269
    %v1590 = vpack.c.b16 %v1278, %v1270
    %v1591 = vpack.c.b16 %v1279, %v1271
    %v1592 = vpack.c.b16 %v1280, %v1272
    %v1593 = vpack.c.b16 %v1281, %v1273
    %v1594 = vpack.c.b16 %v1282, %v1274
    %v1595 = vpack.c.b16 %v1283, %v1275
    %v1596 = vpack.c.b16 %v1292, %v1284
    %v1597 = vpack.c.b16 %v1293, %v1285
    %v1598 = vpack.c.b16 %v1294, %v1286
    %v1599 = vpack.c.b16 %v1295, %v1287
    %v1600 = vpack.c.b16 %v1296, %v1288
    %v1601 = vpack.c.b16 %v1297, %v1289
    %v1602 = vpack.c.b16 %v1298, %v1290
    %v1603 = vpack.c.b16 %v1299, %v1291
    %v1604 = vpack.c.b16 %v1308, %v1300
    %v1605 = vpack.c.b16 %v1309, %v1301
    %v1606 = vpack.c.b16 %v1310, %v1302
    %v1607 = vpack.c.b16 %v1311, %v1303
    %v1608 = vpack.c.b16 %v1312, %v1304
    %v1609 = vpack.c.b16 %v1313, %v1305
    %v1610 = vpack.c.b16 %v1314, %v1306
    %v1611 = vpack.c.b16 %v1315, %v1307
    %v1612 = vpack.c.b16 %v1324, %v1316
    %v1613 = vpack.c.b16 %v1325, %v1317
    %v1614 = vpack.c.b16 %v1326, %v1318
    %v1615 = vpack.c.b16 %v1327, %v1319
    %v1616 = vpack.c.b16 %v1328, %v1320
    %v1617 = vpack.c.b16 %v1329, %v1321
    %v1618 = vpack.c.b16 %v1330, %v1322
    %v1619 = vpack.c.b16 %v1331, %v1323
    %v1620 = vpack.c.b16 %v1340, %v1332
    %v1621 = vpack.c.b16 %v1341, %v1333
    %v1622 = vpack.c.b16 %v1342, %v1334
    %v1623 = vpack.c.b16 %v1343, %v1335
    %v1624 = vpack.c.b16 %v1344, %v1336
    %v1625 = vpack.c.b16 %v1345, %v1337
    %v1626 = vpack.c.b16 %v1346, %v1338
    %v1627 = vpack.c.b16 %v1347, %v1339
    %v1628 = vpack.c.b16 %v1356, %v1348
    %v1629 = vpack.c.b16 %v1357, %v1349
    %v1630 = vpack.c.b16 %v1358, %v1350
    %v1631 = vpack.c.b16 %v1359, %v1351
    %v1632 = vpack.c.b16 %v1360, %v1352
    %v1633 = vpack.c.b16 %v1361, %v1353
    %v1634 = vpack.c.b16 %v1362, %v1354
    %v1635 = vpack.c.b16 %v1363, %v1355
    %v1636 = vpack.c.b16 %v1372, %v1364
    %v1637 = vpack.c.b16 %v1373, %v1365
    %v1638 = vpack.c.b16 %v1374, %v1366
    %v1639 = vpack.c.b16 %v1375, %v1367
    %v1640 = vpack.c.b16 %v1376, %v1368
    %v1641 = vpack.c.b16 %v1377, %v1369
    %v1642 = vpack.c.b16 %v1378, %v1370
    %v1643 = vpack.c.b16 %v1379, %v1371
    %v1644 = vpack.c.b16 %v1388, %v1380
    %v1645 = vpack.c.b16 %v1389, %v1381
    %v1646 = vpack.c.b16 %v1390, %v1382
    %v1647 = vpack.c.b16 %v1391, %v1383
    %v1648 = vpack.c.b16 %v1392, %v1384
    %v1649 = vpack.c.b16 %v1393, %v1385
    %v1650 = vpack.c.b16 %v1394, %v1386
    %v1651 = vpack.c.b16 %v1395, %v1387
    %1908 = vmatprep.subr.bf16.mxu0 %v1397
    %1909 = vmatpush1.bf16.msra.mxu0 %v1396
    %1910 = vmatprep.subr.bf16.mxu0 %v1405
    %1911 = vmatpush1.bf16.msra.mxu0 %v1404
    %1912 = vmatprep.subr.bf16.mxu0 %v1413
    %1913 = vmatpush1.bf16.msra.mxu0 %v1412
    %1914 = vmatprep.subr.bf16.mxu0 %v1421
    %1915 = vmatpush1.bf16.msra.mxu0 %v1420
    %1916 = vmatprep.subr.bf16.mxu0 %v1429
    %1917 = vmatpush1.bf16.msra.mxu0 %v1428
    %1918 = vmatprep.subr.bf16.mxu0 %v1437
    %1919 = vmatpush1.bf16.msra.mxu0 %v1436
    %1920 = vmatprep.subr.bf16.mxu0 %v1445
    %1921 = vmatpush1.bf16.msra.mxu0 %v1444
    %1922 = vmatprep.subr.bf16.mxu0 %v1453
    %1923 = vmatpush1.bf16.msra.mxu0 %v1452
    %1924 = vmatprep.subr.bf16.mxu0 %v1461
    %1925 = vmatpush1.bf16.msra.mxu0 %v1460
    %1926 = vmatprep.subr.bf16.mxu0 %v1469
    %1927 = vmatpush1.bf16.msra.mxu0 %v1468
    %1928 = vmatprep.subr.bf16.mxu0 %v1477
    %1929 = vmatpush1.bf16.msra.mxu0 %v1476
    %1930 = vmatprep.subr.bf16.mxu0 %v1485
    %1931 = vmatpush1.bf16.msra.mxu0 %v1484
    %1932 = vmatprep.subr.bf16.mxu0 %v1493
    %1933 = vmatpush1.bf16.msra.mxu0 %v1492
    %1934 = vmatprep.subr.bf16.mxu0 %v1501
    %1935 = vmatpush1.bf16.msra.mxu0 %v1500
    %1936 = vmatprep.subr.bf16.mxu0 %v1509
    %1937 = vmatpush1.bf16.msra.mxu0 %v1508
    %1938 = vmatprep.subr.bf16.mxu0 %v1517
    %1939 = vmatpush1.bf16.msra.mxu0 %v1516
    %1940 = vmatprep.mubr.bf16.mxu0 %v327
    %1941 = vmatmul.mubr.bf16.gmra.mrb[0].mxu0 %v326
    %v1942 = vpop.f32.mrb[0].mxu0
    %v1943 = vadd.f32 %v591, %v1942
    %v1944 = vpop.f32.mrb[0].mxu0
    %v1945 = vadd.f32 %v595, %v1944
    %v1946 = vpop.f32.mrb[0].mxu0
    %v1947 = vpop.f32.mrb[0].mxu0
    %1948 = vdwg.mxu0
    %1949 = vmatprep.subr.bf16.mxu0 %v1525
    %1950 = vmatpush1.bf16.msra.mxu0 %v1524
    %1951 = vmatprep.subr.bf16.mxu0 %v1533
    %1952 = vmatpush1.bf16.msra.mxu0 %v1532
    %1953 = vmatprep.subr.bf16.mxu0 %v1541
    %1954 = vmatpush1.bf16.msra.mxu0 %v1540
    %1955 = vmatprep.subr.bf16.mxu0 %v1549
    %1956 = vmatpush1.bf16.msra.mxu0 %v1548
    %1957 = vmatprep.subr.bf16.mxu0 %v1557
    %1958 = vmatpush1.bf16.msra.mxu0 %v1556
    %1959 = vmatprep.subr.bf16.mxu0 %v1565
    %1960 = vmatpush1.bf16.msra.mxu0 %v1564
    %1961 = vmatprep.subr.bf16.mxu0 %v1573
    %1962 = vmatpush1.bf16.msra.mxu0 %v1572
    %1963 = vmatprep.subr.bf16.mxu0 %v1581
    %1964 = vmatpush1.bf16.msra.mxu0 %v1580
    %1965 = vmatprep.subr.bf16.mxu0 %v1589
    %1966 = vmatpush1.bf16.msra.mxu0 %v1588
    %1967 = vmatprep.subr.bf16.mxu0 %v1597
    %1968 = vmatpush1.bf16.msra.mxu0 %v1596
    %1969 = vmatprep.subr.bf16.mxu0 %v1605
    %1970 = vmatpush1.bf16.msra.mxu0 %v1604
    %1971 = vmatprep.subr.bf16.mxu0 %v1613
    %1972 = vmatpush1.bf16.msra.mxu0 %v1612
    %1973 = vmatprep.subr.bf16.mxu0 %v1621
    %1974 = vmatpush1.bf16.msra.mxu0 %v1620
    %1975 = vmatprep.subr.bf16.mxu0 %v1629
    %1976 = vmatpush1.bf16.msra.mxu0 %v1628
    %1977 = vmatprep.subr.bf16.mxu0 %v1637
    %1978 = vmatpush1.bf16.msra.mxu0 %v1636
    %1979 = vmatprep.subr.bf16.mxu0 %v1645
    %1980 = vmatpush1.bf16.msra.mxu0 %v1644
    %1981 = vmatprep.mubr.bf16.mxu0 %v329
    %1982 = vmatmul.mubr.bf16.gmra.mrb[0].mxu0 %v328
    %v1983 = vpop.f32.mrb[0].mxu0
    %v1984 = vadd.f32 %v1943, %v1983
    %v1985 = vpop.f32.mrb[0].mxu0
    %v1986 = vadd.f32 %v1945, %v1985
    %v1987 = vpop.f32.mrb[0].mxu0
    %v1988 = vpop.f32.mrb[0].mxu0
    %1989 = vdwg.mxu0
    %1990 = vmatprep.subr.bf16.mxu0 %v1399
    %1991 = vmatpush1.bf16.msra.mxu0 %v1398
    %1992 = vmatprep.subr.bf16.mxu0 %v1407
    %1993 = vmatpush1.bf16.msra.mxu0 %v1406
    %1994 = vmatprep.subr.bf16.mxu0 %v1415
    %1995 = vmatpush1.bf16.msra.mxu0 %v1414
    %1996 = vmatprep.subr.bf16.mxu0 %v1423
    %1997 = vmatpush1.bf16.msra.mxu0 %v1422
    %1998 = vmatprep.subr.bf16.mxu0 %v1431
    %1999 = vmatpush1.bf16.msra.mxu0 %v1430
    %2000 = vmatprep.subr.bf16.mxu0 %v1439
    %2001 = vmatpush1.bf16.msra.mxu0 %v1438
    %2002 = vmatprep.subr.bf16.mxu0 %v1447
    %2003 = vmatpush1.bf16.msra.mxu0 %v1446
    %2004 = vmatprep.subr.bf16.mxu0 %v1455
    %2005 = vmatpush1.bf16.msra.mxu0 %v1454
    %2006 = vmatprep.subr.bf16.mxu0 %v1463
    %2007 = vmatpush1.bf16.msra.mxu0 %v1462
    %2008 = vmatprep.subr.bf16.mxu0 %v1471
    %2009 = vmatpush1.bf16.msra.mxu0 %v1470
    %2010 = vmatprep.subr.bf16.mxu0 %v1479
    %2011 = vmatpush1.bf16.msra.mxu0 %v1478
    %2012 = vmatprep.subr.bf16.mxu0 %v1487
    %2013 = vmatpush1.bf16.msra.mxu0 %v1486
    %2014 = vmatprep.subr.bf16.mxu0 %v1495
    %2015 = vmatpush1.bf16.msra.mxu0 %v1494
    %2016 = vmatprep.subr.bf16.mxu0 %v1503
    %2017 = vmatpush1.bf16.msra.mxu0 %v1502
    %2018 = vmatprep.subr.bf16.mxu0 %v1511
    %2019 = vmatpush1.bf16.msra.mxu0 %v1510
    %2020 = vmatprep.subr.bf16.mxu0 %v1519
    %2021 = vmatpush1.bf16.msra.mxu0 %v1518
    %2022 = vmatprep.mubr.bf16.mxu0 %v327
    %2023 = vmatmul.mubr.bf16.gmra.mrb[0].mxu0 %v326
    %v2024 = vpop.f32.mrb[0].mxu0
    %v2025 = vadd.f32 %v599, %v2024
    %v2026 = vpop.f32.mrb[0].mxu0
    %v2027 = vadd.f32 %v603, %v2026
    %v2028 = vpop.f32.mrb[0].mxu0
    %v2029 = vpop.f32.mrb[0].mxu0
    %2030 = vdwg.mxu0
    %2031 = vmatprep.subr.bf16.mxu0 %v1527
    %2032 = vmatpush1.bf16.msra.mxu0 %v1526
    %2033 = vmatprep.subr.bf16.mxu0 %v1535
    %2034 = vmatpush1.bf16.msra.mxu0 %v1534
    %2035 = vmatprep.subr.bf16.mxu0 %v1543
    %2036 = vmatpush1.bf16.msra.mxu0 %v1542
    %2037 = vmatprep.subr.bf16.mxu0 %v1551
    %2038 = vmatpush1.bf16.msra.mxu0 %v1550
    %2039 = vmatprep.subr.bf16.mxu0 %v1559
    %2040 = vmatpush1.bf16.msra.mxu0 %v1558
    %2041 = vmatprep.subr.bf16.mxu0 %v1567
    %2042 = vmatpush1.bf16.msra.mxu0 %v1566
    %2043 = vmatprep.subr.bf16.mxu0 %v1575
    %2044 = vmatpush1.bf16.msra.mxu0 %v1574
    %2045 = vmatprep.subr.bf16.mxu0 %v1583
    %2046 = vmatpush1.bf16.msra.mxu0 %v1582
    %2047 = vmatprep.subr.bf16.mxu0 %v1591
    %2048 = vmatpush1.bf16.msra.mxu0 %v1590
    %2049 = vmatprep.subr.bf16.mxu0 %v1599
    %2050 = vmatpush1.bf16.msra.mxu0 %v1598
    %2051 = vmatprep.subr.bf16.mxu0 %v1607
    %2052 = vmatpush1.bf16.msra.mxu0 %v1606
    %2053 = vmatprep.subr.bf16.mxu0 %v1615
    %2054 = vmatpush1.bf16.msra.mxu0 %v1614
    %2055 = vmatprep.subr.bf16.mxu0 %v1623
    %2056 = vmatpush1.bf16.msra.mxu0 %v1622
    %2057 = vmatprep.subr.bf16.mxu0 %v1631
    %2058 = vmatpush1.bf16.msra.mxu0 %v1630
    %2059 = vmatprep.subr.bf16.mxu0 %v1639
    %2060 = vmatpush1.bf16.msra.mxu0 %v1638
    %2061 = vmatprep.subr.bf16.mxu0 %v1647
    %2062 = vmatpush1.bf16.msra.mxu0 %v1646
    %2063 = vmatprep.mubr.bf16.mxu0 %v329
    %2064 = vmatmul.mubr.bf16.gmra.mrb[0].mxu0 %v328
    %v2065 = vpop.f32.mrb[0].mxu0
    %v2066 = vadd.f32 %v2025, %v2065
    %v2067 = vpop.f32.mrb[0].mxu0
    %v2068 = vadd.f32 %v2027, %v2067
    %v2069 = vpop.f32.mrb[0].mxu0
    %v2070 = vpop.f32.mrb[0].mxu0
    %2071 = vdwg.mxu0
    %2072 = vmatprep.subr.bf16.mxu0 %v1401
    %2073 = vmatpush1.bf16.msra.mxu0 %v1400
    %2074 = vmatprep.subr.bf16.mxu0 %v1409
    %2075 = vmatpush1.bf16.msra.mxu0 %v1408
    %2076 = vmatprep.subr.bf16.mxu0 %v1417
    %2077 = vmatpush1.bf16.msra.mxu0 %v1416
    %2078 = vmatprep.subr.bf16.mxu0 %v1425
    %2079 = vmatpush1.bf16.msra.mxu0 %v1424
    %2080 = vmatprep.subr.bf16.mxu0 %v1433
    %2081 = vmatpush1.bf16.msra.mxu0 %v1432
    %2082 = vmatprep.subr.bf16.mxu0 %v1441
    %2083 = vmatpush1.bf16.msra.mxu0 %v1440
    %2084 = vmatprep.subr.bf16.mxu0 %v1449
    %2085 = vmatpush1.bf16.msra.mxu0 %v1448
    %2086 = vmatprep.subr.bf16.mxu0 %v1457
    %2087 = vmatpush1.bf16.msra.mxu0 %v1456
    %2088 = vmatprep.subr.bf16.mxu0 %v1465
    %2089 = vmatpush1.bf16.msra.mxu0 %v1464
    %2090 = vmatprep.subr.bf16.mxu0 %v1473
    %2091 = vmatpush1.bf16.msra.mxu0 %v1472
    %2092 = vmatprep.subr.bf16.mxu0 %v1481
    %2093 = vmatpush1.bf16.msra.mxu0 %v1480
    %2094 = vmatprep.subr.bf16.mxu0 %v1489
    %2095 = vmatpush1.bf16.msra.mxu0 %v1488
    %2096 = vmatprep.subr.bf16.mxu0 %v1497
    %2097 = vmatpush1.bf16.msra.mxu0 %v1496
    %2098 = vmatprep.subr.bf16.mxu0 %v1505
    %2099 = vmatpush1.bf16.msra.mxu0 %v1504
    %2100 = vmatprep.subr.bf16.mxu0 %v1513
    %2101 = vmatpush1.bf16.msra.mxu0 %v1512
    %2102 = vmatprep.subr.bf16.mxu0 %v1521
    %2103 = vmatpush1.bf16.msra.mxu0 %v1520
    %2104 = vmatprep.mubr.bf16.mxu0 %v327
    %2105 = vmatmul.mubr.bf16.gmra.mrb[0].mxu0 %v326
    %v2106 = vpop.f32.mrb[0].mxu0
    %v2107 = vadd.f32 %v607, %v2106
    %v2108 = vpop.f32.mrb[0].mxu0
    %v2109 = vadd.f32 %v611, %v2108
    %v2110 = vpop.f32.mrb[0].mxu0
    %v2111 = vpop.f32.mrb[0].mxu0
    %2112 = vdwg.mxu0
    %2113 = vmatprep.subr.bf16.mxu0 %v1529
    %2114 = vmatpush1.bf16.msra.mxu0 %v1528
    %2115 = vmatprep.subr.bf16.mxu0 %v1537
    %2116 = vmatpush1.bf16.msra.mxu0 %v1536
    %2117 = vmatprep.subr.bf16.mxu0 %v1545
    %2118 = vmatpush1.bf16.msra.mxu0 %v1544
    %2119 = vmatprep.subr.bf16.mxu0 %v1553
    %2120 = vmatpush1.bf16.msra.mxu0 %v1552
    %2121 = vmatprep.subr.bf16.mxu0 %v1561
    %2122 = vmatpush1.bf16.msra.mxu0 %v1560
    %2123 = vmatprep.subr.bf16.mxu0 %v1569
    %2124 = vmatpush1.bf16.msra.mxu0 %v1568
    %2125 = vmatprep.subr.bf16.mxu0 %v1577
    %2126 = vmatpush1.bf16.msra.mxu0 %v1576
    %2127 = vmatprep.subr.bf16.mxu0 %v1585
    %2128 = vmatpush1.bf16.msra.mxu0 %v1584
    %2129 = vmatprep.subr.bf16.mxu0 %v1593
    %2130 = vmatpush1.bf16.msra.mxu0 %v1592
    %2131 = vmatprep.subr.bf16.mxu0 %v1601
    %2132 = vmatpush1.bf16.msra.mxu0 %v1600
    %2133 = vmatprep.subr.bf16.mxu0 %v1609
    %2134 = vmatpush1.bf16.msra.mxu0 %v1608
    %2135 = vmatprep.subr.bf16.mxu0 %v1617
    %2136 = vmatpush1.bf16.msra.mxu0 %v1616
    %2137 = vmatprep.subr.bf16.mxu0 %v1625
    %2138 = vmatpush1.bf16.msra.mxu0 %v1624
    %2139 = vmatprep.subr.bf16.mxu0 %v1633
    %2140 = vmatpush1.bf16.msra.mxu0 %v1632
    %2141 = vmatprep.subr.bf16.mxu0 %v1641
    %2142 = vmatpush1.bf16.msra.mxu0 %v1640
    %2143 = vmatprep.subr.bf16.mxu0 %v1649
    %2144 = vmatpush1.bf16.msra.mxu0 %v1648
    %2145 = vmatprep.mubr.bf16.mxu0 %v329
    %2146 = vmatmul.mubr.bf16.gmra.mrb[0].mxu0 %v328
    %v2147 = vpop.f32.mrb[0].mxu0
    %v2148 = vadd.f32 %v2107, %v2147
    %v2149 = vpop.f32.mrb[0].mxu0
    %v2150 = vadd.f32 %v2109, %v2149
    %v2151 = vpop.f32.mrb[0].mxu0
    %v2152 = vpop.f32.mrb[0].mxu0
    %2153 = vdwg.mxu0
    %2154 = vmatprep.subr.bf16.mxu0 %v1403
    %2155 = vmatpush1.bf16.msra.mxu0 %v1402
    %2156 = vmatprep.subr.bf16.mxu0 %v1411
    %2157 = vmatpush1.bf16.msra.mxu0 %v1410
    %2158 = vmatprep.subr.bf16.mxu0 %v1419
    %2159 = vmatpush1.bf16.msra.mxu0 %v1418
    %2160 = vmatprep.subr.bf16.mxu0 %v1427
    %2161 = vmatpush1.bf16.msra.mxu0 %v1426
    %2162 = vmatprep.subr.bf16.mxu0 %v1435
    %2163 = vmatpush1.bf16.msra.mxu0 %v1434
    %2164 = vmatprep.subr.bf16.mxu0 %v1443
    %2165 = vmatpush1.bf16.msra.mxu0 %v1442
    %2166 = vmatprep.subr.bf16.mxu0 %v1451
    %2167 = vmatpush1.bf16.msra.mxu0 %v1450
    %2168 = vmatprep.subr.bf16.mxu0 %v1459
    %2169 = vmatpush1.bf16.msra.mxu0 %v1458
    %2170 = vmatprep.subr.bf16.mxu0 %v1467
    %2171 = vmatpush1.bf16.msra.mxu0 %v1466
    %2172 = vmatprep.subr.bf16.mxu0 %v1475
    %2173 = vmatpush1.bf16.msra.mxu0 %v1474
    %2174 = vmatprep.subr.bf16.mxu0 %v1483
    %2175 = vmatpush1.bf16.msra.mxu0 %v1482
    %2176 = vmatprep.subr.bf16.mxu0 %v1491
    %2177 = vmatpush1.bf16.msra.mxu0 %v1490
    %2178 = vmatprep.subr.bf16.mxu0 %v1499
    %2179 = vmatpush1.bf16.msra.mxu0 %v1498
    %2180 = vmatprep.subr.bf16.mxu0 %v1507
    %2181 = vmatpush1.bf16.msra.mxu0 %v1506
    %2182 = vmatprep.subr.bf16.mxu0 %v1515
    %2183 = vmatpush1.bf16.msra.mxu0 %v1514
    %2184 = vmatprep.subr.bf16.mxu0 %v1523
    %2185 = vmatpush1.bf16.msra.mxu0 %v1522
    %2186 = vmatprep.mubr.bf16.mxu0 %v327
    %2187 = vmatmul.mubr.bf16.gmra.mrb[0].mxu0 %v326
    %v2188 = vpop.f32.mrb[0].mxu0
    %v2189 = vadd.f32 %v615, %v2188
    %v2190 = vpop.f32.mrb[0].mxu0
    %v2191 = vadd.f32 %v619, %v2190
    %v2192 = vpop.f32.mrb[0].mxu0
    %v2193 = vpop.f32.mrb[0].mxu0
    %2194 = vdwg.mxu0
    %2195 = vmatprep.subr.bf16.mxu0 %v1531
    %2196 = vmatpush1.bf16.msra.mxu0 %v1530
    %2197 = vmatprep.subr.bf16.mxu0 %v1539
    %2198 = vmatpush1.bf16.msra.mxu0 %v1538
    %2199 = vmatprep.subr.bf16.mxu0 %v1547
    %2200 = vmatpush1.bf16.msra.mxu0 %v1546
    %2201 = vmatprep.subr.bf16.mxu0 %v1555
    %2202 = vmatpush1.bf16.msra.mxu0 %v1554
    %2203 = vmatprep.subr.bf16.mxu0 %v1563
    %2204 = vmatpush1.bf16.msra.mxu0 %v1562
    %2205 = vmatprep.subr.bf16.mxu0 %v1571
    %2206 = vmatpush1.bf16.msra.mxu0 %v1570
    %2207 = vmatprep.subr.bf16.mxu0 %v1579
    %2208 = vmatpush1.bf16.msra.mxu0 %v1578
    %2209 = vmatprep.subr.bf16.mxu0 %v1587
    %2210 = vmatpush1.bf16.msra.mxu0 %v1586
    %2211 = vmatprep.subr.bf16.mxu0 %v1595
    %2212 = vmatpush1.bf16.msra.mxu0 %v1594
    %2213 = vmatprep.subr.bf16.mxu0 %v1603
    %2214 = vmatpush1.bf16.msra.mxu0 %v1602
    %2215 = vmatprep.subr.bf16.mxu0 %v1611
    %2216 = vmatpush1.bf16.msra.mxu0 %v1610
    %2217 = vmatprep.subr.bf16.mxu0 %v1619
    %2218 = vmatpush1.bf16.msra.mxu0 %v1618
    %2219 = vmatprep.subr.bf16.mxu0 %v1627
    %2220 = vmatpush1.bf16.msra.mxu0 %v1626
    %2221 = vmatprep.subr.bf16.mxu0 %v1635
    %2222 = vmatpush1.bf16.msra.mxu0 %v1634
    %2223 = vmatprep.subr.bf16.mxu0 %v1643
    %2224 = vmatpush1.bf16.msra.mxu0 %v1642
    %2225 = vmatprep.subr.bf16.mxu0 %v1651
    %2226 = vmatpush1.bf16.msra.mxu0 %v1650
    %2227 = vmatprep.mubr.bf16.mxu0 %v329
    %2228 = vmatmul.mubr.bf16.gmra.mrb[0].mxu0 %v328
    %v2229 = vpop.f32.mrb[0].mxu0
    %v2230 = vadd.f32 %v2189, %v2229
    %v2231 = vpop.f32.mrb[0].mxu0
    %v2232 = vadd.f32 %v2191, %v2231
    %v2233 = vpop.f32.mrb[0].mxu0
    %v2234 = vpop.f32.mrb[0].mxu0
    %2235 = vdwg.mxu0
    %v2236 = vmax.f32 %v1984, 0.0
    %v2237 = vmax.f32 %v1986, 0.0
    %v2238 = vmax.f32 %v2066, 0.0
    %v2239 = vmax.f32 %v2068, 0.0
    %v2240 = vmax.f32 %v2148, 0.0
    %v2241 = vmax.f32 %v2150, 0.0
    %v2242 = vmax.f32 %v2230, 0.0
    %v2243 = vmax.f32 %v2232, 0.0
    %v2244 = vpack.c.bf16 %v2236, %v2236
    %v2245 = vpack.c.bf16 %v2237, %v2237
    %v2246 = vpack.c.bf16 %v2238, %v2238
    %v2247 = vpack.c.bf16 %v2239, %v2239
    %v2248 = vpack.c.bf16 %v2240, %v2240
    %v2249 = vpack.c.bf16 %v2241, %v2241
    %v2250 = vpack.c.bf16 %v2242, %v2242
    %v2251 = vpack.c.bf16 %v2243, %v2243
    %v2252 = vld [vmem:[#allocation11] sm:$0xff]
    %v2253 = vld [vmem:[#allocation11 + $0x8] sm:$0xff]
    %v2254 = vld [vmem:[#allocation11 + $0x10] sm:$0xff]
    %v2255 = vld [vmem:[#allocation11 + $0x18] sm:$0xff]
    %v2256 = vld [vmem:[#allocation11 + $0x20] sm:$0xff]
    %v2257 = vld [vmem:[#allocation11 + $0x28] sm:$0xff]
    %v2258 = vld [vmem:[#allocation11 + $0x30] sm:$0xff]
    %v2259 = vld [vmem:[#allocation11 + $0x38] sm:$0xff]
    %v2260 = vld [vmem:[#allocation11 + $0x40] sm:$0xff]
    %v2261 = vld [vmem:[#allocation11 + $0x48] sm:$0xff]
    %v2262 = vld [vmem:[#allocation11 + $0x50] sm:$0xff]
    %v2263 = vld [vmem:[#allocation11 + $0x58] sm:$0xff]
    %v2264 = vld [vmem:[#allocation11 + $0x60] sm:$0xff]
    %v2265 = vld [vmem:[#allocation11 + $0x68] sm:$0xff]
    %v2266 = vld [vmem:[#allocation11 + $0x70] sm:$0xff]
    %v2267 = vld [vmem:[#allocation11 + $0x78] sm:$0xff]
    %v2268 = vld [vmem:[#allocation11 + $0x80] sm:$0xff]
    %v2269 = vld [vmem:[#allocation11 + $0x88] sm:$0xff]
    %v2270 = vld [vmem:[#allocation11 + $0x90] sm:$0xff]
    %v2271 = vld [vmem:[#allocation11 + $0x98] sm:$0xff]
    %v2272 = vld [vmem:[#allocation11 + $0xa0] sm:$0xff]
    %v2273 = vld [vmem:[#allocation11 + $0xa8] sm:$0xff]
    %v2274 = vld [vmem:[#allocation11 + $0xb0] sm:$0xff]
    %v2275 = vld [vmem:[#allocation11 + $0xb8] sm:$0xff]
    %v2276 = vld [vmem:[#allocation11 + $0xc0] sm:$0xff]
    %v2277 = vld [vmem:[#allocation11 + $0xc8] sm:$0xff]
    %v2278 = vld [vmem:[#allocation11 + $0xd0] sm:$0xff]
    %v2279 = vld [vmem:[#allocation11 + $0xd8] sm:$0xff]
    %v2280 = vld [vmem:[#allocation11 + $0xe0] sm:$0xff]
    %v2281 = vld [vmem:[#allocation11 + $0xe8] sm:$0xff]
    %v2282 = vld [vmem:[#allocation11 + $0xf0] sm:$0xff]
    %v2283 = vld [vmem:[#allocation11 + $0xf8] sm:$0xff]
    %v2284 = vld [vmem:[#allocation11 + $0x100] sm:$0xff]
    %v2285 = vld [vmem:[#allocation11 + $0x108] sm:$0xff]
    %v2286 = vld [vmem:[#allocation11 + $0x110] sm:$0xff]
    %v2287 = vld [vmem:[#allocation11 + $0x118] sm:$0xff]
    %v2288 = vld [vmem:[#allocation11 + $0x120] sm:$0xff]
    %v2289 = vld [vmem:[#allocation11 + $0x128] sm:$0xff]
    %v2290 = vld [vmem:[#allocation11 + $0x130] sm:$0xff]
    %v2291 = vld [vmem:[#allocation11 + $0x138] sm:$0xff]
    %v2292 = vld [vmem:[#allocation11 + $0x140] sm:$0xff]
    %v2293 = vld [vmem:[#allocation11 + $0x148] sm:$0xff]
    %v2294 = vld [vmem:[#allocation11 + $0x150] sm:$0xff]
    %v2295 = vld [vmem:[#allocation11 + $0x158] sm:$0xff]
    %v2296 = vld [vmem:[#allocation11 + $0x160] sm:$0xff]
    %v2297 = vld [vmem:[#allocation11 + $0x168] sm:$0xff]
    %v2298 = vld [vmem:[#allocation11 + $0x170] sm:$0xff]
    %v2299 = vld [vmem:[#allocation11 + $0x178] sm:$0xff]
    %v2300 = vld [vmem:[#allocation11 + $0x180] sm:$0xff]
    %v2301 = vld [vmem:[#allocation11 + $0x188] sm:$0xff]
    %v2302 = vld [vmem:[#allocation11 + $0x190] sm:$0xff]
    %v2303 = vld [vmem:[#allocation11 + $0x198] sm:$0xff]
    %v2304 = vld [vmem:[#allocation11 + $0x1a0] sm:$0xff]
    %v2305 = vld [vmem:[#allocation11 + $0x1a8] sm:$0xff]
    %v2306 = vld [vmem:[#allocation11 + $0x1b0] sm:$0xff]
    %v2307 = vld [vmem:[#allocation11 + $0x1b8] sm:$0xff]
    %v2308 = vld [vmem:[#allocation11 + $0x1c0] sm:$0xff]
    %v2309 = vld [vmem:[#allocation11 + $0x1c8] sm:$0xff]
    %v2310 = vld [vmem:[#allocation11 + $0x1d0] sm:$0xff]
    %v2311 = vld [vmem:[#allocation11 + $0x1d8] sm:$0xff]
    %v2312 = vld [vmem:[#allocation11 + $0x1e0] sm:$0xff]
    %v2313 = vld [vmem:[#allocation11 + $0x1e8] sm:$0xff]
    %v2314 = vld [vmem:[#allocation11 + $0x1f0] sm:$0xff]
    %v2315 = vld [vmem:[#allocation11 + $0x1f8] sm:$0xff]
    %v2316 = vld [vmem:[#allocation11 + $0x200] sm:$0xff]
    %v2317 = vld [vmem:[#allocation11 + $0x208] sm:$0xff]
    %v2318 = vld [vmem:[#allocation11 + $0x210] sm:$0xff]
    %v2319 = vld [vmem:[#allocation11 + $0x218] sm:$0xff]
    %v2320 = vld [vmem:[#allocation11 + $0x220] sm:$0xff]
    %v2321 = vld [vmem:[#allocation11 + $0x228] sm:$0xff]
    %v2322 = vld [vmem:[#allocation11 + $0x230] sm:$0xff]
    %v2323 = vld [vmem:[#allocation11 + $0x238] sm:$0xff]
    %v2324 = vld [vmem:[#allocation11 + $0x240] sm:$0xff]
    %v2325 = vld [vmem:[#allocation11 + $0x248] sm:$0xff]
    %v2326 = vld [vmem:[#allocation11 + $0x250] sm:$0xff]
    %v2327 = vld [vmem:[#allocation11 + $0x258] sm:$0xff]
    %v2328 = vld [vmem:[#allocation11 + $0x260] sm:$0xff]
    %v2329 = vld [vmem:[#allocation11 + $0x268] sm:$0xff]
    %v2330 = vld [vmem:[#allocation11 + $0x270] sm:$0xff]
    %v2331 = vld [vmem:[#allocation11 + $0x278] sm:$0xff]
    %v2332 = vld [vmem:[#allocation11 + $0x280] sm:$0xff]
    %v2333 = vld [vmem:[#allocation11 + $0x288] sm:$0xff]
    %v2334 = vld [vmem:[#allocation11 + $0x290] sm:$0xff]
    %v2335 = vld [vmem:[#allocation11 + $0x298] sm:$0xff]
    %v2336 = vld [vmem:[#allocation11 + $0x2a0] sm:$0xff]
    %v2337 = vld [vmem:[#allocation11 + $0x2a8] sm:$0xff]
    %v2338 = vld [vmem:[#allocation11 + $0x2b0] sm:$0xff]
    %v2339 = vld [vmem:[#allocation11 + $0x2b8] sm:$0xff]
    %v2340 = vld [vmem:[#allocation11 + $0x2c0] sm:$0xff]
    %v2341 = vld [vmem:[#allocation11 + $0x2c8] sm:$0xff]
    %v2342 = vld [vmem:[#allocation11 + $0x2d0] sm:$0xff]
    %v2343 = vld [vmem:[#allocation11 + $0x2d8] sm:$0xff]
    %v2344 = vld [vmem:[#allocation11 + $0x2e0] sm:$0xff]
    %v2345 = vld [vmem:[#allocation11 + $0x2e8] sm:$0xff]
    %v2346 = vld [vmem:[#allocation11 + $0x2f0] sm:$0xff]
    %v2347 = vld [vmem:[#allocation11 + $0x2f8] sm:$0xff]
    %v2348 = vld [vmem:[#allocation11 + $0x300] sm:$0xff]
    %v2349 = vld [vmem:[#allocation11 + $0x308] sm:$0xff]
    %v2350 = vld [vmem:[#allocation11 + $0x310] sm:$0xff]
    %v2351 = vld [vmem:[#allocation11 + $0x318] sm:$0xff]
    %v2352 = vld [vmem:[#allocation11 + $0x320] sm:$0xff]
    %v2353 = vld [vmem:[#allocation11 + $0x328] sm:$0xff]
    %v2354 = vld [vmem:[#allocation11 + $0x330] sm:$0xff]
    %v2355 = vld [vmem:[#allocation11 + $0x338] sm:$0xff]
    %v2356 = vld [vmem:[#allocation11 + $0x340] sm:$0xff]
    %v2357 = vld [vmem:[#allocation11 + $0x348] sm:$0xff]
    %v2358 = vld [vmem:[#allocation11 + $0x350] sm:$0xff]
    %v2359 = vld [vmem:[#allocation11 + $0x358] sm:$0xff]
    %v2360 = vld [vmem:[#allocation11 + $0x360] sm:$0xff]
    %v2361 = vld [vmem:[#allocation11 + $0x368] sm:$0xff]
    %v2362 = vld [vmem:[#allocation11 + $0x370] sm:$0xff]
    %v2363 = vld [vmem:[#allocation11 + $0x378] sm:$0xff]
    %v2364 = vld [vmem:[#allocation11 + $0x380] sm:$0xff]
    %v2365 = vld [vmem:[#allocation11 + $0x388] sm:$0xff]
    %v2366 = vld [vmem:[#allocation11 + $0x390] sm:$0xff]
    %v2367 = vld [vmem:[#allocation11 + $0x398] sm:$0xff]
    %v2368 = vld [vmem:[#allocation11 + $0x3a0] sm:$0xff]
    %v2369 = vld [vmem:[#allocation11 + $0x3a8] sm:$0xff]
    %v2370 = vld [vmem:[#allocation11 + $0x3b0] sm:$0xff]
    %v2371 = vld [vmem:[#allocation11 + $0x3b8] sm:$0xff]
    %v2372 = vld [vmem:[#allocation11 + $0x3c0] sm:$0xff]
    %v2373 = vld [vmem:[#allocation11 + $0x3c8] sm:$0xff]
    %v2374 = vld [vmem:[#allocation11 + $0x3d0] sm:$0xff]
    %v2375 = vld [vmem:[#allocation11 + $0x3d8] sm:$0xff]
    %v2376 = vld [vmem:[#allocation11 + $0x3e0] sm:$0xff]
    %v2377 = vld [vmem:[#allocation11 + $0x3e8] sm:$0xff]
    %v2378 = vld [vmem:[#allocation11 + $0x3f0] sm:$0xff]
    %v2379 = vld [vmem:[#allocation11 + $0x3f8] sm:$0xff]
    %v2380 = vld [vmem:[#allocation11 + $0x400] sm:$0xff]
    %v2381 = vld [vmem:[#allocation11 + $0x408] sm:$0xff]
    %v2382 = vld [vmem:[#allocation11 + $0x410] sm:$0xff]
    %v2383 = vld [vmem:[#allocation11 + $0x418] sm:$0xff]
    %v2384 = vld [vmem:[#allocation11 + $0x420] sm:$0xff]
    %v2385 = vld [vmem:[#allocation11 + $0x428] sm:$0xff]
    %v2386 = vld [vmem:[#allocation11 + $0x430] sm:$0xff]
    %v2387 = vld [vmem:[#allocation11 + $0x438] sm:$0xff]
    %v2388 = vld [vmem:[#allocation11 + $0x440] sm:$0xff]
    %v2389 = vld [vmem:[#allocation11 + $0x448] sm:$0xff]
    %v2390 = vld [vmem:[#allocation11 + $0x450] sm:$0xff]
    %v2391 = vld [vmem:[#allocation11 + $0x458] sm:$0xff]
    %v2392 = vld [vmem:[#allocation11 + $0x460] sm:$0xff]
    %v2393 = vld [vmem:[#allocation11 + $0x468] sm:$0xff]
    %v2394 = vld [vmem:[#allocation11 + $0x470] sm:$0xff]
    %v2395 = vld [vmem:[#allocation11 + $0x478] sm:$0xff]
    %v2396 = vld [vmem:[#allocation11 + $0x480] sm:$0xff]
    %v2397 = vld [vmem:[#allocation11 + $0x488] sm:$0xff]
    %v2398 = vld [vmem:[#allocation11 + $0x490] sm:$0xff]
    %v2399 = vld [vmem:[#allocation11 + $0x498] sm:$0xff]
    %v2400 = vld [vmem:[#allocation11 + $0x4a0] sm:$0xff]
    %v2401 = vld [vmem:[#allocation11 + $0x4a8] sm:$0xff]
    %v2402 = vld [vmem:[#allocation11 + $0x4b0] sm:$0xff]
    %v2403 = vld [vmem:[#allocation11 + $0x4b8] sm:$0xff]
    %v2404 = vld [vmem:[#allocation11 + $0x4c0] sm:$0xff]
    %v2405 = vld [vmem:[#allocation11 + $0x4c8] sm:$0xff]
    %v2406 = vld [vmem:[#allocation11 + $0x4d0] sm:$0xff]
    %v2407 = vld [vmem:[#allocation11 + $0x4d8] sm:$0xff]
    %v2408 = vld [vmem:[#allocation11 + $0x4e0] sm:$0xff]
    %v2409 = vld [vmem:[#allocation11 + $0x4e8] sm:$0xff]
    %v2410 = vld [vmem:[#allocation11 + $0x4f0] sm:$0xff]
    %v2411 = vld [vmem:[#allocation11 + $0x4f8] sm:$0xff]
    %v2412 = vld [vmem:[#allocation11 + $0x500] sm:$0xff]
    %v2413 = vld [vmem:[#allocation11 + $0x508] sm:$0xff]
    %v2414 = vld [vmem:[#allocation11 + $0x510] sm:$0xff]
    %v2415 = vld [vmem:[#allocation11 + $0x518] sm:$0xff]
    %v2416 = vld [vmem:[#allocation11 + $0x520] sm:$0xff]
    %v2417 = vld [vmem:[#allocation11 + $0x528] sm:$0xff]
    %v2418 = vld [vmem:[#allocation11 + $0x530] sm:$0xff]
    %v2419 = vld [vmem:[#allocation11 + $0x538] sm:$0xff]
    %v2420 = vld [vmem:[#allocation11 + $0x540] sm:$0xff]
    %v2421 = vld [vmem:[#allocation11 + $0x548] sm:$0xff]
    %v2422 = vld [vmem:[#allocation11 + $0x550] sm:$0xff]
    %v2423 = vld [vmem:[#allocation11 + $0x558] sm:$0xff]
    %v2424 = vld [vmem:[#allocation11 + $0x560] sm:$0xff]
    %v2425 = vld [vmem:[#allocation11 + $0x568] sm:$0xff]
    %v2426 = vld [vmem:[#allocation11 + $0x570] sm:$0xff]
    %v2427 = vld [vmem:[#allocation11 + $0x578] sm:$0xff]
    %v2428 = vld [vmem:[#allocation11 + $0x580] sm:$0xff]
    %v2429 = vld [vmem:[#allocation11 + $0x588] sm:$0xff]
    %v2430 = vld [vmem:[#allocation11 + $0x590] sm:$0xff]
    %v2431 = vld [vmem:[#allocation11 + $0x598] sm:$0xff]
    %v2432 = vld [vmem:[#allocation11 + $0x5a0] sm:$0xff]
    %v2433 = vld [vmem:[#allocation11 + $0x5a8] sm:$0xff]
    %v2434 = vld [vmem:[#allocation11 + $0x5b0] sm:$0xff]
    %v2435 = vld [vmem:[#allocation11 + $0x5b8] sm:$0xff]
    %v2436 = vld [vmem:[#allocation11 + $0x5c0] sm:$0xff]
    %v2437 = vld [vmem:[#allocation11 + $0x5c8] sm:$0xff]
    %v2438 = vld [vmem:[#allocation11 + $0x5d0] sm:$0xff]
    %v2439 = vld [vmem:[#allocation11 + $0x5d8] sm:$0xff]
    %v2440 = vld [vmem:[#allocation11 + $0x5e0] sm:$0xff]
    %v2441 = vld [vmem:[#allocation11 + $0x5e8] sm:$0xff]
    %v2442 = vld [vmem:[#allocation11 + $0x5f0] sm:$0xff]
    %v2443 = vld [vmem:[#allocation11 + $0x5f8] sm:$0xff]
    %v2444 = vld [vmem:[#allocation11 + $0x600] sm:$0xff]
    %v2445 = vld [vmem:[#allocation11 + $0x608] sm:$0xff]
    %v2446 = vld [vmem:[#allocation11 + $0x610] sm:$0xff]
    %v2447 = vld [vmem:[#allocation11 + $0x618] sm:$0xff]
    %v2448 = vld [vmem:[#allocation11 + $0x620] sm:$0xff]
    %v2449 = vld [vmem:[#allocation11 + $0x628] sm:$0xff]
    %v2450 = vld [vmem:[#allocation11 + $0x630] sm:$0xff]
    %v2451 = vld [vmem:[#allocation11 + $0x638] sm:$0xff]
    %v2452 = vld [vmem:[#allocation11 + $0x640] sm:$0xff]
    %v2453 = vld [vmem:[#allocation11 + $0x648] sm:$0xff]
    %v2454 = vld [vmem:[#allocation11 + $0x650] sm:$0xff]
    %v2455 = vld [vmem:[#allocation11 + $0x658] sm:$0xff]
    %v2456 = vld [vmem:[#allocation11 + $0x660] sm:$0xff]
    %v2457 = vld [vmem:[#allocation11 + $0x668] sm:$0xff]
    %v2458 = vld [vmem:[#allocation11 + $0x670] sm:$0xff]
    %v2459 = vld [vmem:[#allocation11 + $0x678] sm:$0xff]
    %v2460 = vld [vmem:[#allocation11 + $0x680] sm:$0xff]
    %v2461 = vld [vmem:[#allocation11 + $0x688] sm:$0xff]
    %v2462 = vld [vmem:[#allocation11 + $0x690] sm:$0xff]
    %v2463 = vld [vmem:[#allocation11 + $0x698] sm:$0xff]
    %v2464 = vld [vmem:[#allocation11 + $0x6a0] sm:$0xff]
    %v2465 = vld [vmem:[#allocation11 + $0x6a8] sm:$0xff]
    %v2466 = vld [vmem:[#allocation11 + $0x6b0] sm:$0xff]
    %v2467 = vld [vmem:[#allocation11 + $0x6b8] sm:$0xff]
    %v2468 = vld [vmem:[#allocation11 + $0x6c0] sm:$0xff]
    %v2469 = vld [vmem:[#allocation11 + $0x6c8] sm:$0xff]
    %v2470 = vld [vmem:[#allocation11 + $0x6d0] sm:$0xff]
    %v2471 = vld [vmem:[#allocation11 + $0x6d8] sm:$0xff]
    %v2472 = vld [vmem:[#allocation11 + $0x6e0] sm:$0xff]
    %v2473 = vld [vmem:[#allocation11 + $0x6e8] sm:$0xff]
    %v2474 = vld [vmem:[#allocation11 + $0x6f0] sm:$0xff]
    %v2475 = vld [vmem:[#allocation11 + $0x6f8] sm:$0xff]
    %v2476 = vld [vmem:[#allocation11 + $0x700] sm:$0xff]
    %v2477 = vld [vmem:[#allocation11 + $0x708] sm:$0xff]
    %v2478 = vld [vmem:[#allocation11 + $0x710] sm:$0xff]
    %v2479 = vld [vmem:[#allocation11 + $0x718] sm:$0xff]
    %v2480 = vld [vmem:[#allocation11 + $0x720] sm:$0xff]
    %v2481 = vld [vmem:[#allocation11 + $0x728] sm:$0xff]
    %v2482 = vld [vmem:[#allocation11 + $0x730] sm:$0xff]
    %v2483 = vld [vmem:[#allocation11 + $0x738] sm:$0xff]
    %v2484 = vld [vmem:[#allocation11 + $0x740] sm:$0xff]
    %v2485 = vld [vmem:[#allocation11 + $0x748] sm:$0xff]
    %v2486 = vld [vmem:[#allocation11 + $0x750] sm:$0xff]
    %v2487 = vld [vmem:[#allocation11 + $0x758] sm:$0xff]
    %v2488 = vld [vmem:[#allocation11 + $0x760] sm:$0xff]
    %v2489 = vld [vmem:[#allocation11 + $0x768] sm:$0xff]
    %v2490 = vld [vmem:[#allocation11 + $0x770] sm:$0xff]
    %v2491 = vld [vmem:[#allocation11 + $0x778] sm:$0xff]
    %v2492 = vld [vmem:[#allocation11 + $0x780] sm:$0xff]
    %v2493 = vld [vmem:[#allocation11 + $0x788] sm:$0xff]
    %v2494 = vld [vmem:[#allocation11 + $0x790] sm:$0xff]
    %v2495 = vld [vmem:[#allocation11 + $0x798] sm:$0xff]
    %v2496 = vld [vmem:[#allocation11 + $0x7a0] sm:$0xff]
    %v2497 = vld [vmem:[#allocation11 + $0x7a8] sm:$0xff]
    %v2498 = vld [vmem:[#allocation11 + $0x7b0] sm:$0xff]
    %v2499 = vld [vmem:[#allocation11 + $0x7b8] sm:$0xff]
    %v2500 = vld [vmem:[#allocation11 + $0x7c0] sm:$0xff]
    %v2501 = vld [vmem:[#allocation11 + $0x7c8] sm:$0xff]
    %v2502 = vld [vmem:[#allocation11 + $0x7d0] sm:$0xff]
    %v2503 = vld [vmem:[#allocation11 + $0x7d8] sm:$0xff]
    %v2504 = vld [vmem:[#allocation11 + $0x7e0] sm:$0xff]
    %v2505 = vld [vmem:[#allocation11 + $0x7e8] sm:$0xff]
    %v2506 = vld [vmem:[#allocation11 + $0x7f0] sm:$0xff]
    %v2507 = vld [vmem:[#allocation11 + $0x7f8] sm:$0xff]
    %v2508 = vld [vmem:[#allocation11 + $0x800] sm:$0xff]
    %v2509 = vld [vmem:[#allocation11 + $0x808] sm:$0xff]
    %v2510 = vld [vmem:[#allocation11 + $0x810] sm:$0xff]
    %v2511 = vld [vmem:[#allocation11 + $0x818] sm:$0xff]
    %v2512 = vld [vmem:[#allocation11 + $0x820] sm:$0xff]
    %v2513 = vld [vmem:[#allocation11 + $0x828] sm:$0xff]
    %v2514 = vld [vmem:[#allocation11 + $0x830] sm:$0xff]
    %v2515 = vld [vmem:[#allocation11 + $0x838] sm:$0xff]
    %v2516 = vld [vmem:[#allocation11 + $0x840] sm:$0xff]
    %v2517 = vld [vmem:[#allocation11 + $0x848] sm:$0xff]
    %v2518 = vld [vmem:[#allocation11 + $0x850] sm:$0xff]
    %v2519 = vld [vmem:[#allocation11 + $0x858] sm:$0xff]
    %v2520 = vld [vmem:[#allocation11 + $0x860] sm:$0xff]
    %v2521 = vld [vmem:[#allocation11 + $0x868] sm:$0xff]
    %v2522 = vld [vmem:[#allocation11 + $0x870] sm:$0xff]
    %v2523 = vld [vmem:[#allocation11 + $0x878] sm:$0xff]
    %v2524 = vld [vmem:[#allocation11 + $0x880] sm:$0xff]
    %v2525 = vld [vmem:[#allocation11 + $0x888] sm:$0xff]
    %v2526 = vld [vmem:[#allocation11 + $0x890] sm:$0xff]
    %v2527 = vld [vmem:[#allocation11 + $0x898] sm:$0xff]
    %v2528 = vld [vmem:[#allocation11 + $0x8a0] sm:$0xff]
    %v2529 = vld [vmem:[#allocation11 + $0x8a8] sm:$0xff]
    %v2530 = vld [vmem:[#allocation11 + $0x8b0] sm:$0xff]
    %v2531 = vld [vmem:[#allocation11 + $0x8b8] sm:$0xff]
    %v2532 = vld [vmem:[#allocation11 + $0x8c0] sm:$0xff]
    %v2533 = vld [vmem:[#allocation11 + $0x8c8] sm:$0xff]
    %v2534 = vld [vmem:[#allocation11 + $0x8d0] sm:$0xff]
    %v2535 = vld [vmem:[#allocation11 + $0x8d8] sm:$0xff]
    %v2536 = vld [vmem:[#allocation11 + $0x8e0] sm:$0xff]
    %v2537 = vld [vmem:[#allocation11 + $0x8e8] sm:$0xff]
    %v2538 = vld [vmem:[#allocation11 + $0x8f0] sm:$0xff]
    %v2539 = vld [vmem:[#allocation11 + $0x8f8] sm:$0xff]
    %v2540 = vld [vmem:[#allocation11 + $0x900] sm:$0xff]
    %v2541 = vld [vmem:[#allocation11 + $0x908] sm:$0xff]
    %v2542 = vld [vmem:[#allocation11 + $0x910] sm:$0xff]
    %v2543 = vld [vmem:[#allocation11 + $0x918] sm:$0xff]
    %v2544 = vld [vmem:[#allocation11 + $0x920] sm:$0xff]
    %v2545 = vld [vmem:[#allocation11 + $0x928] sm:$0xff]
    %v2546 = vld [vmem:[#allocation11 + $0x930] sm:$0xff]
    %v2547 = vld [vmem:[#allocation11 + $0x938] sm:$0xff]
    %v2548 = vld [vmem:[#allocation11 + $0x940] sm:$0xff]
    %v2549 = vld [vmem:[#allocation11 + $0x948] sm:$0xff]
    %v2550 = vld [vmem:[#allocation11 + $0x950] sm:$0xff]
    %v2551 = vld [vmem:[#allocation11 + $0x958] sm:$0xff]
    %v2552 = vld [vmem:[#allocation11 + $0x960] sm:$0xff]
    %v2553 = vld [vmem:[#allocation11 + $0x968] sm:$0xff]
    %v2554 = vld [vmem:[#allocation11 + $0x970] sm:$0xff]
    %v2555 = vld [vmem:[#allocation11 + $0x978] sm:$0xff]
    %v2556 = vld [vmem:[#allocation11 + $0x980] sm:$0xff]
    %v2557 = vld [vmem:[#allocation11 + $0x988] sm:$0xff]
    %v2558 = vld [vmem:[#allocation11 + $0x990] sm:$0xff]
    %v2559 = vld [vmem:[#allocation11 + $0x998] sm:$0xff]
    %v2560 = vld [vmem:[#allocation11 + $0x9a0] sm:$0xff]
    %v2561 = vld [vmem:[#allocation11 + $0x9a8] sm:$0xff]
    %v2562 = vld [vmem:[#allocation11 + $0x9b0] sm:$0xff]
    %v2563 = vld [vmem:[#allocation11 + $0x9b8] sm:$0xff]
    %v2564 = vld [vmem:[#allocation11 + $0x9c0] sm:$0xff]
    %v2565 = vld [vmem:[#allocation11 + $0x9c8] sm:$0xff]
    %v2566 = vld [vmem:[#allocation11 + $0x9d0] sm:$0xff]
    %v2567 = vld [vmem:[#allocation11 + $0x9d8] sm:$0xff]
    %v2568 = vld [vmem:[#allocation11 + $0x9e0] sm:$0xff]
    %v2569 = vld [vmem:[#allocation11 + $0x9e8] sm:$0xff]
    %v2570 = vld [vmem:[#allocation11 + $0x9f0] sm:$0xff]
    %v2571 = vld [vmem:[#allocation11 + $0x9f8] sm:$0xff]
    %v2572 = vld [vmem:[#allocation11 + $0xa00] sm:$0xff]
    %v2573 = vld [vmem:[#allocation11 + $0xa08] sm:$0xff]
    %v2574 = vld [vmem:[#allocation11 + $0xa10] sm:$0xff]
    %v2575 = vld [vmem:[#allocation11 + $0xa18] sm:$0xff]
    %v2576 = vld [vmem:[#allocation11 + $0xa20] sm:$0xff]
    %v2577 = vld [vmem:[#allocation11 + $0xa28] sm:$0xff]
    %v2578 = vld [vmem:[#allocation11 + $0xa30] sm:$0xff]
    %v2579 = vld [vmem:[#allocation11 + $0xa38] sm:$0xff]
    %v2580 = vld [vmem:[#allocation11 + $0xa40] sm:$0xff]
    %v2581 = vld [vmem:[#allocation11 + $0xa48] sm:$0xff]
    %v2582 = vld [vmem:[#allocation11 + $0xa50] sm:$0xff]
    %v2583 = vld [vmem:[#allocation11 + $0xa58] sm:$0xff]
    %v2584 = vld [vmem:[#allocation11 + $0xa60] sm:$0xff]
    %v2585 = vld [vmem:[#allocation11 + $0xa68] sm:$0xff]
    %v2586 = vld [vmem:[#allocation11 + $0xa70] sm:$0xff]
    %v2587 = vld [vmem:[#allocation11 + $0xa78] sm:$0xff]
    %v2588 = vld [vmem:[#allocation11 + $0xa80] sm:$0xff]
    %v2589 = vld [vmem:[#allocation11 + $0xa88] sm:$0xff]
    %v2590 = vld [vmem:[#allocation11 + $0xa90] sm:$0xff]
    %v2591 = vld [vmem:[#allocation11 + $0xa98] sm:$0xff]
    %v2592 = vld [vmem:[#allocation11 + $0xaa0] sm:$0xff]
    %v2593 = vld [vmem:[#allocation11 + $0xaa8] sm:$0xff]
    %v2594 = vld [vmem:[#allocation11 + $0xab0] sm:$0xff]
    %v2595 = vld [vmem:[#allocation11 + $0xab8] sm:$0xff]
    %v2596 = vld [vmem:[#allocation11 + $0xac0] sm:$0xff]
    %v2597 = vld [vmem:[#allocation11 + $0xac8] sm:$0xff]
    %v2598 = vld [vmem:[#allocation11 + $0xad0] sm:$0xff]
    %v2599 = vld [vmem:[#allocation11 + $0xad8] sm:$0xff]
    %v2600 = vld [vmem:[#allocation11 + $0xae0] sm:$0xff]
    %v2601 = vld [vmem:[#allocation11 + $0xae8] sm:$0xff]
    %v2602 = vld [vmem:[#allocation11 + $0xaf0] sm:$0xff]
    %v2603 = vld [vmem:[#allocation11 + $0xaf8] sm:$0xff]
    %v2604 = vld [vmem:[#allocation11 + $0xb00] sm:$0xff]
    %v2605 = vld [vmem:[#allocation11 + $0xb08] sm:$0xff]
    %v2606 = vld [vmem:[#allocation11 + $0xb10] sm:$0xff]
    %v2607 = vld [vmem:[#allocation11 + $0xb18] sm:$0xff]
    %v2608 = vld [vmem:[#allocation11 + $0xb20] sm:$0xff]
    %v2609 = vld [vmem:[#allocation11 + $0xb28] sm:$0xff]
    %v2610 = vld [vmem:[#allocation11 + $0xb30] sm:$0xff]
    %v2611 = vld [vmem:[#allocation11 + $0xb38] sm:$0xff]
    %v2612 = vld [vmem:[#allocation11 + $0xb40] sm:$0xff]
    %v2613 = vld [vmem:[#allocation11 + $0xb48] sm:$0xff]
    %v2614 = vld [vmem:[#allocation11 + $0xb50] sm:$0xff]
    %v2615 = vld [vmem:[#allocation11 + $0xb58] sm:$0xff]
    %v2616 = vld [vmem:[#allocation11 + $0xb60] sm:$0xff]
    %v2617 = vld [vmem:[#allocation11 + $0xb68] sm:$0xff]
    %v2618 = vld [vmem:[#allocation11 + $0xb70] sm:$0xff]
    %v2619 = vld [vmem:[#allocation11 + $0xb78] sm:$0xff]
    %v2620 = vld [vmem:[#allocation11 + $0xb80] sm:$0xff]
    %v2621 = vld [vmem:[#allocation11 + $0xb88] sm:$0xff]
    %v2622 = vld [vmem:[#allocation11 + $0xb90] sm:$0xff]
    %v2623 = vld [vmem:[#allocation11 + $0xb98] sm:$0xff]
    %v2624 = vld [vmem:[#allocation11 + $0xba0] sm:$0xff]
    %v2625 = vld [vmem:[#allocation11 + $0xba8] sm:$0xff]
    %v2626 = vld [vmem:[#allocation11 + $0xbb0] sm:$0xff]
    %v2627 = vld [vmem:[#allocation11 + $0xbb8] sm:$0xff]
    %v2628 = vld [vmem:[#allocation11 + $0xbc0] sm:$0xff]
    %v2629 = vld [vmem:[#allocation11 + $0xbc8] sm:$0xff]
    %v2630 = vld [vmem:[#allocation11 + $0xbd0] sm:$0xff]
    %v2631 = vld [vmem:[#allocation11 + $0xbd8] sm:$0xff]
    %v2632 = vld [vmem:[#allocation11 + $0xbe0] sm:$0xff]
    %v2633 = vld [vmem:[#allocation11 + $0xbe8] sm:$0xff]
    %v2634 = vld [vmem:[#allocation11 + $0xbf0] sm:$0xff]
    %v2635 = vld [vmem:[#allocation11 + $0xbf8] sm:$0xff]
    %v2636 = vld [vmem:[#allocation11 + $0xc00] sm:$0xff]
    %v2637 = vld [vmem:[#allocation11 + $0xc08] sm:$0xff]
    %v2638 = vld [vmem:[#allocation11 + $0xc10] sm:$0xff]
    %v2639 = vld [vmem:[#allocation11 + $0xc18] sm:$0xff]
    %v2640 = vld [vmem:[#allocation11 + $0xc20] sm:$0xff]
    %v2641 = vld [vmem:[#allocation11 + $0xc28] sm:$0xff]
    %v2642 = vld [vmem:[#allocation11 + $0xc30] sm:$0xff]
    %v2643 = vld [vmem:[#allocation11 + $0xc38] sm:$0xff]
    %v2644 = vld [vmem:[#allocation11 + $0xc40] sm:$0xff]
    %v2645 = vld [vmem:[#allocation11 + $0xc48] sm:$0xff]
    %v2646 = vld [vmem:[#allocation11 + $0xc50] sm:$0xff]
    %v2647 = vld [vmem:[#allocation11 + $0xc58] sm:$0xff]
    %v2648 = vld [vmem:[#allocation11 + $0xc60] sm:$0xff]
    %v2649 = vld [vmem:[#allocation11 + $0xc68] sm:$0xff]
    %v2650 = vld [vmem:[#allocation11 + $0xc70] sm:$0xff]
    %v2651 = vld [vmem:[#allocation11 + $0xc78] sm:$0xff]
    %v2652 = vld [vmem:[#allocation11 + $0xc80] sm:$0xff]
    %v2653 = vld [vmem:[#allocation11 + $0xc88] sm:$0xff]
    %v2654 = vld [vmem:[#allocation11 + $0xc90] sm:$0xff]
    %v2655 = vld [vmem:[#allocation11 + $0xc98] sm:$0xff]
    %v2656 = vld [vmem:[#allocation11 + $0xca0] sm:$0xff]
    %v2657 = vld [vmem:[#allocation11 + $0xca8] sm:$0xff]
    %v2658 = vld [vmem:[#allocation11 + $0xcb0] sm:$0xff]
    %v2659 = vld [vmem:[#allocation11 + $0xcb8] sm:$0xff]
    %v2660 = vld [vmem:[#allocation11 + $0xcc0] sm:$0xff]
    %v2661 = vld [vmem:[#allocation11 + $0xcc8] sm:$0xff]
    %v2662 = vld [vmem:[#allocation11 + $0xcd0] sm:$0xff]
    %v2663 = vld [vmem:[#allocation11 + $0xcd8] sm:$0xff]
    %v2664 = vld [vmem:[#allocation11 + $0xce0] sm:$0xff]
    %v2665 = vld [vmem:[#allocation11 + $0xce8] sm:$0xff]
    %v2666 = vld [vmem:[#allocation11 + $0xcf0] sm:$0xff]
    %v2667 = vld [vmem:[#allocation11 + $0xcf8] sm:$0xff]
    %v2668 = vld [vmem:[#allocation11 + $0xd00] sm:$0xff]
    %v2669 = vld [vmem:[#allocation11 + $0xd08] sm:$0xff]
    %v2670 = vld [vmem:[#allocation11 + $0xd10] sm:$0xff]
    %v2671 = vld [vmem:[#allocation11 + $0xd18] sm:$0xff]
    %v2672 = vld [vmem:[#allocation11 + $0xd20] sm:$0xff]
    %v2673 = vld [vmem:[#allocation11 + $0xd28] sm:$0xff]
    %v2674 = vld [vmem:[#allocation11 + $0xd30] sm:$0xff]
    %v2675 = vld [vmem:[#allocation11 + $0xd38] sm:$0xff]
    %v2676 = vld [vmem:[#allocation11 + $0xd40] sm:$0xff]
    %v2677 = vld [vmem:[#allocation11 + $0xd48] sm:$0xff]
    %v2678 = vld [vmem:[#allocation11 + $0xd50] sm:$0xff]
    %v2679 = vld [vmem:[#allocation11 + $0xd58] sm:$0xff]
    %v2680 = vld [vmem:[#allocation11 + $0xd60] sm:$0xff]
    %v2681 = vld [vmem:[#allocation11 + $0xd68] sm:$0xff]
    %v2682 = vld [vmem:[#allocation11 + $0xd70] sm:$0xff]
    %v2683 = vld [vmem:[#allocation11 + $0xd78] sm:$0xff]
    %v2684 = vld [vmem:[#allocation11 + $0xd80] sm:$0xff]
    %v2685 = vld [vmem:[#allocation11 + $0xd88] sm:$0xff]
    %v2686 = vld [vmem:[#allocation11 + $0xd90] sm:$0xff]
    %v2687 = vld [vmem:[#allocation11 + $0xd98] sm:$0xff]
    %v2688 = vld [vmem:[#allocation11 + $0xda0] sm:$0xff]
    %v2689 = vld [vmem:[#allocation11 + $0xda8] sm:$0xff]
    %v2690 = vld [vmem:[#allocation11 + $0xdb0] sm:$0xff]
    %v2691 = vld [vmem:[#allocation11 + $0xdb8] sm:$0xff]
    %v2692 = vld [vmem:[#allocation11 + $0xdc0] sm:$0xff]
    %v2693 = vld [vmem:[#allocation11 + $0xdc8] sm:$0xff]
    %v2694 = vld [vmem:[#allocation11 + $0xdd0] sm:$0xff]
    %v2695 = vld [vmem:[#allocation11 + $0xdd8] sm:$0xff]
    %v2696 = vld [vmem:[#allocation11 + $0xde0] sm:$0xff]
    %v2697 = vld [vmem:[#allocation11 + $0xde8] sm:$0xff]
    %v2698 = vld [vmem:[#allocation11 + $0xdf0] sm:$0xff]
    %v2699 = vld [vmem:[#allocation11 + $0xdf8] sm:$0xff]
    %v2700 = vld [vmem:[#allocation11 + $0xe00] sm:$0xff]
    %v2701 = vld [vmem:[#allocation11 + $0xe08] sm:$0xff]
    %v2702 = vld [vmem:[#allocation11 + $0xe10] sm:$0xff]
    %v2703 = vld [vmem:[#allocation11 + $0xe18] sm:$0xff]
    %v2704 = vld [vmem:[#allocation11 + $0xe20] sm:$0xff]
    %v2705 = vld [vmem:[#allocation11 + $0xe28] sm:$0xff]
    %v2706 = vld [vmem:[#allocation11 + $0xe30] sm:$0xff]
    %v2707 = vld [vmem:[#allocation11 + $0xe38] sm:$0xff]
    %v2708 = vld [vmem:[#allocation11 + $0xe40] sm:$0xff]
    %v2709 = vld [vmem:[#allocation11 + $0xe48] sm:$0xff]
    %v2710 = vld [vmem:[#allocation11 + $0xe50] sm:$0xff]
    %v2711 = vld [vmem:[#allocation11 + $0xe58] sm:$0xff]
    %v2712 = vld [vmem:[#allocation11 + $0xe60] sm:$0xff]
    %v2713 = vld [vmem:[#allocation11 + $0xe68] sm:$0xff]
    %v2714 = vld [vmem:[#allocation11 + $0xe70] sm:$0xff]
    %v2715 = vld [vmem:[#allocation11 + $0xe78] sm:$0xff]
    %v2716 = vld [vmem:[#allocation11 + $0xe80] sm:$0xff]
    %v2717 = vld [vmem:[#allocation11 + $0xe88] sm:$0xff]
    %v2718 = vld [vmem:[#allocation11 + $0xe90] sm:$0xff]
    %v2719 = vld [vmem:[#allocation11 + $0xe98] sm:$0xff]
    %v2720 = vld [vmem:[#allocation11 + $0xea0] sm:$0xff]
    %v2721 = vld [vmem:[#allocation11 + $0xea8] sm:$0xff]
    %v2722 = vld [vmem:[#allocation11 + $0xeb0] sm:$0xff]
    %v2723 = vld [vmem:[#allocation11 + $0xeb8] sm:$0xff]
    %v2724 = vld [vmem:[#allocation11 + $0xec0] sm:$0xff]
    %v2725 = vld [vmem:[#allocation11 + $0xec8] sm:$0xff]
    %v2726 = vld [vmem:[#allocation11 + $0xed0] sm:$0xff]
    %v2727 = vld [vmem:[#allocation11 + $0xed8] sm:$0xff]
    %v2728 = vld [vmem:[#allocation11 + $0xee0] sm:$0xff]
    %v2729 = vld [vmem:[#allocation11 + $0xee8] sm:$0xff]
    %v2730 = vld [vmem:[#allocation11 + $0xef0] sm:$0xff]
    %v2731 = vld [vmem:[#allocation11 + $0xef8] sm:$0xff]
    %v2732 = vld [vmem:[#allocation11 + $0xf00] sm:$0xff]
    %v2733 = vld [vmem:[#allocation11 + $0xf08] sm:$0xff]
    %v2734 = vld [vmem:[#allocation11 + $0xf10] sm:$0xff]
    %v2735 = vld [vmem:[#allocation11 + $0xf18] sm:$0xff]
    %v2736 = vld [vmem:[#allocation11 + $0xf20] sm:$0xff]
    %v2737 = vld [vmem:[#allocation11 + $0xf28] sm:$0xff]
    %v2738 = vld [vmem:[#allocation11 + $0xf30] sm:$0xff]
    %v2739 = vld [vmem:[#allocation11 + $0xf38] sm:$0xff]
    %v2740 = vld [vmem:[#allocation11 + $0xf40] sm:$0xff]
    %v2741 = vld [vmem:[#allocation11 + $0xf48] sm:$0xff]
    %v2742 = vld [vmem:[#allocation11 + $0xf50] sm:$0xff]
    %v2743 = vld [vmem:[#allocation11 + $0xf58] sm:$0xff]
    %v2744 = vld [vmem:[#allocation11 + $0xf60] sm:$0xff]
    %v2745 = vld [vmem:[#allocation11 + $0xf68] sm:$0xff]
    %v2746 = vld [vmem:[#allocation11 + $0xf70] sm:$0xff]
    %v2747 = vld [vmem:[#allocation11 + $0xf78] sm:$0xff]
    %v2748 = vld [vmem:[#allocation11 + $0xf80] sm:$0xff]
    %v2749 = vld [vmem:[#allocation11 + $0xf88] sm:$0xff]
    %v2750 = vld [vmem:[#allocation11 + $0xf90] sm:$0xff]
    %v2751 = vld [vmem:[#allocation11 + $0xf98] sm:$0xff]
    %v2752 = vld [vmem:[#allocation11 + $0xfa0] sm:$0xff]
    %v2753 = vld [vmem:[#allocation11 + $0xfa8] sm:$0xff]
    %v2754 = vld [vmem:[#allocation11 + $0xfb0] sm:$0xff]
    %v2755 = vld [vmem:[#allocation11 + $0xfb8] sm:$0xff]
    %v2756 = vld [vmem:[#allocation11 + $0xfc0] sm:$0xff]
    %v2757 = vld [vmem:[#allocation11 + $0xfc8] sm:$0xff]
    %v2758 = vld [vmem:[#allocation11 + $0xfd0] sm:$0xff]
    %v2759 = vld [vmem:[#allocation11 + $0xfd8] sm:$0xff]
    %v2760 = vld [vmem:[#allocation11 + $0xfe0] sm:$0xff]
    %v2761 = vld [vmem:[#allocation11 + $0xfe8] sm:$0xff]
    %v2762 = vld [vmem:[#allocation11 + $0xff0] sm:$0xff]
    %v2763 = vld [vmem:[#allocation11 + $0xff8] sm:$0xff]
    %v2764 = vld [vmem:[#allocation13] sm:$0xff]
    %v2766 = vlaneseq
    %v2767 = vshrl.u32 %v2766, 7
    %v2768 = vsub.s32 0, %v2767
    %v2769 = vrot.slane %v2764, %v2768
    %v2770 = vlaneseq
    %v2771 = vshrl.u32 %v2770, 7
    %v2772 = vsub.s32 1, %v2771
    %v2773 = vrot.slane %v2764, %v2772
    %v2774 = vlaneseq
    %v2775 = vshrl.u32 %v2774, 7
    %v2776 = vsub.s32 2, %v2775
    %v2777 = vrot.slane %v2764, %v2776
    %v2778 = vlaneseq
    %v2779 = vshrl.u32 %v2778, 7
    %v2780 = vsub.s32 3, %v2779
    %v2781 = vrot.slane %v2764, %v2780
    %v2782 = vlaneseq
    %v2783 = vshrl.u32 %v2782, 7
    %v2784 = vsub.s32 4, %v2783
    %v2785 = vrot.slane %v2764, %v2784
    %v2786 = vlaneseq
    %v2787 = vshrl.u32 %v2786, 7
    %v2788 = vsub.s32 5, %v2787
    %v2789 = vrot.slane %v2764, %v2788
    %v2790 = vlaneseq
    %v2791 = vshrl.u32 %v2790, 7
    %v2792 = vsub.s32 6, %v2791
    %v2793 = vrot.slane %v2764, %v2792
    %v2794 = vlaneseq
    %v2795 = vshrl.u32 %v2794, 7
    %v2796 = vsub.s32 7, %v2795
    %v2797 = vrot.slane %v2764, %v2796
    %v3318 = vunpack.c.l.b16 %v2252
    %v3319 = vunpack.c.h.b16 %v2252
    %v3320 = vunpack.c.l.b16 %v2253
    %v3321 = vunpack.c.h.b16 %v2253
    %v3322 = vunpack.c.l.b16 %v2254
    %v3323 = vunpack.c.h.b16 %v2254
    %v3324 = vunpack.c.l.b16 %v2255
    %v3325 = vunpack.c.h.b16 %v2255
    %v3326 = vunpack.c.l.b16 %v2256
    %v3327 = vunpack.c.h.b16 %v2256
    %v3328 = vunpack.c.l.b16 %v2257
    %v3329 = vunpack.c.h.b16 %v2257
    %v3330 = vunpack.c.l.b16 %v2258
    %v3331 = vunpack.c.h.b16 %v2258
    %v3332 = vunpack.c.l.b16 %v2259
    %v3333 = vunpack.c.h.b16 %v2259
    %v3334 = vunpack.c.l.b16 %v2260
    %v3335 = vunpack.c.h.b16 %v2260
    %v3336 = vunpack.c.l.b16 %v2261
    %v3337 = vunpack.c.h.b16 %v2261
    %v3338 = vunpack.c.l.b16 %v2262
    %v3339 = vunpack.c.h.b16 %v2262
    %v3340 = vunpack.c.l.b16 %v2263
    %v3341 = vunpack.c.h.b16 %v2263
    %v3342 = vunpack.c.l.b16 %v2264
    %v3343 = vunpack.c.h.b16 %v2264
    %v3344 = vunpack.c.l.b16 %v2265
    %v3345 = vunpack.c.h.b16 %v2265
    %v3346 = vunpack.c.l.b16 %v2266
    %v3347 = vunpack.c.h.b16 %v2266
    %v3348 = vunpack.c.l.b16 %v2267
    %v3349 = vunpack.c.h.b16 %v2267
    %v3350 = vunpack.c.l.b16 %v2268
    %v3351 = vunpack.c.h.b16 %v2268
    %v3352 = vunpack.c.l.b16 %v2269
    %v3353 = vunpack.c.h.b16 %v2269
    %v3354 = vunpack.c.l.b16 %v2270
    %v3355 = vunpack.c.h.b16 %v2270
    %v3356 = vunpack.c.l.b16 %v2271
    %v3357 = vunpack.c.h.b16 %v2271
    %v3358 = vunpack.c.l.b16 %v2272
    %v3359 = vunpack.c.h.b16 %v2272
    %v3360 = vunpack.c.l.b16 %v2273
    %v3361 = vunpack.c.h.b16 %v2273
    %v3362 = vunpack.c.l.b16 %v2274
    %v3363 = vunpack.c.h.b16 %v2274
    %v3364 = vunpack.c.l.b16 %v2275
    %v3365 = vunpack.c.h.b16 %v2275
    %v3366 = vunpack.c.l.b16 %v2276
    %v3367 = vunpack.c.h.b16 %v2276
    %v3368 = vunpack.c.l.b16 %v2277
    %v3369 = vunpack.c.h.b16 %v2277
    %v3370 = vunpack.c.l.b16 %v2278
    %v3371 = vunpack.c.h.b16 %v2278
    %v3372 = vunpack.c.l.b16 %v2279
    %v3373 = vunpack.c.h.b16 %v2279
    %v3374 = vunpack.c.l.b16 %v2280
    %v3375 = vunpack.c.h.b16 %v2280
    %v3376 = vunpack.c.l.b16 %v2281
    %v3377 = vunpack.c.h.b16 %v2281
    %v3378 = vunpack.c.l.b16 %v2282
    %v3379 = vunpack.c.h.b16 %v2282
    %v3380 = vunpack.c.l.b16 %v2283
    %v3381 = vunpack.c.h.b16 %v2283
    %v3382 = vunpack.c.l.b16 %v2284
    %v3383 = vunpack.c.h.b16 %v2284
    %v3384 = vunpack.c.l.b16 %v2285
    %v3385 = vunpack.c.h.b16 %v2285
    %v3386 = vunpack.c.l.b16 %v2286
    %v3387 = vunpack.c.h.b16 %v2286
    %v3388 = vunpack.c.l.b16 %v2287
    %v3389 = vunpack.c.h.b16 %v2287
    %v3390 = vunpack.c.l.b16 %v2288
    %v3391 = vunpack.c.h.b16 %v2288
    %v3392 = vunpack.c.l.b16 %v2289
    %v3393 = vunpack.c.h.b16 %v2289
    %v3394 = vunpack.c.l.b16 %v2290
    %v3395 = vunpack.c.h.b16 %v2290
    %v3396 = vunpack.c.l.b16 %v2291
    %v3397 = vunpack.c.h.b16 %v2291
    %v3398 = vunpack.c.l.b16 %v2292
    %v3399 = vunpack.c.h.b16 %v2292
    %v3400 = vunpack.c.l.b16 %v2293
    %v3401 = vunpack.c.h.b16 %v2293
    %v3402 = vunpack.c.l.b16 %v2294
    %v3403 = vunpack.c.h.b16 %v2294
    %v3404 = vunpack.c.l.b16 %v2295
    %v3405 = vunpack.c.h.b16 %v2295
    %v3406 = vunpack.c.l.b16 %v2296
    %v3407 = vunpack.c.h.b16 %v2296
    %v3408 = vunpack.c.l.b16 %v2297
    %v3409 = vunpack.c.h.b16 %v2297
    %v3410 = vunpack.c.l.b16 %v2298
    %v3411 = vunpack.c.h.b16 %v2298
    %v3412 = vunpack.c.l.b16 %v2299
    %v3413 = vunpack.c.h.b16 %v2299
    %v3414 = vunpack.c.l.b16 %v2300
    %v3415 = vunpack.c.h.b16 %v2300
    %v3416 = vunpack.c.l.b16 %v2301
    %v3417 = vunpack.c.h.b16 %v2301
    %v3418 = vunpack.c.l.b16 %v2302
    %v3419 = vunpack.c.h.b16 %v2302
    %v3420 = vunpack.c.l.b16 %v2303
    %v3421 = vunpack.c.h.b16 %v2303
    %v3422 = vunpack.c.l.b16 %v2304
    %v3423 = vunpack.c.h.b16 %v2304
    %v3424 = vunpack.c.l.b16 %v2305
    %v3425 = vunpack.c.h.b16 %v2305
    %v3426 = vunpack.c.l.b16 %v2306
    %v3427 = vunpack.c.h.b16 %v2306
    %v3428 = vunpack.c.l.b16 %v2307
    %v3429 = vunpack.c.h.b16 %v2307
    %v3430 = vunpack.c.l.b16 %v2308
    %v3431 = vunpack.c.h.b16 %v2308
    %v3432 = vunpack.c.l.b16 %v2309
    %v3433 = vunpack.c.h.b16 %v2309
    %v3434 = vunpack.c.l.b16 %v2310
    %v3435 = vunpack.c.h.b16 %v2310
    %v3436 = vunpack.c.l.b16 %v2311
    %v3437 = vunpack.c.h.b16 %v2311
    %v3438 = vunpack.c.l.b16 %v2312
    %v3439 = vunpack.c.h.b16 %v2312
    %v3440 = vunpack.c.l.b16 %v2313
    %v3441 = vunpack.c.h.b16 %v2313
    %v3442 = vunpack.c.l.b16 %v2314
    %v3443 = vunpack.c.h.b16 %v2314
    %v3444 = vunpack.c.l.b16 %v2315
    %v3445 = vunpack.c.h.b16 %v2315
    %v3446 = vunpack.c.l.b16 %v2316
    %v3447 = vunpack.c.h.b16 %v2316
    %v3448 = vunpack.c.l.b16 %v2317
    %v3449 = vunpack.c.h.b16 %v2317
    %v3450 = vunpack.c.l.b16 %v2318
    %v3451 = vunpack.c.h.b16 %v2318
    %v3452 = vunpack.c.l.b16 %v2319
    %v3453 = vunpack.c.h.b16 %v2319
    %v3454 = vunpack.c.l.b16 %v2320
    %v3455 = vunpack.c.h.b16 %v2320
    %v3456 = vunpack.c.l.b16 %v2321
    %v3457 = vunpack.c.h.b16 %v2321
    %v3458 = vunpack.c.l.b16 %v2322
    %v3459 = vunpack.c.h.b16 %v2322
    %v3460 = vunpack.c.l.b16 %v2323
    %v3461 = vunpack.c.h.b16 %v2323
    %v3462 = vunpack.c.l.b16 %v2324
    %v3463 = vunpack.c.h.b16 %v2324
    %v3464 = vunpack.c.l.b16 %v2325
    %v3465 = vunpack.c.h.b16 %v2325
    %v3466 = vunpack.c.l.b16 %v2326
    %v3467 = vunpack.c.h.b16 %v2326
    %v3468 = vunpack.c.l.b16 %v2327
    %v3469 = vunpack.c.h.b16 %v2327
    %v3470 = vunpack.c.l.b16 %v2328
    %v3471 = vunpack.c.h.b16 %v2328
    %v3472 = vunpack.c.l.b16 %v2329
    %v3473 = vunpack.c.h.b16 %v2329
    %v3474 = vunpack.c.l.b16 %v2330
    %v3475 = vunpack.c.h.b16 %v2330
    %v3476 = vunpack.c.l.b16 %v2331
    %v3477 = vunpack.c.h.b16 %v2331
    %v3478 = vunpack.c.l.b16 %v2332
    %v3479 = vunpack.c.h.b16 %v2332
    %v3480 = vunpack.c.l.b16 %v2333
    %v3481 = vunpack.c.h.b16 %v2333
    %v3482 = vunpack.c.l.b16 %v2334
    %v3483 = vunpack.c.h.b16 %v2334
    %v3484 = vunpack.c.l.b16 %v2335
    %v3485 = vunpack.c.h.b16 %v2335
    %v3486 = vunpack.c.l.b16 %v2336
    %v3487 = vunpack.c.h.b16 %v2336
    %v3488 = vunpack.c.l.b16 %v2337
    %v3489 = vunpack.c.h.b16 %v2337
    %v3490 = vunpack.c.l.b16 %v2338
    %v3491 = vunpack.c.h.b16 %v2338
    %v3492 = vunpack.c.l.b16 %v2339
    %v3493 = vunpack.c.h.b16 %v2339
    %v3494 = vunpack.c.l.b16 %v2340
    %v3495 = vunpack.c.h.b16 %v2340
    %v3496 = vunpack.c.l.b16 %v2341
    %v3497 = vunpack.c.h.b16 %v2341
    %v3498 = vunpack.c.l.b16 %v2342
    %v3499 = vunpack.c.h.b16 %v2342
    %v3500 = vunpack.c.l.b16 %v2343
    %v3501 = vunpack.c.h.b16 %v2343
    %v3502 = vunpack.c.l.b16 %v2344
    %v3503 = vunpack.c.h.b16 %v2344
    %v3504 = vunpack.c.l.b16 %v2345
    %v3505 = vunpack.c.h.b16 %v2345
    %v3506 = vunpack.c.l.b16 %v2346
    %v3507 = vunpack.c.h.b16 %v2346
    %v3508 = vunpack.c.l.b16 %v2347
    %v3509 = vunpack.c.h.b16 %v2347
    %v3510 = vunpack.c.l.b16 %v2348
    %v3511 = vunpack.c.h.b16 %v2348
    %v3512 = vunpack.c.l.b16 %v2349
    %v3513 = vunpack.c.h.b16 %v2349
    %v3514 = vunpack.c.l.b16 %v2350
    %v3515 = vunpack.c.h.b16 %v2350
    %v3516 = vunpack.c.l.b16 %v2351
    %v3517 = vunpack.c.h.b16 %v2351
    %v3518 = vunpack.c.l.b16 %v2352
    %v3519 = vunpack.c.h.b16 %v2352
    %v3520 = vunpack.c.l.b16 %v2353
    %v3521 = vunpack.c.h.b16 %v2353
    %v3522 = vunpack.c.l.b16 %v2354
    %v3523 = vunpack.c.h.b16 %v2354
    %v3524 = vunpack.c.l.b16 %v2355
    %v3525 = vunpack.c.h.b16 %v2355
    %v3526 = vunpack.c.l.b16 %v2356
    %v3527 = vunpack.c.h.b16 %v2356
    %v3528 = vunpack.c.l.b16 %v2357
    %v3529 = vunpack.c.h.b16 %v2357
    %v3530 = vunpack.c.l.b16 %v2358
    %v3531 = vunpack.c.h.b16 %v2358
    %v3532 = vunpack.c.l.b16 %v2359
    %v3533 = vunpack.c.h.b16 %v2359
    %v3534 = vunpack.c.l.b16 %v2360
    %v3535 = vunpack.c.h.b16 %v2360
    %v3536 = vunpack.c.l.b16 %v2361
    %v3537 = vunpack.c.h.b16 %v2361
    %v3538 = vunpack.c.l.b16 %v2362
    %v3539 = vunpack.c.h.b16 %v2362
    %v3540 = vunpack.c.l.b16 %v2363
    %v3541 = vunpack.c.h.b16 %v2363
    %v3542 = vunpack.c.l.b16 %v2364
    %v3543 = vunpack.c.h.b16 %v2364
    %v3544 = vunpack.c.l.b16 %v2365
    %v3545 = vunpack.c.h.b16 %v2365
    %v3546 = vunpack.c.l.b16 %v2366
    %v3547 = vunpack.c.h.b16 %v2366
    %v3548 = vunpack.c.l.b16 %v2367
    %v3549 = vunpack.c.h.b16 %v2367
    %v3550 = vunpack.c.l.b16 %v2368
    %v3551 = vunpack.c.h.b16 %v2368
    %v3552 = vunpack.c.l.b16 %v2369
    %v3553 = vunpack.c.h.b16 %v2369
    %v3554 = vunpack.c.l.b16 %v2370
    %v3555 = vunpack.c.h.b16 %v2370
    %v3556 = vunpack.c.l.b16 %v2371
    %v3557 = vunpack.c.h.b16 %v2371
    %v3558 = vunpack.c.l.b16 %v2372
    %v3559 = vunpack.c.h.b16 %v2372
    %v3560 = vunpack.c.l.b16 %v2373
    %v3561 = vunpack.c.h.b16 %v2373
    %v3562 = vunpack.c.l.b16 %v2374
    %v3563 = vunpack.c.h.b16 %v2374
    %v3564 = vunpack.c.l.b16 %v2375
    %v3565 = vunpack.c.h.b16 %v2375
    %v3566 = vunpack.c.l.b16 %v2376
    %v3567 = vunpack.c.h.b16 %v2376
    %v3568 = vunpack.c.l.b16 %v2377
    %v3569 = vunpack.c.h.b16 %v2377
    %v3570 = vunpack.c.l.b16 %v2378
    %v3571 = vunpack.c.h.b16 %v2378
    %v3572 = vunpack.c.l.b16 %v2379
    %v3573 = vunpack.c.h.b16 %v2379
    %v3574 = vunpack.c.l.b16 %v2380
    %v3575 = vunpack.c.h.b16 %v2380
    %v3576 = vunpack.c.l.b16 %v2381
    %v3577 = vunpack.c.h.b16 %v2381
    %v3578 = vunpack.c.l.b16 %v2382
    %v3579 = vunpack.c.h.b16 %v2382
    %v3580 = vunpack.c.l.b16 %v2383
    %v3581 = vunpack.c.h.b16 %v2383
    %v3582 = vunpack.c.l.b16 %v2384
    %v3583 = vunpack.c.h.b16 %v2384
    %v3584 = vunpack.c.l.b16 %v2385
    %v3585 = vunpack.c.h.b16 %v2385
    %v3586 = vunpack.c.l.b16 %v2386
    %v3587 = vunpack.c.h.b16 %v2386
    %v3588 = vunpack.c.l.b16 %v2387
    %v3589 = vunpack.c.h.b16 %v2387
    %v3590 = vunpack.c.l.b16 %v2388
    %v3591 = vunpack.c.h.b16 %v2388
    %v3592 = vunpack.c.l.b16 %v2389
    %v3593 = vunpack.c.h.b16 %v2389
    %v3594 = vunpack.c.l.b16 %v2390
    %v3595 = vunpack.c.h.b16 %v2390
    %v3596 = vunpack.c.l.b16 %v2391
    %v3597 = vunpack.c.h.b16 %v2391
    %v3598 = vunpack.c.l.b16 %v2392
    %v3599 = vunpack.c.h.b16 %v2392
    %v3600 = vunpack.c.l.b16 %v2393
    %v3601 = vunpack.c.h.b16 %v2393
    %v3602 = vunpack.c.l.b16 %v2394
    %v3603 = vunpack.c.h.b16 %v2394
    %v3604 = vunpack.c.l.b16 %v2395
    %v3605 = vunpack.c.h.b16 %v2395
    %v3606 = vunpack.c.l.b16 %v2396
    %v3607 = vunpack.c.h.b16 %v2396
    %v3608 = vunpack.c.l.b16 %v2397
    %v3609 = vunpack.c.h.b16 %v2397
    %v3610 = vunpack.c.l.b16 %v2398
    %v3611 = vunpack.c.h.b16 %v2398
    %v3612 = vunpack.c.l.b16 %v2399
    %v3613 = vunpack.c.h.b16 %v2399
    %v3614 = vunpack.c.l.b16 %v2400
    %v3615 = vunpack.c.h.b16 %v2400
    %v3616 = vunpack.c.l.b16 %v2401
    %v3617 = vunpack.c.h.b16 %v2401
    %v3618 = vunpack.c.l.b16 %v2402
    %v3619 = vunpack.c.h.b16 %v2402
    %v3620 = vunpack.c.l.b16 %v2403
    %v3621 = vunpack.c.h.b16 %v2403
    %v3622 = vunpack.c.l.b16 %v2404
    %v3623 = vunpack.c.h.b16 %v2404
    %v3624 = vunpack.c.l.b16 %v2405
    %v3625 = vunpack.c.h.b16 %v2405
    %v3626 = vunpack.c.l.b16 %v2406
    %v3627 = vunpack.c.h.b16 %v2406
    %v3628 = vunpack.c.l.b16 %v2407
    %v3629 = vunpack.c.h.b16 %v2407
    %v3630 = vunpack.c.l.b16 %v2408
    %v3631 = vunpack.c.h.b16 %v2408
    %v3632 = vunpack.c.l.b16 %v2409
    %v3633 = vunpack.c.h.b16 %v2409
    %v3634 = vunpack.c.l.b16 %v2410
    %v3635 = vunpack.c.h.b16 %v2410
    %v3636 = vunpack.c.l.b16 %v2411
    %v3637 = vunpack.c.h.b16 %v2411
    %v3638 = vunpack.c.l.b16 %v2412
    %v3639 = vunpack.c.h.b16 %v2412
    %v3640 = vunpack.c.l.b16 %v2413
    %v3641 = vunpack.c.h.b16 %v2413
    %v3642 = vunpack.c.l.b16 %v2414
    %v3643 = vunpack.c.h.b16 %v2414
    %v3644 = vunpack.c.l.b16 %v2415
    %v3645 = vunpack.c.h.b16 %v2415
    %v3646 = vunpack.c.l.b16 %v2416
    %v3647 = vunpack.c.h.b16 %v2416
    %v3648 = vunpack.c.l.b16 %v2417
    %v3649 = vunpack.c.h.b16 %v2417
    %v3650 = vunpack.c.l.b16 %v2418
    %v3651 = vunpack.c.h.b16 %v2418
    %v3652 = vunpack.c.l.b16 %v2419
    %v3653 = vunpack.c.h.b16 %v2419
    %v3654 = vunpack.c.l.b16 %v2420
    %v3655 = vunpack.c.h.b16 %v2420
    %v3656 = vunpack.c.l.b16 %v2421
    %v3657 = vunpack.c.h.b16 %v2421
    %v3658 = vunpack.c.l.b16 %v2422
    %v3659 = vunpack.c.h.b16 %v2422
    %v3660 = vunpack.c.l.b16 %v2423
    %v3661 = vunpack.c.h.b16 %v2423
    %v3662 = vunpack.c.l.b16 %v2424
    %v3663 = vunpack.c.h.b16 %v2424
    %v3664 = vunpack.c.l.b16 %v2425
    %v3665 = vunpack.c.h.b16 %v2425
    %v3666 = vunpack.c.l.b16 %v2426
    %v3667 = vunpack.c.h.b16 %v2426
    %v3668 = vunpack.c.l.b16 %v2427
    %v3669 = vunpack.c.h.b16 %v2427
    %v3670 = vunpack.c.l.b16 %v2428
    %v3671 = vunpack.c.h.b16 %v2428
    %v3672 = vunpack.c.l.b16 %v2429
    %v3673 = vunpack.c.h.b16 %v2429
    %v3674 = vunpack.c.l.b16 %v2430
    %v3675 = vunpack.c.h.b16 %v2430
    %v3676 = vunpack.c.l.b16 %v2431
    %v3677 = vunpack.c.h.b16 %v2431
    %v3678 = vunpack.c.l.b16 %v2432
    %v3679 = vunpack.c.h.b16 %v2432
    %v3680 = vunpack.c.l.b16 %v2433
    %v3681 = vunpack.c.h.b16 %v2433
    %v3682 = vunpack.c.l.b16 %v2434
    %v3683 = vunpack.c.h.b16 %v2434
    %v3684 = vunpack.c.l.b16 %v2435
    %v3685 = vunpack.c.h.b16 %v2435
    %v3686 = vunpack.c.l.b16 %v2436
    %v3687 = vunpack.c.h.b16 %v2436
    %v3688 = vunpack.c.l.b16 %v2437
    %v3689 = vunpack.c.h.b16 %v2437
    %v3690 = vunpack.c.l.b16 %v2438
    %v3691 = vunpack.c.h.b16 %v2438
    %v3692 = vunpack.c.l.b16 %v2439
    %v3693 = vunpack.c.h.b16 %v2439
    %v3694 = vunpack.c.l.b16 %v2440
    %v3695 = vunpack.c.h.b16 %v2440
    %v3696 = vunpack.c.l.b16 %v2441
    %v3697 = vunpack.c.h.b16 %v2441
    %v3698 = vunpack.c.l.b16 %v2442
    %v3699 = vunpack.c.h.b16 %v2442
    %v3700 = vunpack.c.l.b16 %v2443
    %v3701 = vunpack.c.h.b16 %v2443
    %v3702 = vunpack.c.l.b16 %v2444
    %v3703 = vunpack.c.h.b16 %v2444
    %v3704 = vunpack.c.l.b16 %v2445
    %v3705 = vunpack.c.h.b16 %v2445
    %v3706 = vunpack.c.l.b16 %v2446
    %v3707 = vunpack.c.h.b16 %v2446
    %v3708 = vunpack.c.l.b16 %v2447
    %v3709 = vunpack.c.h.b16 %v2447
    %v3710 = vunpack.c.l.b16 %v2448
    %v3711 = vunpack.c.h.b16 %v2448
    %v3712 = vunpack.c.l.b16 %v2449
    %v3713 = vunpack.c.h.b16 %v2449
    %v3714 = vunpack.c.l.b16 %v2450
    %v3715 = vunpack.c.h.b16 %v2450
    %v3716 = vunpack.c.l.b16 %v2451
    %v3717 = vunpack.c.h.b16 %v2451
    %v3718 = vunpack.c.l.b16 %v2452
    %v3719 = vunpack.c.h.b16 %v2452
    %v3720 = vunpack.c.l.b16 %v2453
    %v3721 = vunpack.c.h.b16 %v2453
    %v3722 = vunpack.c.l.b16 %v2454
    %v3723 = vunpack.c.h.b16 %v2454
    %v3724 = vunpack.c.l.b16 %v2455
    %v3725 = vunpack.c.h.b16 %v2455
    %v3726 = vunpack.c.l.b16 %v2456
    %v3727 = vunpack.c.h.b16 %v2456
    %v3728 = vunpack.c.l.b16 %v2457
    %v3729 = vunpack.c.h.b16 %v2457
    %v3730 = vunpack.c.l.b16 %v2458
    %v3731 = vunpack.c.h.b16 %v2458
    %v3732 = vunpack.c.l.b16 %v2459
    %v3733 = vunpack.c.h.b16 %v2459
    %v3734 = vunpack.c.l.b16 %v2460
    %v3735 = vunpack.c.h.b16 %v2460
    %v3736 = vunpack.c.l.b16 %v2461
    %v3737 = vunpack.c.h.b16 %v2461
    %v3738 = vunpack.c.l.b16 %v2462
    %v3739 = vunpack.c.h.b16 %v2462
    %v3740 = vunpack.c.l.b16 %v2463
    %v3741 = vunpack.c.h.b16 %v2463
    %v3742 = vunpack.c.l.b16 %v2464
    %v3743 = vunpack.c.h.b16 %v2464
    %v3744 = vunpack.c.l.b16 %v2465
    %v3745 = vunpack.c.h.b16 %v2465
    %v3746 = vunpack.c.l.b16 %v2466
    %v3747 = vunpack.c.h.b16 %v2466
    %v3748 = vunpack.c.l.b16 %v2467
    %v3749 = vunpack.c.h.b16 %v2467
    %v3750 = vunpack.c.l.b16 %v2468
    %v3751 = vunpack.c.h.b16 %v2468
    %v3752 = vunpack.c.l.b16 %v2469
    %v3753 = vunpack.c.h.b16 %v2469
    %v3754 = vunpack.c.l.b16 %v2470
    %v3755 = vunpack.c.h.b16 %v2470
    %v3756 = vunpack.c.l.b16 %v2471
    %v3757 = vunpack.c.h.b16 %v2471
    %v3758 = vunpack.c.l.b16 %v2472
    %v3759 = vunpack.c.h.b16 %v2472
    %v3760 = vunpack.c.l.b16 %v2473
    %v3761 = vunpack.c.h.b16 %v2473
    %v3762 = vunpack.c.l.b16 %v2474
    %v3763 = vunpack.c.h.b16 %v2474
    %v3764 = vunpack.c.l.b16 %v2475
    %v3765 = vunpack.c.h.b16 %v2475
    %v3766 = vunpack.c.l.b16 %v2476
    %v3767 = vunpack.c.h.b16 %v2476
    %v3768 = vunpack.c.l.b16 %v2477
    %v3769 = vunpack.c.h.b16 %v2477
    %v3770 = vunpack.c.l.b16 %v2478
    %v3771 = vunpack.c.h.b16 %v2478
    %v3772 = vunpack.c.l.b16 %v2479
    %v3773 = vunpack.c.h.b16 %v2479
    %v3774 = vunpack.c.l.b16 %v2480
    %v3775 = vunpack.c.h.b16 %v2480
    %v3776 = vunpack.c.l.b16 %v2481
    %v3777 = vunpack.c.h.b16 %v2481
    %v3778 = vunpack.c.l.b16 %v2482
    %v3779 = vunpack.c.h.b16 %v2482
    %v3780 = vunpack.c.l.b16 %v2483
    %v3781 = vunpack.c.h.b16 %v2483
    %v3782 = vunpack.c.l.b16 %v2484
    %v3783 = vunpack.c.h.b16 %v2484
    %v3784 = vunpack.c.l.b16 %v2485
    %v3785 = vunpack.c.h.b16 %v2485
    %v3786 = vunpack.c.l.b16 %v2486
    %v3787 = vunpack.c.h.b16 %v2486
    %v3788 = vunpack.c.l.b16 %v2487
    %v3789 = vunpack.c.h.b16 %v2487
    %v3790 = vunpack.c.l.b16 %v2488
    %v3791 = vunpack.c.h.b16 %v2488
    %v3792 = vunpack.c.l.b16 %v2489
    %v3793 = vunpack.c.h.b16 %v2489
    %v3794 = vunpack.c.l.b16 %v2490
    %v3795 = vunpack.c.h.b16 %v2490
    %v3796 = vunpack.c.l.b16 %v2491
    %v3797 = vunpack.c.h.b16 %v2491
    %v3798 = vunpack.c.l.b16 %v2492
    %v3799 = vunpack.c.h.b16 %v2492
    %v3800 = vunpack.c.l.b16 %v2493
    %v3801 = vunpack.c.h.b16 %v2493
    %v3802 = vunpack.c.l.b16 %v2494
    %v3803 = vunpack.c.h.b16 %v2494
    %v3804 = vunpack.c.l.b16 %v2495
    %v3805 = vunpack.c.h.b16 %v2495
    %v3806 = vunpack.c.l.b16 %v2496
    %v3807 = vunpack.c.h.b16 %v2496
    %v3808 = vunpack.c.l.b16 %v2497
    %v3809 = vunpack.c.h.b16 %v2497
    %v3810 = vunpack.c.l.b16 %v2498
    %v3811 = vunpack.c.h.b16 %v2498
    %v3812 = vunpack.c.l.b16 %v2499
    %v3813 = vunpack.c.h.b16 %v2499
    %v3814 = vunpack.c.l.b16 %v2500
    %v3815 = vunpack.c.h.b16 %v2500
    %v3816 = vunpack.c.l.b16 %v2501
    %v3817 = vunpack.c.h.b16 %v2501
    %v3818 = vunpack.c.l.b16 %v2502
    %v3819 = vunpack.c.h.b16 %v2502
    %v3820 = vunpack.c.l.b16 %v2503
    %v3821 = vunpack.c.h.b16 %v2503
    %v3822 = vunpack.c.l.b16 %v2504
    %v3823 = vunpack.c.h.b16 %v2504
    %v3824 = vunpack.c.l.b16 %v2505
    %v3825 = vunpack.c.h.b16 %v2505
    %v3826 = vunpack.c.l.b16 %v2506
    %v3827 = vunpack.c.h.b16 %v2506
    %v3828 = vunpack.c.l.b16 %v2507
    %v3829 = vunpack.c.h.b16 %v2507
    %v3830 = vunpack.c.l.b16 %v2508
    %v3831 = vunpack.c.h.b16 %v2508
    %v3832 = vunpack.c.l.b16 %v2509
    %v3833 = vunpack.c.h.b16 %v2509
    %v3834 = vunpack.c.l.b16 %v2510
    %v3835 = vunpack.c.h.b16 %v2510
    %v3836 = vunpack.c.l.b16 %v2511
    %v3837 = vunpack.c.h.b16 %v2511
    %v3838 = vunpack.c.l.b16 %v2512
    %v3839 = vunpack.c.h.b16 %v2512
    %v3840 = vunpack.c.l.b16 %v2513
    %v3841 = vunpack.c.h.b16 %v2513
    %v3842 = vunpack.c.l.b16 %v2514
    %v3843 = vunpack.c.h.b16 %v2514
    %v3844 = vunpack.c.l.b16 %v2515
    %v3845 = vunpack.c.h.b16 %v2515
    %v3846 = vunpack.c.l.b16 %v2516
    %v3847 = vunpack.c.h.b16 %v2516
    %v3848 = vunpack.c.l.b16 %v2517
    %v3849 = vunpack.c.h.b16 %v2517
    %v3850 = vunpack.c.l.b16 %v2518
    %v3851 = vunpack.c.h.b16 %v2518
    %v3852 = vunpack.c.l.b16 %v2519
    %v3853 = vunpack.c.h.b16 %v2519
    %v3854 = vunpack.c.l.b16 %v2520
    %v3855 = vunpack.c.h.b16 %v2520
    %v3856 = vunpack.c.l.b16 %v2521
    %v3857 = vunpack.c.h.b16 %v2521
    %v3858 = vunpack.c.l.b16 %v2522
    %v3859 = vunpack.c.h.b16 %v2522
    %v3860 = vunpack.c.l.b16 %v2523
    %v3861 = vunpack.c.h.b16 %v2523
    %v3862 = vunpack.c.l.b16 %v2524
    %v3863 = vunpack.c.h.b16 %v2524
    %v3864 = vunpack.c.l.b16 %v2525
    %v3865 = vunpack.c.h.b16 %v2525
    %v3866 = vunpack.c.l.b16 %v2526
    %v3867 = vunpack.c.h.b16 %v2526
    %v3868 = vunpack.c.l.b16 %v2527
    %v3869 = vunpack.c.h.b16 %v2527
    %v3870 = vunpack.c.l.b16 %v2528
    %v3871 = vunpack.c.h.b16 %v2528
    %v3872 = vunpack.c.l.b16 %v2529
    %v3873 = vunpack.c.h.b16 %v2529
    %v3874 = vunpack.c.l.b16 %v2530
    %v3875 = vunpack.c.h.b16 %v2530
    %v3876 = vunpack.c.l.b16 %v2531
    %v3877 = vunpack.c.h.b16 %v2531
    %v3878 = vunpack.c.l.b16 %v2532
    %v3879 = vunpack.c.h.b16 %v2532
    %v3880 = vunpack.c.l.b16 %v2533
    %v3881 = vunpack.c.h.b16 %v2533
    %v3882 = vunpack.c.l.b16 %v2534
    %v3883 = vunpack.c.h.b16 %v2534
    %v3884 = vunpack.c.l.b16 %v2535
    %v3885 = vunpack.c.h.b16 %v2535
    %v3886 = vunpack.c.l.b16 %v2536
    %v3887 = vunpack.c.h.b16 %v2536
    %v3888 = vunpack.c.l.b16 %v2537
    %v3889 = vunpack.c.h.b16 %v2537
    %v3890 = vunpack.c.l.b16 %v2538
    %v3891 = vunpack.c.h.b16 %v2538
    %v3892 = vunpack.c.l.b16 %v2539
    %v3893 = vunpack.c.h.b16 %v2539
    %v3894 = vunpack.c.l.b16 %v2540
    %v3895 = vunpack.c.h.b16 %v2540
    %v3896 = vunpack.c.l.b16 %v2541
    %v3897 = vunpack.c.h.b16 %v2541
    %v3898 = vunpack.c.l.b16 %v2542
    %v3899 = vunpack.c.h.b16 %v2542
    %v3900 = vunpack.c.l.b16 %v2543
    %v3901 = vunpack.c.h.b16 %v2543
    %v3902 = vunpack.c.l.b16 %v2544
    %v3903 = vunpack.c.h.b16 %v2544
    %v3904 = vunpack.c.l.b16 %v2545
    %v3905 = vunpack.c.h.b16 %v2545
    %v3906 = vunpack.c.l.b16 %v2546
    %v3907 = vunpack.c.h.b16 %v2546
    %v3908 = vunpack.c.l.b16 %v2547
    %v3909 = vunpack.c.h.b16 %v2547
    %v3910 = vunpack.c.l.b16 %v2548
    %v3911 = vunpack.c.h.b16 %v2548
    %v3912 = vunpack.c.l.b16 %v2549
    %v3913 = vunpack.c.h.b16 %v2549
    %v3914 = vunpack.c.l.b16 %v2550
    %v3915 = vunpack.c.h.b16 %v2550
    %v3916 = vunpack.c.l.b16 %v2551
    %v3917 = vunpack.c.h.b16 %v2551
    %v3918 = vunpack.c.l.b16 %v2552
    %v3919 = vunpack.c.h.b16 %v2552
    %v3920 = vunpack.c.l.b16 %v2553
    %v3921 = vunpack.c.h.b16 %v2553
    %v3922 = vunpack.c.l.b16 %v2554
    %v3923 = vunpack.c.h.b16 %v2554
    %v3924 = vunpack.c.l.b16 %v2555
    %v3925 = vunpack.c.h.b16 %v2555
    %v3926 = vunpack.c.l.b16 %v2556
    %v3927 = vunpack.c.h.b16 %v2556
    %v3928 = vunpack.c.l.b16 %v2557
    %v3929 = vunpack.c.h.b16 %v2557
    %v3930 = vunpack.c.l.b16 %v2558
    %v3931 = vunpack.c.h.b16 %v2558
    %v3932 = vunpack.c.l.b16 %v2559
    %v3933 = vunpack.c.h.b16 %v2559
    %v3934 = vunpack.c.l.b16 %v2560
    %v3935 = vunpack.c.h.b16 %v2560
    %v3936 = vunpack.c.l.b16 %v2561
    %v3937 = vunpack.c.h.b16 %v2561
    %v3938 = vunpack.c.l.b16 %v2562
    %v3939 = vunpack.c.h.b16 %v2562
    %v3940 = vunpack.c.l.b16 %v2563
    %v3941 = vunpack.c.h.b16 %v2563
    %v3942 = vunpack.c.l.b16 %v2564
    %v3943 = vunpack.c.h.b16 %v2564
    %v3944 = vunpack.c.l.b16 %v2565
    %v3945 = vunpack.c.h.b16 %v2565
    %v3946 = vunpack.c.l.b16 %v2566
    %v3947 = vunpack.c.h.b16 %v2566
    %v3948 = vunpack.c.l.b16 %v2567
    %v3949 = vunpack.c.h.b16 %v2567
    %v3950 = vunpack.c.l.b16 %v2568
    %v3951 = vunpack.c.h.b16 %v2568
    %v3952 = vunpack.c.l.b16 %v2569
    %v3953 = vunpack.c.h.b16 %v2569
    %v3954 = vunpack.c.l.b16 %v2570
    %v3955 = vunpack.c.h.b16 %v2570
    %v3956 = vunpack.c.l.b16 %v2571
    %v3957 = vunpack.c.h.b16 %v2571
    %v3958 = vunpack.c.l.b16 %v2572
    %v3959 = vunpack.c.h.b16 %v2572
    %v3960 = vunpack.c.l.b16 %v2573
    %v3961 = vunpack.c.h.b16 %v2573
    %v3962 = vunpack.c.l.b16 %v2574
    %v3963 = vunpack.c.h.b16 %v2574
    %v3964 = vunpack.c.l.b16 %v2575
    %v3965 = vunpack.c.h.b16 %v2575
    %v3966 = vunpack.c.l.b16 %v2576
    %v3967 = vunpack.c.h.b16 %v2576
    %v3968 = vunpack.c.l.b16 %v2577
    %v3969 = vunpack.c.h.b16 %v2577
    %v3970 = vunpack.c.l.b16 %v2578
    %v3971 = vunpack.c.h.b16 %v2578
    %v3972 = vunpack.c.l.b16 %v2579
    %v3973 = vunpack.c.h.b16 %v2579
    %v3974 = vunpack.c.l.b16 %v2580
    %v3975 = vunpack.c.h.b16 %v2580
    %v3976 = vunpack.c.l.b16 %v2581
    %v3977 = vunpack.c.h.b16 %v2581
    %v3978 = vunpack.c.l.b16 %v2582
    %v3979 = vunpack.c.h.b16 %v2582
    %v3980 = vunpack.c.l.b16 %v2583
    %v3981 = vunpack.c.h.b16 %v2583
    %v3982 = vunpack.c.l.b16 %v2584
    %v3983 = vunpack.c.h.b16 %v2584
    %v3984 = vunpack.c.l.b16 %v2585
    %v3985 = vunpack.c.h.b16 %v2585
    %v3986 = vunpack.c.l.b16 %v2586
    %v3987 = vunpack.c.h.b16 %v2586
    %v3988 = vunpack.c.l.b16 %v2587
    %v3989 = vunpack.c.h.b16 %v2587
    %v3990 = vunpack.c.l.b16 %v2588
    %v3991 = vunpack.c.h.b16 %v2588
    %v3992 = vunpack.c.l.b16 %v2589
    %v3993 = vunpack.c.h.b16 %v2589
    %v3994 = vunpack.c.l.b16 %v2590
    %v3995 = vunpack.c.h.b16 %v2590
    %v3996 = vunpack.c.l.b16 %v2591
    %v3997 = vunpack.c.h.b16 %v2591
    %v3998 = vunpack.c.l.b16 %v2592
    %v3999 = vunpack.c.h.b16 %v2592
    %v4000 = vunpack.c.l.b16 %v2593
    %v4001 = vunpack.c.h.b16 %v2593
    %v4002 = vunpack.c.l.b16 %v2594
    %v4003 = vunpack.c.h.b16 %v2594
    %v4004 = vunpack.c.l.b16 %v2595
    %v4005 = vunpack.c.h.b16 %v2595
    %v4006 = vunpack.c.l.b16 %v2596
    %v4007 = vunpack.c.h.b16 %v2596
    %v4008 = vunpack.c.l.b16 %v2597
    %v4009 = vunpack.c.h.b16 %v2597
    %v4010 = vunpack.c.l.b16 %v2598
    %v4011 = vunpack.c.h.b16 %v2598
    %v4012 = vunpack.c.l.b16 %v2599
    %v4013 = vunpack.c.h.b16 %v2599
    %v4014 = vunpack.c.l.b16 %v2600
    %v4015 = vunpack.c.h.b16 %v2600
    %v4016 = vunpack.c.l.b16 %v2601
    %v4017 = vunpack.c.h.b16 %v2601
    %v4018 = vunpack.c.l.b16 %v2602
    %v4019 = vunpack.c.h.b16 %v2602
    %v4020 = vunpack.c.l.b16 %v2603
    %v4021 = vunpack.c.h.b16 %v2603
    %v4022 = vunpack.c.l.b16 %v2604
    %v4023 = vunpack.c.h.b16 %v2604
    %v4024 = vunpack.c.l.b16 %v2605
    %v4025 = vunpack.c.h.b16 %v2605
    %v4026 = vunpack.c.l.b16 %v2606
    %v4027 = vunpack.c.h.b16 %v2606
    %v4028 = vunpack.c.l.b16 %v2607
    %v4029 = vunpack.c.h.b16 %v2607
    %v4030 = vunpack.c.l.b16 %v2608
    %v4031 = vunpack.c.h.b16 %v2608
    %v4032 = vunpack.c.l.b16 %v2609
    %v4033 = vunpack.c.h.b16 %v2609
    %v4034 = vunpack.c.l.b16 %v2610
    %v4035 = vunpack.c.h.b16 %v2610
    %v4036 = vunpack.c.l.b16 %v2611
    %v4037 = vunpack.c.h.b16 %v2611
    %v4038 = vunpack.c.l.b16 %v2612
    %v4039 = vunpack.c.h.b16 %v2612
    %v4040 = vunpack.c.l.b16 %v2613
    %v4041 = vunpack.c.h.b16 %v2613
    %v4042 = vunpack.c.l.b16 %v2614
    %v4043 = vunpack.c.h.b16 %v2614
    %v4044 = vunpack.c.l.b16 %v2615
    %v4045 = vunpack.c.h.b16 %v2615
    %v4046 = vunpack.c.l.b16 %v2616
    %v4047 = vunpack.c.h.b16 %v2616
    %v4048 = vunpack.c.l.b16 %v2617
    %v4049 = vunpack.c.h.b16 %v2617
    %v4050 = vunpack.c.l.b16 %v2618
    %v4051 = vunpack.c.h.b16 %v2618
    %v4052 = vunpack.c.l.b16 %v2619
    %v4053 = vunpack.c.h.b16 %v2619
    %v4054 = vunpack.c.l.b16 %v2620
    %v4055 = vunpack.c.h.b16 %v2620
    %v4056 = vunpack.c.l.b16 %v2621
    %v4057 = vunpack.c.h.b16 %v2621
    %v4058 = vunpack.c.l.b16 %v2622
    %v4059 = vunpack.c.h.b16 %v2622
    %v4060 = vunpack.c.l.b16 %v2623
    %v4061 = vunpack.c.h.b16 %v2623
    %v4062 = vunpack.c.l.b16 %v2624
    %v4063 = vunpack.c.h.b16 %v2624
    %v4064 = vunpack.c.l.b16 %v2625
    %v4065 = vunpack.c.h.b16 %v2625
    %v4066 = vunpack.c.l.b16 %v2626
    %v4067 = vunpack.c.h.b16 %v2626
    %v4068 = vunpack.c.l.b16 %v2627
    %v4069 = vunpack.c.h.b16 %v2627
    %v4070 = vunpack.c.l.b16 %v2628
    %v4071 = vunpack.c.h.b16 %v2628
    %v4072 = vunpack.c.l.b16 %v2629
    %v4073 = vunpack.c.h.b16 %v2629
    %v4074 = vunpack.c.l.b16 %v2630
    %v4075 = vunpack.c.h.b16 %v2630
    %v4076 = vunpack.c.l.b16 %v2631
    %v4077 = vunpack.c.h.b16 %v2631
    %v4078 = vunpack.c.l.b16 %v2632
    %v4079 = vunpack.c.h.b16 %v2632
    %v4080 = vunpack.c.l.b16 %v2633
    %v4081 = vunpack.c.h.b16 %v2633
    %v4082 = vunpack.c.l.b16 %v2634
    %v4083 = vunpack.c.h.b16 %v2634
    %v4084 = vunpack.c.l.b16 %v2635
    %v4085 = vunpack.c.h.b16 %v2635
    %v4086 = vunpack.c.l.b16 %v2636
    %v4087 = vunpack.c.h.b16 %v2636
    %v4088 = vunpack.c.l.b16 %v2637
    %v4089 = vunpack.c.h.b16 %v2637
    %v4090 = vunpack.c.l.b16 %v2638
    %v4091 = vunpack.c.h.b16 %v2638
    %v4092 = vunpack.c.l.b16 %v2639
    %v4093 = vunpack.c.h.b16 %v2639
    %v4094 = vunpack.c.l.b16 %v2640
    %v4095 = vunpack.c.h.b16 %v2640
    %v4096 = vunpack.c.l.b16 %v2641
    %v4097 = vunpack.c.h.b16 %v2641
    %v4098 = vunpack.c.l.b16 %v2642
    %v4099 = vunpack.c.h.b16 %v2642
    %v4100 = vunpack.c.l.b16 %v2643
    %v4101 = vunpack.c.h.b16 %v2643
    %v4102 = vunpack.c.l.b16 %v2644
    %v4103 = vunpack.c.h.b16 %v2644
    %v4104 = vunpack.c.l.b16 %v2645
    %v4105 = vunpack.c.h.b16 %v2645
    %v4106 = vunpack.c.l.b16 %v2646
    %v4107 = vunpack.c.h.b16 %v2646
    %v4108 = vunpack.c.l.b16 %v2647
    %v4109 = vunpack.c.h.b16 %v2647
    %v4110 = vunpack.c.l.b16 %v2648
    %v4111 = vunpack.c.h.b16 %v2648
    %v4112 = vunpack.c.l.b16 %v2649
    %v4113 = vunpack.c.h.b16 %v2649
    %v4114 = vunpack.c.l.b16 %v2650
    %v4115 = vunpack.c.h.b16 %v2650
    %v4116 = vunpack.c.l.b16 %v2651
    %v4117 = vunpack.c.h.b16 %v2651
    %v4118 = vunpack.c.l.b16 %v2652
    %v4119 = vunpack.c.h.b16 %v2652
    %v4120 = vunpack.c.l.b16 %v2653
    %v4121 = vunpack.c.h.b16 %v2653
    %v4122 = vunpack.c.l.b16 %v2654
    %v4123 = vunpack.c.h.b16 %v2654
    %v4124 = vunpack.c.l.b16 %v2655
    %v4125 = vunpack.c.h.b16 %v2655
    %v4126 = vunpack.c.l.b16 %v2656
    %v4127 = vunpack.c.h.b16 %v2656
    %v4128 = vunpack.c.l.b16 %v2657
    %v4129 = vunpack.c.h.b16 %v2657
    %v4130 = vunpack.c.l.b16 %v2658
    %v4131 = vunpack.c.h.b16 %v2658
    %v4132 = vunpack.c.l.b16 %v2659
    %v4133 = vunpack.c.h.b16 %v2659
    %v4134 = vunpack.c.l.b16 %v2660
    %v4135 = vunpack.c.h.b16 %v2660
    %v4136 = vunpack.c.l.b16 %v2661
    %v4137 = vunpack.c.h.b16 %v2661
    %v4138 = vunpack.c.l.b16 %v2662
    %v4139 = vunpack.c.h.b16 %v2662
    %v4140 = vunpack.c.l.b16 %v2663
    %v4141 = vunpack.c.h.b16 %v2663
    %v4142 = vunpack.c.l.b16 %v2664
    %v4143 = vunpack.c.h.b16 %v2664
    %v4144 = vunpack.c.l.b16 %v2665
    %v4145 = vunpack.c.h.b16 %v2665
    %v4146 = vunpack.c.l.b16 %v2666
    %v4147 = vunpack.c.h.b16 %v2666
    %v4148 = vunpack.c.l.b16 %v2667
    %v4149 = vunpack.c.h.b16 %v2667
    %v4150 = vunpack.c.l.b16 %v2668
    %v4151 = vunpack.c.h.b16 %v2668
    %v4152 = vunpack.c.l.b16 %v2669
    %v4153 = vunpack.c.h.b16 %v2669
    %v4154 = vunpack.c.l.b16 %v2670
    %v4155 = vunpack.c.h.b16 %v2670
    %v4156 = vunpack.c.l.b16 %v2671
    %v4157 = vunpack.c.h.b16 %v2671
    %v4158 = vunpack.c.l.b16 %v2672
    %v4159 = vunpack.c.h.b16 %v2672
    %v4160 = vunpack.c.l.b16 %v2673
    %v4161 = vunpack.c.h.b16 %v2673
    %v4162 = vunpack.c.l.b16 %v2674
    %v4163 = vunpack.c.h.b16 %v2674
    %v4164 = vunpack.c.l.b16 %v2675
    %v4165 = vunpack.c.h.b16 %v2675
    %v4166 = vunpack.c.l.b16 %v2676
    %v4167 = vunpack.c.h.b16 %v2676
    %v4168 = vunpack.c.l.b16 %v2677
    %v4169 = vunpack.c.h.b16 %v2677
    %v4170 = vunpack.c.l.b16 %v2678
    %v4171 = vunpack.c.h.b16 %v2678
    %v4172 = vunpack.c.l.b16 %v2679
    %v4173 = vunpack.c.h.b16 %v2679
    %v4174 = vunpack.c.l.b16 %v2680
    %v4175 = vunpack.c.h.b16 %v2680
    %v4176 = vunpack.c.l.b16 %v2681
    %v4177 = vunpack.c.h.b16 %v2681
    %v4178 = vunpack.c.l.b16 %v2682
    %v4179 = vunpack.c.h.b16 %v2682
    %v4180 = vunpack.c.l.b16 %v2683
    %v4181 = vunpack.c.h.b16 %v2683
    %v4182 = vunpack.c.l.b16 %v2684
    %v4183 = vunpack.c.h.b16 %v2684
    %v4184 = vunpack.c.l.b16 %v2685
    %v4185 = vunpack.c.h.b16 %v2685
    %v4186 = vunpack.c.l.b16 %v2686
    %v4187 = vunpack.c.h.b16 %v2686
    %v4188 = vunpack.c.l.b16 %v2687
    %v4189 = vunpack.c.h.b16 %v2687
    %v4190 = vunpack.c.l.b16 %v2688
    %v4191 = vunpack.c.h.b16 %v2688
    %v4192 = vunpack.c.l.b16 %v2689
    %v4193 = vunpack.c.h.b16 %v2689
    %v4194 = vunpack.c.l.b16 %v2690
    %v4195 = vunpack.c.h.b16 %v2690
    %v4196 = vunpack.c.l.b16 %v2691
    %v4197 = vunpack.c.h.b16 %v2691
    %v4198 = vunpack.c.l.b16 %v2692
    %v4199 = vunpack.c.h.b16 %v2692
    %v4200 = vunpack.c.l.b16 %v2693
    %v4201 = vunpack.c.h.b16 %v2693
    %v4202 = vunpack.c.l.b16 %v2694
    %v4203 = vunpack.c.h.b16 %v2694
    %v4204 = vunpack.c.l.b16 %v2695
    %v4205 = vunpack.c.h.b16 %v2695
    %v4206 = vunpack.c.l.b16 %v2696
    %v4207 = vunpack.c.h.b16 %v2696
    %v4208 = vunpack.c.l.b16 %v2697
    %v4209 = vunpack.c.h.b16 %v2697
    %v4210 = vunpack.c.l.b16 %v2698
    %v4211 = vunpack.c.h.b16 %v2698
    %v4212 = vunpack.c.l.b16 %v2699
    %v4213 = vunpack.c.h.b16 %v2699
    %v4214 = vunpack.c.l.b16 %v2700
    %v4215 = vunpack.c.h.b16 %v2700
    %v4216 = vunpack.c.l.b16 %v2701
    %v4217 = vunpack.c.h.b16 %v2701
    %v4218 = vunpack.c.l.b16 %v2702
    %v4219 = vunpack.c.h.b16 %v2702
    %v4220 = vunpack.c.l.b16 %v2703
    %v4221 = vunpack.c.h.b16 %v2703
    %v4222 = vunpack.c.l.b16 %v2704
    %v4223 = vunpack.c.h.b16 %v2704
    %v4224 = vunpack.c.l.b16 %v2705
    %v4225 = vunpack.c.h.b16 %v2705
    %v4226 = vunpack.c.l.b16 %v2706
    %v4227 = vunpack.c.h.b16 %v2706
    %v4228 = vunpack.c.l.b16 %v2707
    %v4229 = vunpack.c.h.b16 %v2707
    %v4230 = vunpack.c.l.b16 %v2708
    %v4231 = vunpack.c.h.b16 %v2708
    %v4232 = vunpack.c.l.b16 %v2709
    %v4233 = vunpack.c.h.b16 %v2709
    %v4234 = vunpack.c.l.b16 %v2710
    %v4235 = vunpack.c.h.b16 %v2710
    %v4236 = vunpack.c.l.b16 %v2711
    %v4237 = vunpack.c.h.b16 %v2711
    %v4238 = vunpack.c.l.b16 %v2712
    %v4239 = vunpack.c.h.b16 %v2712
    %v4240 = vunpack.c.l.b16 %v2713
    %v4241 = vunpack.c.h.b16 %v2713
    %v4242 = vunpack.c.l.b16 %v2714
    %v4243 = vunpack.c.h.b16 %v2714
    %v4244 = vunpack.c.l.b16 %v2715
    %v4245 = vunpack.c.h.b16 %v2715
    %v4246 = vunpack.c.l.b16 %v2716
    %v4247 = vunpack.c.h.b16 %v2716
    %v4248 = vunpack.c.l.b16 %v2717
    %v4249 = vunpack.c.h.b16 %v2717
    %v4250 = vunpack.c.l.b16 %v2718
    %v4251 = vunpack.c.h.b16 %v2718
    %v4252 = vunpack.c.l.b16 %v2719
    %v4253 = vunpack.c.h.b16 %v2719
    %v4254 = vunpack.c.l.b16 %v2720
    %v4255 = vunpack.c.h.b16 %v2720
    %v4256 = vunpack.c.l.b16 %v2721
    %v4257 = vunpack.c.h.b16 %v2721
    %v4258 = vunpack.c.l.b16 %v2722
    %v4259 = vunpack.c.h.b16 %v2722
    %v4260 = vunpack.c.l.b16 %v2723
    %v4261 = vunpack.c.h.b16 %v2723
    %v4262 = vunpack.c.l.b16 %v2724
    %v4263 = vunpack.c.h.b16 %v2724
    %v4264 = vunpack.c.l.b16 %v2725
    %v4265 = vunpack.c.h.b16 %v2725
    %v4266 = vunpack.c.l.b16 %v2726
    %v4267 = vunpack.c.h.b16 %v2726
    %v4268 = vunpack.c.l.b16 %v2727
    %v4269 = vunpack.c.h.b16 %v2727
    %v4270 = vunpack.c.l.b16 %v2728
    %v4271 = vunpack.c.h.b16 %v2728
    %v4272 = vunpack.c.l.b16 %v2729
    %v4273 = vunpack.c.h.b16 %v2729
    %v4274 = vunpack.c.l.b16 %v2730
    %v4275 = vunpack.c.h.b16 %v2730
    %v4276 = vunpack.c.l.b16 %v2731
    %v4277 = vunpack.c.h.b16 %v2731
    %v4278 = vunpack.c.l.b16 %v2732
    %v4279 = vunpack.c.h.b16 %v2732
    %v4280 = vunpack.c.l.b16 %v2733
    %v4281 = vunpack.c.h.b16 %v2733
    %v4282 = vunpack.c.l.b16 %v2734
    %v4283 = vunpack.c.h.b16 %v2734
    %v4284 = vunpack.c.l.b16 %v2735
    %v4285 = vunpack.c.h.b16 %v2735
    %v4286 = vunpack.c.l.b16 %v2736
    %v4287 = vunpack.c.h.b16 %v2736
    %v4288 = vunpack.c.l.b16 %v2737
    %v4289 = vunpack.c.h.b16 %v2737
    %v4290 = vunpack.c.l.b16 %v2738
    %v4291 = vunpack.c.h.b16 %v2738
    %v4292 = vunpack.c.l.b16 %v2739
    %v4293 = vunpack.c.h.b16 %v2739
    %v4294 = vunpack.c.l.b16 %v2740
    %v4295 = vunpack.c.h.b16 %v2740
    %v4296 = vunpack.c.l.b16 %v2741
    %v4297 = vunpack.c.h.b16 %v2741
    %v4298 = vunpack.c.l.b16 %v2742
    %v4299 = vunpack.c.h.b16 %v2742
    %v4300 = vunpack.c.l.b16 %v2743
    %v4301 = vunpack.c.h.b16 %v2743
    %v4302 = vunpack.c.l.b16 %v2744
    %v4303 = vunpack.c.h.b16 %v2744
    %v4304 = vunpack.c.l.b16 %v2745
    %v4305 = vunpack.c.h.b16 %v2745
    %v4306 = vunpack.c.l.b16 %v2746
    %v4307 = vunpack.c.h.b16 %v2746
    %v4308 = vunpack.c.l.b16 %v2747
    %v4309 = vunpack.c.h.b16 %v2747
    %v4310 = vunpack.c.l.b16 %v2748
    %v4311 = vunpack.c.h.b16 %v2748
    %v4312 = vunpack.c.l.b16 %v2749
    %v4313 = vunpack.c.h.b16 %v2749
    %v4314 = vunpack.c.l.b16 %v2750
    %v4315 = vunpack.c.h.b16 %v2750
    %v4316 = vunpack.c.l.b16 %v2751
    %v4317 = vunpack.c.h.b16 %v2751
    %v4318 = vunpack.c.l.b16 %v2752
    %v4319 = vunpack.c.h.b16 %v2752
    %v4320 = vunpack.c.l.b16 %v2753
    %v4321 = vunpack.c.h.b16 %v2753
    %v4322 = vunpack.c.l.b16 %v2754
    %v4323 = vunpack.c.h.b16 %v2754
    %v4324 = vunpack.c.l.b16 %v2755
    %v4325 = vunpack.c.h.b16 %v2755
    %v4326 = vunpack.c.l.b16 %v2756
    %v4327 = vunpack.c.h.b16 %v2756
    %v4328 = vunpack.c.l.b16 %v2757
    %v4329 = vunpack.c.h.b16 %v2757
    %v4330 = vunpack.c.l.b16 %v2758
    %v4331 = vunpack.c.h.b16 %v2758
    %v4332 = vunpack.c.l.b16 %v2759
    %v4333 = vunpack.c.h.b16 %v2759
    %v4334 = vunpack.c.l.b16 %v2760
    %v4335 = vunpack.c.h.b16 %v2760
    %v4336 = vunpack.c.l.b16 %v2761
    %v4337 = vunpack.c.h.b16 %v2761
    %v4338 = vunpack.c.l.b16 %v2762
    %v4339 = vunpack.c.h.b16 %v2762
    %v4340 = vunpack.c.l.b16 %v2763
    %v4341 = vunpack.c.h.b16 %v2763
    %v4342 = vpack.c.b16 %v3326, %v3318
    %v4343 = vpack.c.b16 %v3327, %v3319
    %v4344 = vpack.c.b16 %v3328, %v3320
    %v4345 = vpack.c.b16 %v3329, %v3321
    %v4346 = vpack.c.b16 %v3330, %v3322
    %v4347 = vpack.c.b16 %v3331, %v3323
    %v4348 = vpack.c.b16 %v3332, %v3324
    %v4349 = vpack.c.b16 %v3333, %v3325
    %v4350 = vpack.c.b16 %v3342, %v3334
    %v4351 = vpack.c.b16 %v3343, %v3335
    %v4352 = vpack.c.b16 %v3344, %v3336
    %v4353 = vpack.c.b16 %v3345, %v3337
    %v4354 = vpack.c.b16 %v3346, %v3338
    %v4355 = vpack.c.b16 %v3347, %v3339
    %v4356 = vpack.c.b16 %v3348, %v3340
    %v4357 = vpack.c.b16 %v3349, %v3341
    %v4358 = vpack.c.b16 %v3358, %v3350
    %v4359 = vpack.c.b16 %v3359, %v3351
    %v4360 = vpack.c.b16 %v3360, %v3352
    %v4361 = vpack.c.b16 %v3361, %v3353
    %v4362 = vpack.c.b16 %v3362, %v3354
    %v4363 = vpack.c.b16 %v3363, %v3355
    %v4364 = vpack.c.b16 %v3364, %v3356
    %v4365 = vpack.c.b16 %v3365, %v3357
    %v4366 = vpack.c.b16 %v3374, %v3366
    %v4367 = vpack.c.b16 %v3375, %v3367
    %v4368 = vpack.c.b16 %v3376, %v3368
    %v4369 = vpack.c.b16 %v3377, %v3369
    %v4370 = vpack.c.b16 %v3378, %v3370
    %v4371 = vpack.c.b16 %v3379, %v3371
    %v4372 = vpack.c.b16 %v3380, %v3372
    %v4373 = vpack.c.b16 %v3381, %v3373
    %v4374 = vpack.c.b16 %v3390, %v3382
    %v4375 = vpack.c.b16 %v3391, %v3383
    %v4376 = vpack.c.b16 %v3392, %v3384
    %v4377 = vpack.c.b16 %v3393, %v3385
    %v4378 = vpack.c.b16 %v3394, %v3386
    %v4379 = vpack.c.b16 %v3395, %v3387
    %v4380 = vpack.c.b16 %v3396, %v3388
    %v4381 = vpack.c.b16 %v3397, %v3389
    %v4382 = vpack.c.b16 %v3406, %v3398
    %v4383 = vpack.c.b16 %v3407, %v3399
    %v4384 = vpack.c.b16 %v3408, %v3400
    %v4385 = vpack.c.b16 %v3409, %v3401
    %v4386 = vpack.c.b16 %v3410, %v3402
    %v4387 = vpack.c.b16 %v3411, %v3403
    %v4388 = vpack.c.b16 %v3412, %v3404
    %v4389 = vpack.c.b16 %v3413, %v3405
    %v4390 = vpack.c.b16 %v3422, %v3414
    %v4391 = vpack.c.b16 %v3423, %v3415
    %v4392 = vpack.c.b16 %v3424, %v3416
    %v4393 = vpack.c.b16 %v3425, %v3417
    %v4394 = vpack.c.b16 %v3426, %v3418
    %v4395 = vpack.c.b16 %v3427, %v3419
    %v4396 = vpack.c.b16 %v3428, %v3420
    %v4397 = vpack.c.b16 %v3429, %v3421
    %v4398 = vpack.c.b16 %v3438, %v3430
    %v4399 = vpack.c.b16 %v3439, %v3431
    %v4400 = vpack.c.b16 %v3440, %v3432
    %v4401 = vpack.c.b16 %v3441, %v3433
    %v4402 = vpack.c.b16 %v3442, %v3434
    %v4403 = vpack.c.b16 %v3443, %v3435
    %v4404 = vpack.c.b16 %v3444, %v3436
    %v4405 = vpack.c.b16 %v3445, %v3437
    %v4406 = vpack.c.b16 %v3454, %v3446
    %v4407 = vpack.c.b16 %v3455, %v3447
    %v4408 = vpack.c.b16 %v3456, %v3448
    %v4409 = vpack.c.b16 %v3457, %v3449
    %v4410 = vpack.c.b16 %v3458, %v3450
    %v4411 = vpack.c.b16 %v3459, %v3451
    %v4412 = vpack.c.b16 %v3460, %v3452
    %v4413 = vpack.c.b16 %v3461, %v3453
    %v4414 = vpack.c.b16 %v3470, %v3462
    %v4415 = vpack.c.b16 %v3471, %v3463
    %v4416 = vpack.c.b16 %v3472, %v3464
    %v4417 = vpack.c.b16 %v3473, %v3465
    %v4418 = vpack.c.b16 %v3474, %v3466
    %v4419 = vpack.c.b16 %v3475, %v3467
    %v4420 = vpack.c.b16 %v3476, %v3468
    %v4421 = vpack.c.b16 %v3477, %v3469
    %v4422 = vpack.c.b16 %v3486, %v3478
    %v4423 = vpack.c.b16 %v3487, %v3479
    %v4424 = vpack.c.b16 %v3488, %v3480
    %v4425 = vpack.c.b16 %v3489, %v3481
    %v4426 = vpack.c.b16 %v3490, %v3482
    %v4427 = vpack.c.b16 %v3491, %v3483
    %v4428 = vpack.c.b16 %v3492, %v3484
    %v4429 = vpack.c.b16 %v3493, %v3485
    %v4430 = vpack.c.b16 %v3502, %v3494
    %v4431 = vpack.c.b16 %v3503, %v3495
    %v4432 = vpack.c.b16 %v3504, %v3496
    %v4433 = vpack.c.b16 %v3505, %v3497
    %v4434 = vpack.c.b16 %v3506, %v3498
    %v4435 = vpack.c.b16 %v3507, %v3499
    %v4436 = vpack.c.b16 %v3508, %v3500
    %v4437 = vpack.c.b16 %v3509, %v3501
    %v4438 = vpack.c.b16 %v3518, %v3510
    %v4439 = vpack.c.b16 %v3519, %v3511
    %v4440 = vpack.c.b16 %v3520, %v3512
    %v4441 = vpack.c.b16 %v3521, %v3513
    %v4442 = vpack.c.b16 %v3522, %v3514
    %v4443 = vpack.c.b16 %v3523, %v3515
    %v4444 = vpack.c.b16 %v3524, %v3516
    %v4445 = vpack.c.b16 %v3525, %v3517
    %v4446 = vpack.c.b16 %v3534, %v3526
    %v4447 = vpack.c.b16 %v3535, %v3527
    %v4448 = vpack.c.b16 %v3536, %v3528
    %v4449 = vpack.c.b16 %v3537, %v3529
    %v4450 = vpack.c.b16 %v3538, %v3530
    %v4451 = vpack.c.b16 %v3539, %v3531
    %v4452 = vpack.c.b16 %v3540, %v3532
    %v4453 = vpack.c.b16 %v3541, %v3533
    %v4454 = vpack.c.b16 %v3550, %v3542
    %v4455 = vpack.c.b16 %v3551, %v3543
    %v4456 = vpack.c.b16 %v3552, %v3544
    %v4457 = vpack.c.b16 %v3553, %v3545
    %v4458 = vpack.c.b16 %v3554, %v3546
    %v4459 = vpack.c.b16 %v3555, %v3547
    %v4460 = vpack.c.b16 %v3556, %v3548
    %v4461 = vpack.c.b16 %v3557, %v3549
    %v4462 = vpack.c.b16 %v3566, %v3558
    %v4463 = vpack.c.b16 %v3567, %v3559
    %v4464 = vpack.c.b16 %v3568, %v3560
    %v4465 = vpack.c.b16 %v3569, %v3561
    %v4466 = vpack.c.b16 %v3570, %v3562
    %v4467 = vpack.c.b16 %v3571, %v3563
    %v4468 = vpack.c.b16 %v3572, %v3564
    %v4469 = vpack.c.b16 %v3573, %v3565
    %v4470 = vpack.c.b16 %v3582, %v3574
    %v4471 = vpack.c.b16 %v3583, %v3575
    %v4472 = vpack.c.b16 %v3584, %v3576
    %v4473 = vpack.c.b16 %v3585, %v3577
    %v4474 = vpack.c.b16 %v3586, %v3578
    %v4475 = vpack.c.b16 %v3587, %v3579
    %v4476 = vpack.c.b16 %v3588, %v3580
    %v4477 = vpack.c.b16 %v3589, %v3581
    %v4478 = vpack.c.b16 %v3598, %v3590
    %v4479 = vpack.c.b16 %v3599, %v3591
    %v4480 = vpack.c.b16 %v3600, %v3592
    %v4481 = vpack.c.b16 %v3601, %v3593
    %v4482 = vpack.c.b16 %v3602, %v3594
    %v4483 = vpack.c.b16 %v3603, %v3595
    %v4484 = vpack.c.b16 %v3604, %v3596
    %v4485 = vpack.c.b16 %v3605, %v3597
    %v4486 = vpack.c.b16 %v3614, %v3606
    %v4487 = vpack.c.b16 %v3615, %v3607
    %v4488 = vpack.c.b16 %v3616, %v3608
    %v4489 = vpack.c.b16 %v3617, %v3609
    %v4490 = vpack.c.b16 %v3618, %v3610
    %v4491 = vpack.c.b16 %v3619, %v3611
    %v4492 = vpack.c.b16 %v3620, %v3612
    %v4493 = vpack.c.b16 %v3621, %v3613
    %v4494 = vpack.c.b16 %v3630, %v3622
    %v4495 = vpack.c.b16 %v3631, %v3623
    %v4496 = vpack.c.b16 %v3632, %v3624
    %v4497 = vpack.c.b16 %v3633, %v3625
    %v4498 = vpack.c.b16 %v3634, %v3626
    %v4499 = vpack.c.b16 %v3635, %v3627
    %v4500 = vpack.c.b16 %v3636, %v3628
    %v4501 = vpack.c.b16 %v3637, %v3629
    %v4502 = vpack.c.b16 %v3646, %v3638
    %v4503 = vpack.c.b16 %v3647, %v3639
    %v4504 = vpack.c.b16 %v3648, %v3640
    %v4505 = vpack.c.b16 %v3649, %v3641
    %v4506 = vpack.c.b16 %v3650, %v3642
    %v4507 = vpack.c.b16 %v3651, %v3643
    %v4508 = vpack.c.b16 %v3652, %v3644
    %v4509 = vpack.c.b16 %v3653, %v3645
    %v4510 = vpack.c.b16 %v3662, %v3654
    %v4511 = vpack.c.b16 %v3663, %v3655
    %v4512 = vpack.c.b16 %v3664, %v3656
    %v4513 = vpack.c.b16 %v3665, %v3657
    %v4514 = vpack.c.b16 %v3666, %v3658
    %v4515 = vpack.c.b16 %v3667, %v3659
    %v4516 = vpack.c.b16 %v3668, %v3660
    %v4517 = vpack.c.b16 %v3669, %v3661
    %v4518 = vpack.c.b16 %v3678, %v3670
    %v4519 = vpack.c.b16 %v3679, %v3671
    %v4520 = vpack.c.b16 %v3680, %v3672
    %v4521 = vpack.c.b16 %v3681, %v3673
    %v4522 = vpack.c.b16 %v3682, %v3674
    %v4523 = vpack.c.b16 %v3683, %v3675
    %v4524 = vpack.c.b16 %v3684, %v3676
    %v4525 = vpack.c.b16 %v3685, %v3677
    %v4526 = vpack.c.b16 %v3694, %v3686
    %v4527 = vpack.c.b16 %v3695, %v3687
    %v4528 = vpack.c.b16 %v3696, %v3688
    %v4529 = vpack.c.b16 %v3697, %v3689
    %v4530 = vpack.c.b16 %v3698, %v3690
    %v4531 = vpack.c.b16 %v3699, %v3691
    %v4532 = vpack.c.b16 %v3700, %v3692
    %v4533 = vpack.c.b16 %v3701, %v3693
    %v4534 = vpack.c.b16 %v3710, %v3702
    %v4535 = vpack.c.b16 %v3711, %v3703
    %v4536 = vpack.c.b16 %v3712, %v3704
    %v4537 = vpack.c.b16 %v3713, %v3705
    %v4538 = vpack.c.b16 %v3714, %v3706
    %v4539 = vpack.c.b16 %v3715, %v3707
    %v4540 = vpack.c.b16 %v3716, %v3708
    %v4541 = vpack.c.b16 %v3717, %v3709
    %v4542 = vpack.c.b16 %v3726, %v3718
    %v4543 = vpack.c.b16 %v3727, %v3719
    %v4544 = vpack.c.b16 %v3728, %v3720
    %v4545 = vpack.c.b16 %v3729, %v3721
    %v4546 = vpack.c.b16 %v3730, %v3722
    %v4547 = vpack.c.b16 %v3731, %v3723
    %v4548 = vpack.c.b16 %v3732, %v3724
    %v4549 = vpack.c.b16 %v3733, %v3725
    %v4550 = vpack.c.b16 %v3742, %v3734
    %v4551 = vpack.c.b16 %v3743, %v3735
    %v4552 = vpack.c.b16 %v3744, %v3736
    %v4553 = vpack.c.b16 %v3745, %v3737
    %v4554 = vpack.c.b16 %v3746, %v3738
    %v4555 = vpack.c.b16 %v3747, %v3739
    %v4556 = vpack.c.b16 %v3748, %v3740
    %v4557 = vpack.c.b16 %v3749, %v3741
    %v4558 = vpack.c.b16 %v3758, %v3750
    %v4559 = vpack.c.b16 %v3759, %v3751
    %v4560 = vpack.c.b16 %v3760, %v3752
    %v4561 = vpack.c.b16 %v3761, %v3753
    %v4562 = vpack.c.b16 %v3762, %v3754
    %v4563 = vpack.c.b16 %v3763, %v3755
    %v4564 = vpack.c.b16 %v3764, %v3756
    %v4565 = vpack.c.b16 %v3765, %v3757
    %v4566 = vpack.c.b16 %v3774, %v3766
    %v4567 = vpack.c.b16 %v3775, %v3767
    %v4568 = vpack.c.b16 %v3776, %v3768
    %v4569 = vpack.c.b16 %v3777, %v3769
    %v4570 = vpack.c.b16 %v3778, %v3770
    %v4571 = vpack.c.b16 %v3779, %v3771
    %v4572 = vpack.c.b16 %v3780, %v3772
    %v4573 = vpack.c.b16 %v3781, %v3773
    %v4574 = vpack.c.b16 %v3790, %v3782
    %v4575 = vpack.c.b16 %v3791, %v3783
    %v4576 = vpack.c.b16 %v3792, %v3784
    %v4577 = vpack.c.b16 %v3793, %v3785
    %v4578 = vpack.c.b16 %v3794, %v3786
    %v4579 = vpack.c.b16 %v3795, %v3787
    %v4580 = vpack.c.b16 %v3796, %v3788
    %v4581 = vpack.c.b16 %v3797, %v3789
    %v4582 = vpack.c.b16 %v3806, %v3798
    %v4583 = vpack.c.b16 %v3807, %v3799
    %v4584 = vpack.c.b16 %v3808, %v3800
    %v4585 = vpack.c.b16 %v3809, %v3801
    %v4586 = vpack.c.b16 %v3810, %v3802
    %v4587 = vpack.c.b16 %v3811, %v3803
    %v4588 = vpack.c.b16 %v3812, %v3804
    %v4589 = vpack.c.b16 %v3813, %v3805
    %v4590 = vpack.c.b16 %v3822, %v3814
    %v4591 = vpack.c.b16 %v3823, %v3815
    %v4592 = vpack.c.b16 %v3824, %v3816
    %v4593 = vpack.c.b16 %v3825, %v3817
    %v4594 = vpack.c.b16 %v3826, %v3818
    %v4595 = vpack.c.b16 %v3827, %v3819
    %v4596 = vpack.c.b16 %v3828, %v3820
    %v4597 = vpack.c.b16 %v3829, %v3821
    %v4598 = vpack.c.b16 %v3838, %v3830
    %v4599 = vpack.c.b16 %v3839, %v3831
    %v4600 = vpack.c.b16 %v3840, %v3832
    %v4601 = vpack.c.b16 %v3841, %v3833
    %v4602 = vpack.c.b16 %v3842, %v3834
    %v4603 = vpack.c.b16 %v3843, %v3835
    %v4604 = vpack.c.b16 %v3844, %v3836
    %v4605 = vpack.c.b16 %v3845, %v3837
    %v4606 = vpack.c.b16 %v3854, %v3846
    %v4607 = vpack.c.b16 %v3855, %v3847
    %v4608 = vpack.c.b16 %v3856, %v3848
    %v4609 = vpack.c.b16 %v3857, %v3849
    %v4610 = vpack.c.b16 %v3858, %v3850
    %v4611 = vpack.c.b16 %v3859, %v3851
    %v4612 = vpack.c.b16 %v3860, %v3852
    %v4613 = vpack.c.b16 %v3861, %v3853
    %v4614 = vpack.c.b16 %v3870, %v3862
    %v4615 = vpack.c.b16 %v3871, %v3863
    %v4616 = vpack.c.b16 %v3872, %v3864
    %v4617 = vpack.c.b16 %v3873, %v3865
    %v4618 = vpack.c.b16 %v3874, %v3866
    %v4619 = vpack.c.b16 %v3875, %v3867
    %v4620 = vpack.c.b16 %v3876, %v3868
    %v4621 = vpack.c.b16 %v3877, %v3869
    %v4622 = vpack.c.b16 %v3886, %v3878
    %v4623 = vpack.c.b16 %v3887, %v3879
    %v4624 = vpack.c.b16 %v3888, %v3880
    %v4625 = vpack.c.b16 %v3889, %v3881
    %v4626 = vpack.c.b16 %v3890, %v3882
    %v4627 = vpack.c.b16 %v3891, %v3883
    %v4628 = vpack.c.b16 %v3892, %v3884
    %v4629 = vpack.c.b16 %v3893, %v3885
    %v4630 = vpack.c.b16 %v3902, %v3894
    %v4631 = vpack.c.b16 %v3903, %v3895
    %v4632 = vpack.c.b16 %v3904, %v3896
    %v4633 = vpack.c.b16 %v3905, %v3897
    %v4634 = vpack.c.b16 %v3906, %v3898
    %v4635 = vpack.c.b16 %v3907, %v3899
    %v4636 = vpack.c.b16 %v3908, %v3900
    %v4637 = vpack.c.b16 %v3909, %v3901
    %v4638 = vpack.c.b16 %v3918, %v3910
    %v4639 = vpack.c.b16 %v3919, %v3911
    %v4640 = vpack.c.b16 %v3920, %v3912
    %v4641 = vpack.c.b16 %v3921, %v3913
    %v4642 = vpack.c.b16 %v3922, %v3914
    %v4643 = vpack.c.b16 %v3923, %v3915
    %v4644 = vpack.c.b16 %v3924, %v3916
    %v4645 = vpack.c.b16 %v3925, %v3917
    %v4646 = vpack.c.b16 %v3934, %v3926
    %v4647 = vpack.c.b16 %v3935, %v3927
    %v4648 = vpack.c.b16 %v3936, %v3928
    %v4649 = vpack.c.b16 %v3937, %v3929
    %v4650 = vpack.c.b16 %v3938, %v3930
    %v4651 = vpack.c.b16 %v3939, %v3931
    %v4652 = vpack.c.b16 %v3940, %v3932
    %v4653 = vpack.c.b16 %v3941, %v3933
    %v4654 = vpack.c.b16 %v3950, %v3942
    %v4655 = vpack.c.b16 %v3951, %v3943
    %v4656 = vpack.c.b16 %v3952, %v3944
    %v4657 = vpack.c.b16 %v3953, %v3945
    %v4658 = vpack.c.b16 %v3954, %v3946
    %v4659 = vpack.c.b16 %v3955, %v3947
    %v4660 = vpack.c.b16 %v3956, %v3948
    %v4661 = vpack.c.b16 %v3957, %v3949
    %v4662 = vpack.c.b16 %v3966, %v3958
    %v4663 = vpack.c.b16 %v3967, %v3959
    %v4664 = vpack.c.b16 %v3968, %v3960
    %v4665 = vpack.c.b16 %v3969, %v3961
    %v4666 = vpack.c.b16 %v3970, %v3962
    %v4667 = vpack.c.b16 %v3971, %v3963
    %v4668 = vpack.c.b16 %v3972, %v3964
    %v4669 = vpack.c.b16 %v3973, %v3965
    %v4670 = vpack.c.b16 %v3982, %v3974
    %v4671 = vpack.c.b16 %v3983, %v3975
    %v4672 = vpack.c.b16 %v3984, %v3976
    %v4673 = vpack.c.b16 %v3985, %v3977
    %v4674 = vpack.c.b16 %v3986, %v3978
    %v4675 = vpack.c.b16 %v3987, %v3979
    %v4676 = vpack.c.b16 %v3988, %v3980
    %v4677 = vpack.c.b16 %v3989, %v3981
    %v4678 = vpack.c.b16 %v3998, %v3990
    %v4679 = vpack.c.b16 %v3999, %v3991
    %v4680 = vpack.c.b16 %v4000, %v3992
    %v4681 = vpack.c.b16 %v4001, %v3993
    %v4682 = vpack.c.b16 %v4002, %v3994
    %v4683 = vpack.c.b16 %v4003, %v3995
    %v4684 = vpack.c.b16 %v4004, %v3996
    %v4685 = vpack.c.b16 %v4005, %v3997
    %v4686 = vpack.c.b16 %v4014, %v4006
    %v4687 = vpack.c.b16 %v4015, %v4007
    %v4688 = vpack.c.b16 %v4016, %v4008
    %v4689 = vpack.c.b16 %v4017, %v4009
    %v4690 = vpack.c.b16 %v4018, %v4010
    %v4691 = vpack.c.b16 %v4019, %v4011
    %v4692 = vpack.c.b16 %v4020, %v4012
    %v4693 = vpack.c.b16 %v4021, %v4013
    %v4694 = vpack.c.b16 %v4030, %v4022
    %v4695 = vpack.c.b16 %v4031, %v4023
    %v4696 = vpack.c.b16 %v4032, %v4024
    %v4697 = vpack.c.b16 %v4033, %v4025
    %v4698 = vpack.c.b16 %v4034, %v4026
    %v4699 = vpack.c.b16 %v4035, %v4027
    %v4700 = vpack.c.b16 %v4036, %v4028
    %v4701 = vpack.c.b16 %v4037, %v4029
    %v4702 = vpack.c.b16 %v4046, %v4038
    %v4703 = vpack.c.b16 %v4047, %v4039
    %v4704 = vpack.c.b16 %v4048, %v4040
    %v4705 = vpack.c.b16 %v4049, %v4041
    %v4706 = vpack.c.b16 %v4050, %v4042
    %v4707 = vpack.c.b16 %v4051, %v4043
    %v4708 = vpack.c.b16 %v4052, %v4044
    %v4709 = vpack.c.b16 %v4053, %v4045
    %v4710 = vpack.c.b16 %v4062, %v4054
    %v4711 = vpack.c.b16 %v4063, %v4055
    %v4712 = vpack.c.b16 %v4064, %v4056
    %v4713 = vpack.c.b16 %v4065, %v4057
    %v4714 = vpack.c.b16 %v4066, %v4058
    %v4715 = vpack.c.b16 %v4067, %v4059
    %v4716 = vpack.c.b16 %v4068, %v4060
    %v4717 = vpack.c.b16 %v4069, %v4061
    %v4718 = vpack.c.b16 %v4078, %v4070
    %v4719 = vpack.c.b16 %v4079, %v4071
    %v4720 = vpack.c.b16 %v4080, %v4072
    %v4721 = vpack.c.b16 %v4081, %v4073
    %v4722 = vpack.c.b16 %v4082, %v4074
    %v4723 = vpack.c.b16 %v4083, %v4075
    %v4724 = vpack.c.b16 %v4084, %v4076
    %v4725 = vpack.c.b16 %v4085, %v4077
    %v4726 = vpack.c.b16 %v4094, %v4086
    %v4727 = vpack.c.b16 %v4095, %v4087
    %v4728 = vpack.c.b16 %v4096, %v4088
    %v4729 = vpack.c.b16 %v4097, %v4089
    %v4730 = vpack.c.b16 %v4098, %v4090
    %v4731 = vpack.c.b16 %v4099, %v4091
    %v4732 = vpack.c.b16 %v4100, %v4092
    %v4733 = vpack.c.b16 %v4101, %v4093
    %v4734 = vpack.c.b16 %v4110, %v4102
    %v4735 = vpack.c.b16 %v4111, %v4103
    %v4736 = vpack.c.b16 %v4112, %v4104
    %v4737 = vpack.c.b16 %v4113, %v4105
    %v4738 = vpack.c.b16 %v4114, %v4106
    %v4739 = vpack.c.b16 %v4115, %v4107
    %v4740 = vpack.c.b16 %v4116, %v4108
    %v4741 = vpack.c.b16 %v4117, %v4109
    %v4742 = vpack.c.b16 %v4126, %v4118
    %v4743 = vpack.c.b16 %v4127, %v4119
    %v4744 = vpack.c.b16 %v4128, %v4120
    %v4745 = vpack.c.b16 %v4129, %v4121
    %v4746 = vpack.c.b16 %v4130, %v4122
    %v4747 = vpack.c.b16 %v4131, %v4123
    %v4748 = vpack.c.b16 %v4132, %v4124
    %v4749 = vpack.c.b16 %v4133, %v4125
    %v4750 = vpack.c.b16 %v4142, %v4134
    %v4751 = vpack.c.b16 %v4143, %v4135
    %v4752 = vpack.c.b16 %v4144, %v4136
    %v4753 = vpack.c.b16 %v4145, %v4137
    %v4754 = vpack.c.b16 %v4146, %v4138
    %v4755 = vpack.c.b16 %v4147, %v4139
    %v4756 = vpack.c.b16 %v4148, %v4140
    %v4757 = vpack.c.b16 %v4149, %v4141
    %v4758 = vpack.c.b16 %v4158, %v4150
    %v4759 = vpack.c.b16 %v4159, %v4151
    %v4760 = vpack.c.b16 %v4160, %v4152
    %v4761 = vpack.c.b16 %v4161, %v4153
    %v4762 = vpack.c.b16 %v4162, %v4154
    %v4763 = vpack.c.b16 %v4163, %v4155
    %v4764 = vpack.c.b16 %v4164, %v4156
    %v4765 = vpack.c.b16 %v4165, %v4157
    %v4766 = vpack.c.b16 %v4174, %v4166
    %v4767 = vpack.c.b16 %v4175, %v4167
    %v4768 = vpack.c.b16 %v4176, %v4168
    %v4769 = vpack.c.b16 %v4177, %v4169
    %v4770 = vpack.c.b16 %v4178, %v4170
    %v4771 = vpack.c.b16 %v4179, %v4171
    %v4772 = vpack.c.b16 %v4180, %v4172
    %v4773 = vpack.c.b16 %v4181, %v4173
    %v4774 = vpack.c.b16 %v4190, %v4182
    %v4775 = vpack.c.b16 %v4191, %v4183
    %v4776 = vpack.c.b16 %v4192, %v4184
    %v4777 = vpack.c.b16 %v4193, %v4185
    %v4778 = vpack.c.b16 %v4194, %v4186
    %v4779 = vpack.c.b16 %v4195, %v4187
    %v4780 = vpack.c.b16 %v4196, %v4188
    %v4781 = vpack.c.b16 %v4197, %v4189
    %v4782 = vpack.c.b16 %v4206, %v4198
    %v4783 = vpack.c.b16 %v4207, %v4199
    %v4784 = vpack.c.b16 %v4208, %v4200
    %v4785 = vpack.c.b16 %v4209, %v4201
    %v4786 = vpack.c.b16 %v4210, %v4202
    %v4787 = vpack.c.b16 %v4211, %v4203
    %v4788 = vpack.c.b16 %v4212, %v4204
    %v4789 = vpack.c.b16 %v4213, %v4205
    %v4790 = vpack.c.b16 %v4222, %v4214
    %v4791 = vpack.c.b16 %v4223, %v4215
    %v4792 = vpack.c.b16 %v4224, %v4216
    %v4793 = vpack.c.b16 %v4225, %v4217
    %v4794 = vpack.c.b16 %v4226, %v4218
    %v4795 = vpack.c.b16 %v4227, %v4219
    %v4796 = vpack.c.b16 %v4228, %v4220
    %v4797 = vpack.c.b16 %v4229, %v4221
    %v4798 = vpack.c.b16 %v4238, %v4230
    %v4799 = vpack.c.b16 %v4239, %v4231
    %v4800 = vpack.c.b16 %v4240, %v4232
    %v4801 = vpack.c.b16 %v4241, %v4233
    %v4802 = vpack.c.b16 %v4242, %v4234
    %v4803 = vpack.c.b16 %v4243, %v4235
    %v4804 = vpack.c.b16 %v4244, %v4236
    %v4805 = vpack.c.b16 %v4245, %v4237
    %v4806 = vpack.c.b16 %v4254, %v4246
    %v4807 = vpack.c.b16 %v4255, %v4247
    %v4808 = vpack.c.b16 %v4256, %v4248
    %v4809 = vpack.c.b16 %v4257, %v4249
    %v4810 = vpack.c.b16 %v4258, %v4250
    %v4811 = vpack.c.b16 %v4259, %v4251
    %v4812 = vpack.c.b16 %v4260, %v4252
    %v4813 = vpack.c.b16 %v4261, %v4253
    %v4814 = vpack.c.b16 %v4270, %v4262
    %v4815 = vpack.c.b16 %v4271, %v4263
    %v4816 = vpack.c.b16 %v4272, %v4264
    %v4817 = vpack.c.b16 %v4273, %v4265
    %v4818 = vpack.c.b16 %v4274, %v4266
    %v4819 = vpack.c.b16 %v4275, %v4267
    %v4820 = vpack.c.b16 %v4276, %v4268
    %v4821 = vpack.c.b16 %v4277, %v4269
    %v4822 = vpack.c.b16 %v4286, %v4278
    %v4823 = vpack.c.b16 %v4287, %v4279
    %v4824 = vpack.c.b16 %v4288, %v4280
    %v4825 = vpack.c.b16 %v4289, %v4281
    %v4826 = vpack.c.b16 %v4290, %v4282
    %v4827 = vpack.c.b16 %v4291, %v4283
    %v4828 = vpack.c.b16 %v4292, %v4284
    %v4829 = vpack.c.b16 %v4293, %v4285
    %v4830 = vpack.c.b16 %v4302, %v4294
    %v4831 = vpack.c.b16 %v4303, %v4295
    %v4832 = vpack.c.b16 %v4304, %v4296
    %v4833 = vpack.c.b16 %v4305, %v4297
    %v4834 = vpack.c.b16 %v4306, %v4298
    %v4835 = vpack.c.b16 %v4307, %v4299
    %v4836 = vpack.c.b16 %v4308, %v4300
    %v4837 = vpack.c.b16 %v4309, %v4301
    %v4838 = vpack.c.b16 %v4318, %v4310
    %v4839 = vpack.c.b16 %v4319, %v4311
    %v4840 = vpack.c.b16 %v4320, %v4312
    %v4841 = vpack.c.b16 %v4321, %v4313
    %v4842 = vpack.c.b16 %v4322, %v4314
    %v4843 = vpack.c.b16 %v4323, %v4315
    %v4844 = vpack.c.b16 %v4324, %v4316
    %v4845 = vpack.c.b16 %v4325, %v4317
    %v4846 = vpack.c.b16 %v4334, %v4326
    %v4847 = vpack.c.b16 %v4335, %v4327
    %v4848 = vpack.c.b16 %v4336, %v4328
    %v4849 = vpack.c.b16 %v4337, %v4329
    %v4850 = vpack.c.b16 %v4338, %v4330
    %v4851 = vpack.c.b16 %v4339, %v4331
    %v4852 = vpack.c.b16 %v4340, %v4332
    %v4853 = vpack.c.b16 %v4341, %v4333
    %5366 = vmatprep.subr.bf16.mxu0 %v4343
    %5367 = vmatpush1.bf16.msra.mxu0 %v4342
    %5368 = vmatprep.subr.bf16.mxu0 %v4351
    %5369 = vmatpush1.bf16.msra.mxu0 %v4350
    %5370 = vmatprep.subr.bf16.mxu0 %v4359
    %5371 = vmatpush1.bf16.msra.mxu0 %v4358
    %5372 = vmatprep.subr.bf16.mxu0 %v4367
    %5373 = vmatpush1.bf16.msra.mxu0 %v4366
    %5374 = vmatprep.subr.bf16.mxu0 %v4375
    %5375 = vmatpush1.bf16.msra.mxu0 %v4374
    %5376 = vmatprep.subr.bf16.mxu0 %v4383
    %5377 = vmatpush1.bf16.msra.mxu0 %v4382
    %5378 = vmatprep.subr.bf16.mxu0 %v4391
    %5379 = vmatpush1.bf16.msra.mxu0 %v4390
    %5380 = vmatprep.subr.bf16.mxu0 %v4399
    %5381 = vmatpush1.bf16.msra.mxu0 %v4398
    %5382 = vmatprep.subr.bf16.mxu0 %v4407
    %5383 = vmatpush1.bf16.msra.mxu0 %v4406
    %5384 = vmatprep.subr.bf16.mxu0 %v4415
    %5385 = vmatpush1.bf16.msra.mxu0 %v4414
    %5386 = vmatprep.subr.bf16.mxu0 %v4423
    %5387 = vmatpush1.bf16.msra.mxu0 %v4422
    %5388 = vmatprep.subr.bf16.mxu0 %v4431
    %5389 = vmatpush1.bf16.msra.mxu0 %v4430
    %5390 = vmatprep.subr.bf16.mxu0 %v4439
    %5391 = vmatpush1.bf16.msra.mxu0 %v4438
    %5392 = vmatprep.subr.bf16.mxu0 %v4447
    %5393 = vmatpush1.bf16.msra.mxu0 %v4446
    %5394 = vmatprep.subr.bf16.mxu0 %v4455
    %5395 = vmatpush1.bf16.msra.mxu0 %v4454
    %5396 = vmatprep.subr.bf16.mxu0 %v4463
    %5397 = vmatpush1.bf16.msra.mxu0 %v4462
    %5398 = vmatprep.mubr.bf16.mxu0 %v2245
    %5399 = vmatmul.mubr.bf16.gmra.mrb[0].mxu0 %v2244
    %v5400 = vpop.f32.mrb[0].mxu0
    %v5401 = vadd.f32 %v2769, %v5400
    %v5402 = vpop.f32.mrb[0].mxu0
    %v5403 = vadd.f32 %v2773, %v5402
    %v5404 = vpop.f32.mrb[0].mxu0
    %v5405 = vpop.f32.mrb[0].mxu0
    %5406 = vdwg.mxu0
    %5407 = vmatprep.subr.bf16.mxu0 %v4471
    %5408 = vmatpush1.bf16.msra.mxu0 %v4470
    %5409 = vmatprep.subr.bf16.mxu0 %v4479
    %5410 = vmatpush1.bf16.msra.mxu0 %v4478
    %5411 = vmatprep.subr.bf16.mxu0 %v4487
    %5412 = vmatpush1.bf16.msra.mxu0 %v4486
    %5413 = vmatprep.subr.bf16.mxu0 %v4495
    %5414 = vmatpush1.bf16.msra.mxu0 %v4494
    %5415 = vmatprep.subr.bf16.mxu0 %v4503
    %5416 = vmatpush1.bf16.msra.mxu0 %v4502
    %5417 = vmatprep.subr.bf16.mxu0 %v4511
    %5418 = vmatpush1.bf16.msra.mxu0 %v4510
    %5419 = vmatprep.subr.bf16.mxu0 %v4519
    %5420 = vmatpush1.bf16.msra.mxu0 %v4518
    %5421 = vmatprep.subr.bf16.mxu0 %v4527
    %5422 = vmatpush1.bf16.msra.mxu0 %v4526
    %5423 = vmatprep.subr.bf16.mxu0 %v4535
    %5424 = vmatpush1.bf16.msra.mxu0 %v4534
    %5425 = vmatprep.subr.bf16.mxu0 %v4543
    %5426 = vmatpush1.bf16.msra.mxu0 %v4542
    %5427 = vmatprep.subr.bf16.mxu0 %v4551
    %5428 = vmatpush1.bf16.msra.mxu0 %v4550
    %5429 = vmatprep.subr.bf16.mxu0 %v4559
    %5430 = vmatpush1.bf16.msra.mxu0 %v4558
    %5431 = vmatprep.subr.bf16.mxu0 %v4567
    %5432 = vmatpush1.bf16.msra.mxu0 %v4566
    %5433 = vmatprep.subr.bf16.mxu0 %v4575
    %5434 = vmatpush1.bf16.msra.mxu0 %v4574
    %5435 = vmatprep.subr.bf16.mxu0 %v4583
    %5436 = vmatpush1.bf16.msra.mxu0 %v4582
    %5437 = vmatprep.subr.bf16.mxu0 %v4591
    %5438 = vmatpush1.bf16.msra.mxu0 %v4590
    %5439 = vmatprep.mubr.bf16.mxu0 %v2247
    %5440 = vmatmul.mubr.bf16.gmra.mrb[0].mxu0 %v2246
    %v5441 = vpop.f32.mrb[0].mxu0
    %v5442 = vadd.f32 %v5401, %v5441
    %v5443 = vpop.f32.mrb[0].mxu0
    %v5444 = vadd.f32 %v5403, %v5443
    %v5445 = vpop.f32.mrb[0].mxu0
    %v5446 = vpop.f32.mrb[0].mxu0
    %5447 = vdwg.mxu0
    %5448 = vmatprep.subr.bf16.mxu0 %v4599
    %5449 = vmatpush1.bf16.msra.mxu0 %v4598
    %5450 = vmatprep.subr.bf16.mxu0 %v4607
    %5451 = vmatpush1.bf16.msra.mxu0 %v4606
    %5452 = vmatprep.subr.bf16.mxu0 %v4615
    %5453 = vmatpush1.bf16.msra.mxu0 %v4614
    %5454 = vmatprep.subr.bf16.mxu0 %v4623
    %5455 = vmatpush1.bf16.msra.mxu0 %v4622
    %5456 = vmatprep.subr.bf16.mxu0 %v4631
    %5457 = vmatpush1.bf16.msra.mxu0 %v4630
    %5458 = vmatprep.subr.bf16.mxu0 %v4639
    %5459 = vmatpush1.bf16.msra.mxu0 %v4638
    %5460 = vmatprep.subr.bf16.mxu0 %v4647
    %5461 = vmatpush1.bf16.msra.mxu0 %v4646
    %5462 = vmatprep.subr.bf16.mxu0 %v4655
    %5463 = vmatpush1.bf16.msra.mxu0 %v4654
    %5464 = vmatprep.subr.bf16.mxu0 %v4663
    %5465 = vmatpush1.bf16.msra.mxu0 %v4662
    %5466 = vmatprep.subr.bf16.mxu0 %v4671
    %5467 = vmatpush1.bf16.msra.mxu0 %v4670
    %5468 = vmatprep.subr.bf16.mxu0 %v4679
    %5469 = vmatpush1.bf16.msra.mxu0 %v4678
    %5470 = vmatprep.subr.bf16.mxu0 %v4687
    %5471 = vmatpush1.bf16.msra.mxu0 %v4686
    %5472 = vmatprep.subr.bf16.mxu0 %v4695
    %5473 = vmatpush1.bf16.msra.mxu0 %v4694
    %5474 = vmatprep.subr.bf16.mxu0 %v4703
    %5475 = vmatpush1.bf16.msra.mxu0 %v4702
    %5476 = vmatprep.subr.bf16.mxu0 %v4711
    %5477 = vmatpush1.bf16.msra.mxu0 %v4710
    %5478 = vmatprep.subr.bf16.mxu0 %v4719
    %5479 = vmatpush1.bf16.msra.mxu0 %v4718
    %5480 = vmatprep.mubr.bf16.mxu0 %v2249
    %5481 = vmatmul.mubr.bf16.gmra.mrb[0].mxu0 %v2248
    %v5482 = vpop.f32.mrb[0].mxu0
    %v5483 = vadd.f32 %v5442, %v5482
    %v5484 = vpop.f32.mrb[0].mxu0
    %v5485 = vadd.f32 %v5444, %v5484
    %v5486 = vpop.f32.mrb[0].mxu0
    %v5487 = vpop.f32.mrb[0].mxu0
    %5488 = vdwg.mxu0
    %5489 = vmatprep.subr.bf16.mxu0 %v4727
    %5490 = vmatpush1.bf16.msra.mxu0 %v4726
    %5491 = vmatprep.subr.bf16.mxu0 %v4735
    %5492 = vmatpush1.bf16.msra.mxu0 %v4734
    %5493 = vmatprep.subr.bf16.mxu0 %v4743
    %5494 = vmatpush1.bf16.msra.mxu0 %v4742
    %5495 = vmatprep.subr.bf16.mxu0 %v4751
    %5496 = vmatpush1.bf16.msra.mxu0 %v4750
    %5497 = vmatprep.subr.bf16.mxu0 %v4759
    %5498 = vmatpush1.bf16.msra.mxu0 %v4758
    %5499 = vmatprep.subr.bf16.mxu0 %v4767
    %5500 = vmatpush1.bf16.msra.mxu0 %v4766
    %5501 = vmatprep.subr.bf16.mxu0 %v4775
    %5502 = vmatpush1.bf16.msra.mxu0 %v4774
    %5503 = vmatprep.subr.bf16.mxu0 %v4783
    %5504 = vmatpush1.bf16.msra.mxu0 %v4782
    %5505 = vmatprep.subr.bf16.mxu0 %v4791
    %5506 = vmatpush1.bf16.msra.mxu0 %v4790
    %5507 = vmatprep.subr.bf16.mxu0 %v4799
    %5508 = vmatpush1.bf16.msra.mxu0 %v4798
    %5509 = vmatprep.subr.bf16.mxu0 %v4807
    %5510 = vmatpush1.bf16.msra.mxu0 %v4806
    %5511 = vmatprep.subr.bf16.mxu0 %v4815
    %5512 = vmatpush1.bf16.msra.mxu0 %v4814
    %5513 = vmatprep.subr.bf16.mxu0 %v4823
    %5514 = vmatpush1.bf16.msra.mxu0 %v4822
    %5515 = vmatprep.subr.bf16.mxu0 %v4831
    %5516 = vmatpush1.bf16.msra.mxu0 %v4830
    %5517 = vmatprep.subr.bf16.mxu0 %v4839
    %5518 = vmatpush1.bf16.msra.mxu0 %v4838
    %5519 = vmatprep.subr.bf16.mxu0 %v4847
    %5520 = vmatpush1.bf16.msra.mxu0 %v4846
    %5521 = vmatprep.mubr.bf16.mxu0 %v2251
    %5522 = vmatmul.mubr.bf16.gmra.mrb[0].mxu0 %v2250
    %v5523 = vpop.f32.mrb[0].mxu0
    %v5524 = vadd.f32 %v5483, %v5523
    %v5525 = vpop.f32.mrb[0].mxu0
    %v5526 = vadd.f32 %v5485, %v5525
    %v5527 = vpop.f32.mrb[0].mxu0
    %v5528 = vpop.f32.mrb[0].mxu0
    %5529 = vdwg.mxu0
    %5530 = vmatprep.subr.bf16.mxu0 %v4345
    %5531 = vmatpush1.bf16.msra.mxu0 %v4344
    %5532 = vmatprep.subr.bf16.mxu0 %v4353
    %5533 = vmatpush1.bf16.msra.mxu0 %v4352
    %5534 = vmatprep.subr.bf16.mxu0 %v4361
    %5535 = vmatpush1.bf16.msra.mxu0 %v4360
    %5536 = vmatprep.subr.bf16.mxu0 %v4369
    %5537 = vmatpush1.bf16.msra.mxu0 %v4368
    %5538 = vmatprep.subr.bf16.mxu0 %v4377
    %5539 = vmatpush1.bf16.msra.mxu0 %v4376
    %5540 = vmatprep.subr.bf16.mxu0 %v4385
    %5541 = vmatpush1.bf16.msra.mxu0 %v4384
    %5542 = vmatprep.subr.bf16.mxu0 %v4393
    %5543 = vmatpush1.bf16.msra.mxu0 %v4392
    %5544 = vmatprep.subr.bf16.mxu0 %v4401
    %5545 = vmatpush1.bf16.msra.mxu0 %v4400
    %5546 = vmatprep.subr.bf16.mxu0 %v4409
    %5547 = vmatpush1.bf16.msra.mxu0 %v4408
    %5548 = vmatprep.subr.bf16.mxu0 %v4417
    %5549 = vmatpush1.bf16.msra.mxu0 %v4416
    %5550 = vmatprep.subr.bf16.mxu0 %v4425
    %5551 = vmatpush1.bf16.msra.mxu0 %v4424
    %5552 = vmatprep.subr.bf16.mxu0 %v4433
    %5553 = vmatpush1.bf16.msra.mxu0 %v4432
    %5554 = vmatprep.subr.bf16.mxu0 %v4441
    %5555 = vmatpush1.bf16.msra.mxu0 %v4440
    %5556 = vmatprep.subr.bf16.mxu0 %v4449
    %5557 = vmatpush1.bf16.msra.mxu0 %v4448
    %5558 = vmatprep.subr.bf16.mxu0 %v4457
    %5559 = vmatpush1.bf16.msra.mxu0 %v4456
    %5560 = vmatprep.subr.bf16.mxu0 %v4465
    %5561 = vmatpush1.bf16.msra.mxu0 %v4464
    %5562 = vmatprep.mubr.bf16.mxu0 %v2245
    %5563 = vmatmul.mubr.bf16.gmra.mrb[0].mxu0 %v2244
    %v5564 = vpop.f32.mrb[0].mxu0
    %v5565 = vadd.f32 %v2777, %v5564
    %v5566 = vpop.f32.mrb[0].mxu0
    %v5567 = vadd.f32 %v2781, %v5566
    %v5568 = vpop.f32.mrb[0].mxu0
    %v5569 = vpop.f32.mrb[0].mxu0
    %5570 = vdwg.mxu0
    %5571 = vmatprep.subr.bf16.mxu0 %v4473
    %5572 = vmatpush1.bf16.msra.mxu0 %v4472
    %5573 = vmatprep.subr.bf16.mxu0 %v4481
    %5574 = vmatpush1.bf16.msra.mxu0 %v4480
    %5575 = vmatprep.subr.bf16.mxu0 %v4489
    %5576 = vmatpush1.bf16.msra.mxu0 %v4488
    %5577 = vmatprep.subr.bf16.mxu0 %v4497
    %5578 = vmatpush1.bf16.msra.mxu0 %v4496
    %5579 = vmatprep.subr.bf16.mxu0 %v4505
    %5580 = vmatpush1.bf16.msra.mxu0 %v4504
    %5581 = vmatprep.subr.bf16.mxu0 %v4513
    %5582 = vmatpush1.bf16.msra.mxu0 %v4512
    %5583 = vmatprep.subr.bf16.mxu0 %v4521
    %5584 = vmatpush1.bf16.msra.mxu0 %v4520
    %5585 = vmatprep.subr.bf16.mxu0 %v4529
    %5586 = vmatpush1.bf16.msra.mxu0 %v4528
    %5587 = vmatprep.subr.bf16.mxu0 %v4537
    %5588 = vmatpush1.bf16.msra.mxu0 %v4536
    %5589 = vmatprep.subr.bf16.mxu0 %v4545
    %5590 = vmatpush1.bf16.msra.mxu0 %v4544
    %5591 = vmatprep.subr.bf16.mxu0 %v4553
    %5592 = vmatpush1.bf16.msra.mxu0 %v4552
    %5593 = vmatprep.subr.bf16.mxu0 %v4561
    %5594 = vmatpush1.bf16.msra.mxu0 %v4560
    %5595 = vmatprep.subr.bf16.mxu0 %v4569
    %5596 = vmatpush1.bf16.msra.mxu0 %v4568
    %5597 = vmatprep.subr.bf16.mxu0 %v4577
    %5598 = vmatpush1.bf16.msra.mxu0 %v4576
    %5599 = vmatprep.subr.bf16.mxu0 %v4585
    %5600 = vmatpush1.bf16.msra.mxu0 %v4584
    %5601 = vmatprep.subr.bf16.mxu0 %v4593
    %5602 = vmatpush1.bf16.msra.mxu0 %v4592
    %5603 = vmatprep.mubr.bf16.mxu0 %v2247
    %5604 = vmatmul.mubr.bf16.gmra.mrb[0].mxu0 %v2246
    %v5605 = vpop.f32.mrb[0].mxu0
    %v5606 = vadd.f32 %v5565, %v5605
    %v5607 = vpop.f32.mrb[0].mxu0
    %v5608 = vadd.f32 %v5567, %v5607
    %v5609 = vpop.f32.mrb[0].mxu0
    %v5610 = vpop.f32.mrb[0].mxu0
    %5611 = vdwg.mxu0
    %5612 = vmatprep.subr.bf16.mxu0 %v4601
    %5613 = vmatpush1.bf16.msra.mxu0 %v4600
    %5614 = vmatprep.subr.bf16.mxu0 %v4609
    %5615 = vmatpush1.bf16.msra.mxu0 %v4608
    %5616 = vmatprep.subr.bf16.mxu0 %v4617
    %5617 = vmatpush1.bf16.msra.mxu0 %v4616
    %5618 = vmatprep.subr.bf16.mxu0 %v4625
    %5619 = vmatpush1.bf16.msra.mxu0 %v4624
    %5620 = vmatprep.subr.bf16.mxu0 %v4633
    %5621 = vmatpush1.bf16.msra.mxu0 %v4632
    %5622 = vmatprep.subr.bf16.mxu0 %v4641
    %5623 = vmatpush1.bf16.msra.mxu0 %v4640
    %5624 = vmatprep.subr.bf16.mxu0 %v4649
    %5625 = vmatpush1.bf16.msra.mxu0 %v4648
    %5626 = vmatprep.subr.bf16.mxu0 %v4657
    %5627 = vmatpush1.bf16.msra.mxu0 %v4656
    %5628 = vmatprep.subr.bf16.mxu0 %v4665
    %5629 = vmatpush1.bf16.msra.mxu0 %v4664
    %5630 = vmatprep.subr.bf16.mxu0 %v4673
    %5631 = vmatpush1.bf16.msra.mxu0 %v4672
    %5632 = vmatprep.subr.bf16.mxu0 %v4681
    %5633 = vmatpush1.bf16.msra.mxu0 %v4680
    %5634 = vmatprep.subr.bf16.mxu0 %v4689
    %5635 = vmatpush1.bf16.msra.mxu0 %v4688
    %5636 = vmatprep.subr.bf16.mxu0 %v4697
    %5637 = vmatpush1.bf16.msra.mxu0 %v4696
    %5638 = vmatprep.subr.bf16.mxu0 %v4705
    %5639 = vmatpush1.bf16.msra.mxu0 %v4704
    %5640 = vmatprep.subr.bf16.mxu0 %v4713
    %5641 = vmatpush1.bf16.msra.mxu0 %v4712
    %5642 = vmatprep.subr.bf16.mxu0 %v4721
    %5643 = vmatpush1.bf16.msra.mxu0 %v4720
    %5644 = vmatprep.mubr.bf16.mxu0 %v2249
    %5645 = vmatmul.mubr.bf16.gmra.mrb[0].mxu0 %v2248
    %v5646 = vpop.f32.mrb[0].mxu0
    %v5647 = vadd.f32 %v5606, %v5646
    %v5648 = vpop.f32.mrb[0].mxu0
    %v5649 = vadd.f32 %v5608, %v5648
    %v5650 = vpop.f32.mrb[0].mxu0
    %v5651 = vpop.f32.mrb[0].mxu0
    %5652 = vdwg.mxu0
    %5653 = vmatprep.subr.bf16.mxu0 %v4729
    %5654 = vmatpush1.bf16.msra.mxu0 %v4728
    %5655 = vmatprep.subr.bf16.mxu0 %v4737
    %5656 = vmatpush1.bf16.msra.mxu0 %v4736
    %5657 = vmatprep.subr.bf16.mxu0 %v4745
    %5658 = vmatpush1.bf16.msra.mxu0 %v4744
    %5659 = vmatprep.subr.bf16.mxu0 %v4753
    %5660 = vmatpush1.bf16.msra.mxu0 %v4752
    %5661 = vmatprep.subr.bf16.mxu0 %v4761
    %5662 = vmatpush1.bf16.msra.mxu0 %v4760
    %5663 = vmatprep.subr.bf16.mxu0 %v4769
    %5664 = vmatpush1.bf16.msra.mxu0 %v4768
    %5665 = vmatprep.subr.bf16.mxu0 %v4777
    %5666 = vmatpush1.bf16.msra.mxu0 %v4776
    %5667 = vmatprep.subr.bf16.mxu0 %v4785
    %5668 = vmatpush1.bf16.msra.mxu0 %v4784
    %5669 = vmatprep.subr.bf16.mxu0 %v4793
    %5670 = vmatpush1.bf16.msra.mxu0 %v4792
    %5671 = vmatprep.subr.bf16.mxu0 %v4801
    %5672 = vmatpush1.bf16.msra.mxu0 %v4800
    %5673 = vmatprep.subr.bf16.mxu0 %v4809
    %5674 = vmatpush1.bf16.msra.mxu0 %v4808
    %5675 = vmatprep.subr.bf16.mxu0 %v4817
    %5676 = vmatpush1.bf16.msra.mxu0 %v4816
    %5677 = vmatprep.subr.bf16.mxu0 %v4825
    %5678 = vmatpush1.bf16.msra.mxu0 %v4824
    %5679 = vmatprep.subr.bf16.mxu0 %v4833
    %5680 = vmatpush1.bf16.msra.mxu0 %v4832
    %5681 = vmatprep.subr.bf16.mxu0 %v4841
    %5682 = vmatpush1.bf16.msra.mxu0 %v4840
    %5683 = vmatprep.subr.bf16.mxu0 %v4849
    %5684 = vmatpush1.bf16.msra.mxu0 %v4848
    %5685 = vmatprep.mubr.bf16.mxu0 %v2251
    %5686 = vmatmul.mubr.bf16.gmra.mrb[0].mxu0 %v2250
    %v5687 = vpop.f32.mrb[0].mxu0
    %v5688 = vadd.f32 %v5647, %v5687
    %v5689 = vpop.f32.mrb[0].mxu0
    %v5690 = vadd.f32 %v5649, %v5689
    %v5691 = vpop.f32.mrb[0].mxu0
    %v5692 = vpop.f32.mrb[0].mxu0
    %5693 = vdwg.mxu0
    %5694 = vmatprep.subr.bf16.mxu0 %v4347
    %5695 = vmatpush1.bf16.msra.mxu0 %v4346
    %5696 = vmatprep.subr.bf16.mxu0 %v4355
    %5697 = vmatpush1.bf16.msra.mxu0 %v4354
    %5698 = vmatprep.subr.bf16.mxu0 %v4363
    %5699 = vmatpush1.bf16.msra.mxu0 %v4362
    %5700 = vmatprep.subr.bf16.mxu0 %v4371
    %5701 = vmatpush1.bf16.msra.mxu0 %v4370
    %5702 = vmatprep.subr.bf16.mxu0 %v4379
    %5703 = vmatpush1.bf16.msra.mxu0 %v4378
    %5704 = vmatprep.subr.bf16.mxu0 %v4387
    %5705 = vmatpush1.bf16.msra.mxu0 %v4386
    %5706 = vmatprep.subr.bf16.mxu0 %v4395
    %5707 = vmatpush1.bf16.msra.mxu0 %v4394
    %5708 = vmatprep.subr.bf16.mxu0 %v4403
    %5709 = vmatpush1.bf16.msra.mxu0 %v4402
    %5710 = vmatprep.subr.bf16.mxu0 %v4411
    %5711 = vmatpush1.bf16.msra.mxu0 %v4410
    %5712 = vmatprep.subr.bf16.mxu0 %v4419
    %5713 = vmatpush1.bf16.msra.mxu0 %v4418
    %5714 = vmatprep.subr.bf16.mxu0 %v4427
    %5715 = vmatpush1.bf16.msra.mxu0 %v4426
    %5716 = vmatprep.subr.bf16.mxu0 %v4435
    %5717 = vmatpush1.bf16.msra.mxu0 %v4434
    %5718 = vmatprep.subr.bf16.mxu0 %v4443
    %5719 = vmatpush1.bf16.msra.mxu0 %v4442
    %5720 = vmatprep.subr.bf16.mxu0 %v4451
    %5721 = vmatpush1.bf16.msra.mxu0 %v4450
    %5722 = vmatprep.subr.bf16.mxu0 %v4459
    %5723 = vmatpush1.bf16.msra.mxu0 %v4458
    %5724 = vmatprep.subr.bf16.mxu0 %v4467
    %5725 = vmatpush1.bf16.msra.mxu0 %v4466
    %5726 = vmatprep.mubr.bf16.mxu0 %v2245
    %5727 = vmatmul.mubr.bf16.gmra.mrb[0].mxu0 %v2244
    %v5728 = vpop.f32.mrb[0].mxu0
    %v5729 = vadd.f32 %v2785, %v5728
    %v5730 = vpop.f32.mrb[0].mxu0
    %v5731 = vadd.f32 %v2789, %v5730
    %v5732 = vpop.f32.mrb[0].mxu0
    %v5733 = vpop.f32.mrb[0].mxu0
    %5734 = vdwg.mxu0
    %5735 = vmatprep.subr.bf16.mxu0 %v4475
    %5736 = vmatpush1.bf16.msra.mxu0 %v4474
    %5737 = vmatprep.subr.bf16.mxu0 %v4483
    %5738 = vmatpush1.bf16.msra.mxu0 %v4482
    %5739 = vmatprep.subr.bf16.mxu0 %v4491
    %5740 = vmatpush1.bf16.msra.mxu0 %v4490
    %5741 = vmatprep.subr.bf16.mxu0 %v4499
    %5742 = vmatpush1.bf16.msra.mxu0 %v4498
    %5743 = vmatprep.subr.bf16.mxu0 %v4507
    %5744 = vmatpush1.bf16.msra.mxu0 %v4506
    %5745 = vmatprep.subr.bf16.mxu0 %v4515
    %5746 = vmatpush1.bf16.msra.mxu0 %v4514
    %5747 = vmatprep.subr.bf16.mxu0 %v4523
    %5748 = vmatpush1.bf16.msra.mxu0 %v4522
    %5749 = vmatprep.subr.bf16.mxu0 %v4531
    %5750 = vmatpush1.bf16.msra.mxu0 %v4530
    %5751 = vmatprep.subr.bf16.mxu0 %v4539
    %5752 = vmatpush1.bf16.msra.mxu0 %v4538
    %5753 = vmatprep.subr.bf16.mxu0 %v4547
    %5754 = vmatpush1.bf16.msra.mxu0 %v4546
    %5755 = vmatprep.subr.bf16.mxu0 %v4555
    %5756 = vmatpush1.bf16.msra.mxu0 %v4554
    %5757 = vmatprep.subr.bf16.mxu0 %v4563
    %5758 = vmatpush1.bf16.msra.mxu0 %v4562
    %5759 = vmatprep.subr.bf16.mxu0 %v4571
    %5760 = vmatpush1.bf16.msra.mxu0 %v4570
    %5761 = vmatprep.subr.bf16.mxu0 %v4579
    %5762 = vmatpush1.bf16.msra.mxu0 %v4578
    %5763 = vmatprep.subr.bf16.mxu0 %v4587
    %5764 = vmatpush1.bf16.msra.mxu0 %v4586
    %5765 = vmatprep.subr.bf16.mxu0 %v4595
    %5766 = vmatpush1.bf16.msra.mxu0 %v4594
    %5767 = vmatprep.mubr.bf16.mxu0 %v2247
    %5768 = vmatmul.mubr.bf16.gmra.mrb[0].mxu0 %v2246
    %v5769 = vpop.f32.mrb[0].mxu0
    %v5770 = vadd.f32 %v5729, %v5769
    %v5771 = vpop.f32.mrb[0].mxu0
    %v5772 = vadd.f32 %v5731, %v5771
    %v5773 = vpop.f32.mrb[0].mxu0
    %v5774 = vpop.f32.mrb[0].mxu0
    %5775 = vdwg.mxu0
    %5776 = vmatprep.subr.bf16.mxu0 %v4603
    %5777 = vmatpush1.bf16.msra.mxu0 %v4602
    %5778 = vmatprep.subr.bf16.mxu0 %v4611
    %5779 = vmatpush1.bf16.msra.mxu0 %v4610
    %5780 = vmatprep.subr.bf16.mxu0 %v4619
    %5781 = vmatpush1.bf16.msra.mxu0 %v4618
    %5782 = vmatprep.subr.bf16.mxu0 %v4627
    %5783 = vmatpush1.bf16.msra.mxu0 %v4626
    %5784 = vmatprep.subr.bf16.mxu0 %v4635
    %5785 = vmatpush1.bf16.msra.mxu0 %v4634
    %5786 = vmatprep.subr.bf16.mxu0 %v4643
    %5787 = vmatpush1.bf16.msra.mxu0 %v4642
    %5788 = vmatprep.subr.bf16.mxu0 %v4651
    %5789 = vmatpush1.bf16.msra.mxu0 %v4650
    %5790 = vmatprep.subr.bf16.mxu0 %v4659
    %5791 = vmatpush1.bf16.msra.mxu0 %v4658
    %5792 = vmatprep.subr.bf16.mxu0 %v4667
    %5793 = vmatpush1.bf16.msra.mxu0 %v4666
    %5794 = vmatprep.subr.bf16.mxu0 %v4675
    %5795 = vmatpush1.bf16.msra.mxu0 %v4674
    %5796 = vmatprep.subr.bf16.mxu0 %v4683
    %5797 = vmatpush1.bf16.msra.mxu0 %v4682
    %5798 = vmatprep.subr.bf16.mxu0 %v4691
    %5799 = vmatpush1.bf16.msra.mxu0 %v4690
    %5800 = vmatprep.subr.bf16.mxu0 %v4699
    %5801 = vmatpush1.bf16.msra.mxu0 %v4698
    %5802 = vmatprep.subr.bf16.mxu0 %v4707
    %5803 = vmatpush1.bf16.msra.mxu0 %v4706
    %5804 = vmatprep.subr.bf16.mxu0 %v4715
    %5805 = vmatpush1.bf16.msra.mxu0 %v4714
    %5806 = vmatprep.subr.bf16.mxu0 %v4723
    %5807 = vmatpush1.bf16.msra.mxu0 %v4722
    %5808 = vmatprep.mubr.bf16.mxu0 %v2249
    %5809 = vmatmul.mubr.bf16.gmra.mrb[0].mxu0 %v2248
    %v5810 = vpop.f32.mrb[0].mxu0
    %v5811 = vadd.f32 %v5770, %v5810
    %v5812 = vpop.f32.mrb[0].mxu0
    %v5813 = vadd.f32 %v5772, %v5812
    %v5814 = vpop.f32.mrb[0].mxu0
    %v5815 = vpop.f32.mrb[0].mxu0
    %5816 = vdwg.mxu0
    %5817 = vmatprep.subr.bf16.mxu0 %v4731
    %5818 = vmatpush1.bf16.msra.mxu0 %v4730
    %5819 = vmatprep.subr.bf16.mxu0 %v4739
    %5820 = vmatpush1.bf16.msra.mxu0 %v4738
    %5821 = vmatprep.subr.bf16.mxu0 %v4747
    %5822 = vmatpush1.bf16.msra.mxu0 %v4746
    %5823 = vmatprep.subr.bf16.mxu0 %v4755
    %5824 = vmatpush1.bf16.msra.mxu0 %v4754
    %5825 = vmatprep.subr.bf16.mxu0 %v4763
    %5826 = vmatpush1.bf16.msra.mxu0 %v4762
    %5827 = vmatprep.subr.bf16.mxu0 %v4771
    %5828 = vmatpush1.bf16.msra.mxu0 %v4770
    %5829 = vmatprep.subr.bf16.mxu0 %v4779
    %5830 = vmatpush1.bf16.msra.mxu0 %v4778
    %5831 = vmatprep.subr.bf16.mxu0 %v4787
    %5832 = vmatpush1.bf16.msra.mxu0 %v4786
    %5833 = vmatprep.subr.bf16.mxu0 %v4795
    %5834 = vmatpush1.bf16.msra.mxu0 %v4794
    %5835 = vmatprep.subr.bf16.mxu0 %v4803
    %5836 = vmatpush1.bf16.msra.mxu0 %v4802
    %5837 = vmatprep.subr.bf16.mxu0 %v4811
    %5838 = vmatpush1.bf16.msra.mxu0 %v4810
    %5839 = vmatprep.subr.bf16.mxu0 %v4819
    %5840 = vmatpush1.bf16.msra.mxu0 %v4818
    %5841 = vmatprep.subr.bf16.mxu0 %v4827
    %5842 = vmatpush1.bf16.msra.mxu0 %v4826
    %5843 = vmatprep.subr.bf16.mxu0 %v4835
    %5844 = vmatpush1.bf16.msra.mxu0 %v4834
    %5845 = vmatprep.subr.bf16.mxu0 %v4843
    %5846 = vmatpush1.bf16.msra.mxu0 %v4842
    %5847 = vmatprep.subr.bf16.mxu0 %v4851
    %5848 = vmatpush1.bf16.msra.mxu0 %v4850
    %5849 = vmatprep.mubr.bf16.mxu0 %v2251
    %5850 = vmatmul.mubr.bf16.gmra.mrb[0].mxu0 %v2250
    %v5851 = vpop.f32.mrb[0].mxu0
    %v5852 = vadd.f32 %v5811, %v5851
    %v5853 = vpop.f32.mrb[0].mxu0
    %v5854 = vadd.f32 %v5813, %v5853
    %v5855 = vpop.f32.mrb[0].mxu0
    %v5856 = vpop.f32.mrb[0].mxu0
    %5857 = vdwg.mxu0
    %5858 = vmatprep.subr.bf16.mxu0 %v4349
    %5859 = vmatpush1.bf16.msra.mxu0 %v4348
    %5860 = vmatprep.subr.bf16.mxu0 %v4357
    %5861 = vmatpush1.bf16.msra.mxu0 %v4356
    %5862 = vmatprep.subr.bf16.mxu0 %v4365
    %5863 = vmatpush1.bf16.msra.mxu0 %v4364
    %5864 = vmatprep.subr.bf16.mxu0 %v4373
    %5865 = vmatpush1.bf16.msra.mxu0 %v4372
    %5866 = vmatprep.subr.bf16.mxu0 %v4381
    %5867 = vmatpush1.bf16.msra.mxu0 %v4380
    %5868 = vmatprep.subr.bf16.mxu0 %v4389
    %5869 = vmatpush1.bf16.msra.mxu0 %v4388
    %5870 = vmatprep.subr.bf16.mxu0 %v4397
    %5871 = vmatpush1.bf16.msra.mxu0 %v4396
    %5872 = vmatprep.subr.bf16.mxu0 %v4405
    %5873 = vmatpush1.bf16.msra.mxu0 %v4404
    %5874 = vmatprep.subr.bf16.mxu0 %v4413
    %5875 = vmatpush1.bf16.msra.mxu0 %v4412
    %5876 = vmatprep.subr.bf16.mxu0 %v4421
    %5877 = vmatpush1.bf16.msra.mxu0 %v4420
    %5878 = vmatprep.subr.bf16.mxu0 %v4429
    %5879 = vmatpush1.bf16.msra.mxu0 %v4428
    %5880 = vmatprep.subr.bf16.mxu0 %v4437
    %5881 = vmatpush1.bf16.msra.mxu0 %v4436
    %5882 = vmatprep.subr.bf16.mxu0 %v4445
    %5883 = vmatpush1.bf16.msra.mxu0 %v4444
    %5884 = vmatprep.subr.bf16.mxu0 %v4453
    %5885 = vmatpush1.bf16.msra.mxu0 %v4452
    %5886 = vmatprep.subr.bf16.mxu0 %v4461
    %5887 = vmatpush1.bf16.msra.mxu0 %v4460
    %5888 = vmatprep.subr.bf16.mxu0 %v4469
    %5889 = vmatpush1.bf16.msra.mxu0 %v4468
    %5890 = vmatprep.mubr.bf16.mxu0 %v2245
    %5891 = vmatmul.mubr.bf16.gmra.mrb[0].mxu0 %v2244
    %v5892 = vpop.f32.mrb[0].mxu0
    %v5893 = vadd.f32 %v2793, %v5892
    %v5894 = vpop.f32.mrb[0].mxu0
    %v5895 = vadd.f32 %v2797, %v5894
    %v5896 = vpop.f32.mrb[0].mxu0
    %v5897 = vpop.f32.mrb[0].mxu0
    %5898 = vdwg.mxu0
    %5899 = vmatprep.subr.bf16.mxu0 %v4477
    %5900 = vmatpush1.bf16.msra.mxu0 %v4476
    %5901 = vmatprep.subr.bf16.mxu0 %v4485
    %5902 = vmatpush1.bf16.msra.mxu0 %v4484
    %5903 = vmatprep.subr.bf16.mxu0 %v4493
    %5904 = vmatpush1.bf16.msra.mxu0 %v4492
    %5905 = vmatprep.subr.bf16.mxu0 %v4501
    %5906 = vmatpush1.bf16.msra.mxu0 %v4500
    %5907 = vmatprep.subr.bf16.mxu0 %v4509
    %5908 = vmatpush1.bf16.msra.mxu0 %v4508
    %5909 = vmatprep.subr.bf16.mxu0 %v4517
    %5910 = vmatpush1.bf16.msra.mxu0 %v4516
    %5911 = vmatprep.subr.bf16.mxu0 %v4525
    %5912 = vmatpush1.bf16.msra.mxu0 %v4524
    %5913 = vmatprep.subr.bf16.mxu0 %v4533
    %5914 = vmatpush1.bf16.msra.mxu0 %v4532
    %5915 = vmatprep.subr.bf16.mxu0 %v4541
    %5916 = vmatpush1.bf16.msra.mxu0 %v4540
    %5917 = vmatprep.subr.bf16.mxu0 %v4549
    %5918 = vmatpush1.bf16.msra.mxu0 %v4548
    %5919 = vmatprep.subr.bf16.mxu0 %v4557
    %5920 = vmatpush1.bf16.msra.mxu0 %v4556
    %5921 = vmatprep.subr.bf16.mxu0 %v4565
    %5922 = vmatpush1.bf16.msra.mxu0 %v4564
    %5923 = vmatprep.subr.bf16.mxu0 %v4573
    %5924 = vmatpush1.bf16.msra.mxu0 %v4572
    %5925 = vmatprep.subr.bf16.mxu0 %v4581
    %5926 = vmatpush1.bf16.msra.mxu0 %v4580
    %5927 = vmatprep.subr.bf16.mxu0 %v4589
    %5928 = vmatpush1.bf16.msra.mxu0 %v4588
    %5929 = vmatprep.subr.bf16.mxu0 %v4597
    %5930 = vmatpush1.bf16.msra.mxu0 %v4596
    %5931 = vmatprep.mubr.bf16.mxu0 %v2247
    %5932 = vmatmul.mubr.bf16.gmra.mrb[0].mxu0 %v2246
    %v5933 = vpop.f32.mrb[0].mxu0
    %v5934 = vadd.f32 %v5893, %v5933
    %v5935 = vpop.f32.mrb[0].mxu0
    %v5936 = vadd.f32 %v5895, %v5935
    %v5937 = vpop.f32.mrb[0].mxu0
    %v5938 = vpop.f32.mrb[0].mxu0
    %5939 = vdwg.mxu0
    %5940 = vmatprep.subr.bf16.mxu0 %v4605
    %5941 = vmatpush1.bf16.msra.mxu0 %v4604
    %5942 = vmatprep.subr.bf16.mxu0 %v4613
    %5943 = vmatpush1.bf16.msra.mxu0 %v4612
    %5944 = vmatprep.subr.bf16.mxu0 %v4621
    %5945 = vmatpush1.bf16.msra.mxu0 %v4620
    %5946 = vmatprep.subr.bf16.mxu0 %v4629
    %5947 = vmatpush1.bf16.msra.mxu0 %v4628
    %5948 = vmatprep.subr.bf16.mxu0 %v4637
    %5949 = vmatpush1.bf16.msra.mxu0 %v4636
    %5950 = vmatprep.subr.bf16.mxu0 %v4645
    %5951 = vmatpush1.bf16.msra.mxu0 %v4644
    %5952 = vmatprep.subr.bf16.mxu0 %v4653
    %5953 = vmatpush1.bf16.msra.mxu0 %v4652
    %5954 = vmatprep.subr.bf16.mxu0 %v4661
    %5955 = vmatpush1.bf16.msra.mxu0 %v4660
    %5956 = vmatprep.subr.bf16.mxu0 %v4669
    %5957 = vmatpush1.bf16.msra.mxu0 %v4668
    %5958 = vmatprep.subr.bf16.mxu0 %v4677
    %5959 = vmatpush1.bf16.msra.mxu0 %v4676
    %5960 = vmatprep.subr.bf16.mxu0 %v4685
    %5961 = vmatpush1.bf16.msra.mxu0 %v4684
    %5962 = vmatprep.subr.bf16.mxu0 %v4693
    %5963 = vmatpush1.bf16.msra.mxu0 %v4692
    %5964 = vmatprep.subr.bf16.mxu0 %v4701
    %5965 = vmatpush1.bf16.msra.mxu0 %v4700
    %5966 = vmatprep.subr.bf16.mxu0 %v4709
    %5967 = vmatpush1.bf16.msra.mxu0 %v4708
    %5968 = vmatprep.subr.bf16.mxu0 %v4717
    %5969 = vmatpush1.bf16.msra.mxu0 %v4716
    %5970 = vmatprep.subr.bf16.mxu0 %v4725
    %5971 = vmatpush1.bf16.msra.mxu0 %v4724
    %5972 = vmatprep.mubr.bf16.mxu0 %v2249
    %5973 = vmatmul.mubr.bf16.gmra.mrb[0].mxu0 %v2248
    %v5974 = vpop.f32.mrb[0].mxu0
    %v5975 = vadd.f32 %v5934, %v5974
    %v5976 = vpop.f32.mrb[0].mxu0
    %v5977 = vadd.f32 %v5936, %v5976
    %v5978 = vpop.f32.mrb[0].mxu0
    %v5979 = vpop.f32.mrb[0].mxu0
    %5980 = vdwg.mxu0
    %5981 = vmatprep.subr.bf16.mxu0 %v4733
    %5982 = vmatpush1.bf16.msra.mxu0 %v4732
    %5983 = vmatprep.subr.bf16.mxu0 %v4741
    %5984 = vmatpush1.bf16.msra.mxu0 %v4740
    %5985 = vmatprep.subr.bf16.mxu0 %v4749
    %5986 = vmatpush1.bf16.msra.mxu0 %v4748
    %5987 = vmatprep.subr.bf16.mxu0 %v4757
    %5988 = vmatpush1.bf16.msra.mxu0 %v4756
    %5989 = vmatprep.subr.bf16.mxu0 %v4765
    %5990 = vmatpush1.bf16.msra.mxu0 %v4764
    %5991 = vmatprep.subr.bf16.mxu0 %v4773
    %5992 = vmatpush1.bf16.msra.mxu0 %v4772
    %5993 = vmatprep.subr.bf16.mxu0 %v4781
    %5994 = vmatpush1.bf16.msra.mxu0 %v4780
    %5995 = vmatprep.subr.bf16.mxu0 %v4789
    %5996 = vmatpush1.bf16.msra.mxu0 %v4788
    %5997 = vmatprep.subr.bf16.mxu0 %v4797
    %5998 = vmatpush1.bf16.msra.mxu0 %v4796
    %5999 = vmatprep.subr.bf16.mxu0 %v4805
    %6000 = vmatpush1.bf16.msra.mxu0 %v4804
    %6001 = vmatprep.subr.bf16.mxu0 %v4813
    %6002 = vmatpush1.bf16.msra.mxu0 %v4812
    %6003 = vmatprep.subr.bf16.mxu0 %v4821
    %6004 = vmatpush1.bf16.msra.mxu0 %v4820
    %6005 = vmatprep.subr.bf16.mxu0 %v4829
    %6006 = vmatpush1.bf16.msra.mxu0 %v4828
    %6007 = vmatprep.subr.bf16.mxu0 %v4837
    %6008 = vmatpush1.bf16.msra.mxu0 %v4836
    %6009 = vmatprep.subr.bf16.mxu0 %v4845
    %6010 = vmatpush1.bf16.msra.mxu0 %v4844
    %6011 = vmatprep.subr.bf16.mxu0 %v4853
    %6012 = vmatpush1.bf16.msra.mxu0 %v4852
    %6013 = vmatprep.mubr.bf16.mxu0 %v2251
    %6014 = vmatmul.mubr.bf16.gmra.mrb[0].mxu0 %v2250
    %v6015 = vpop.f32.mrb[0].mxu0
    %v6016 = vadd.f32 %v5975, %v6015
    %v6017 = vpop.f32.mrb[0].mxu0
    %v6018 = vadd.f32 %v5977, %v6017
    %v6019 = vpop.f32.mrb[0].mxu0
    %v6020 = vpop.f32.mrb[0].mxu0
    %6021 = vdwg.mxu0
    %v6022 = vmax.f32 %v5524, 0.0
    %v6023 = vmax.f32 %v5526, 0.0
    %v6024 = vmax.f32 %v5688, 0.0
    %v6025 = vmax.f32 %v5690, 0.0
    %v6026 = vmax.f32 %v5852, 0.0
    %v6027 = vmax.f32 %v5854, 0.0
    %v6028 = vmax.f32 %v6016, 0.0
    %v6029 = vmax.f32 %v6018, 0.0
    %v6030 = vpack.c.bf16 %v6022, %v6022
    %v6031 = vpack.c.bf16 %v6023, %v6023
    %v6032 = vpack.c.bf16 %v6024, %v6024
    %v6033 = vpack.c.bf16 %v6025, %v6025
    %v6034 = vpack.c.bf16 %v6026, %v6026
    %v6035 = vpack.c.bf16 %v6027, %v6027
    %v6036 = vpack.c.bf16 %v6028, %v6028
    %v6037 = vpack.c.bf16 %v6029, %v6029
    %v6038 = vld [vmem:[%s7] sm:$0xf]
    %v6039 = vld [vmem:[%s7 + $0x4] sm:$0xf]
    %v6040 = vld [vmem:[%s7 + $0x8] sm:$0xf]
    %v6041 = vld [vmem:[%s7 + $0xc] sm:$0xf]
    %v6042 = vld [vmem:[%s7 + $0x10] sm:$0xf]
    %v6043 = vld [vmem:[%s7 + $0x14] sm:$0xf]
    %v6044 = vld [vmem:[%s7 + $0x18] sm:$0xf]
    %v6045 = vld [vmem:[%s7 + $0x1c] sm:$0xf]
    %v6046 = vld [vmem:[%s7 + $0x20] sm:$0xf]
    %v6047 = vld [vmem:[%s7 + $0x24] sm:$0xf]
    %v6048 = vld [vmem:[%s7 + $0x28] sm:$0xf]
    %v6049 = vld [vmem:[%s7 + $0x2c] sm:$0xf]
    %v6050 = vld [vmem:[%s7 + $0x30] sm:$0xf]
    %v6051 = vld [vmem:[%s7 + $0x34] sm:$0xf]
    %v6052 = vld [vmem:[%s7 + $0x38] sm:$0xf]
    %v6053 = vld [vmem:[%s7 + $0x3c] sm:$0xf]
    %v6054 = vld [vmem:[%s7 + $0x40] sm:$0xf]
    %v6055 = vld [vmem:[%s7 + $0x44] sm:$0xf]
    %v6056 = vld [vmem:[%s7 + $0x48] sm:$0xf]
    %v6057 = vld [vmem:[%s7 + $0x4c] sm:$0xf]
    %v6058 = vld [vmem:[%s7 + $0x50] sm:$0xf]
    %v6059 = vld [vmem:[%s7 + $0x54] sm:$0xf]
    %v6060 = vld [vmem:[%s7 + $0x58] sm:$0xf]
    %v6061 = vld [vmem:[%s7 + $0x5c] sm:$0xf]
    %v6062 = vld [vmem:[%s7 + $0x60] sm:$0xf]
    %v6063 = vld [vmem:[%s7 + $0x64] sm:$0xf]
    %v6064 = vld [vmem:[%s7 + $0x68] sm:$0xf]
    %v6065 = vld [vmem:[%s7 + $0x6c] sm:$0xf]
    %v6066 = vld [vmem:[%s7 + $0x70] sm:$0xf]
    %v6067 = vld [vmem:[%s7 + $0x74] sm:$0xf]
    %v6068 = vld [vmem:[%s7 + $0x78] sm:$0xf]
    %v6069 = vld [vmem:[%s7 + $0x7c] sm:$0xf]
    %v6070 = vld [vmem:[%s7 + $0x80] sm:$0xf]
    %v6071 = vld [vmem:[%s7 + $0x84] sm:$0xf]
    %v6072 = vld [vmem:[%s7 + $0x88] sm:$0xf]
    %v6073 = vld [vmem:[%s7 + $0x8c] sm:$0xf]
    %v6074 = vld [vmem:[%s7 + $0x90] sm:$0xf]
    %v6075 = vld [vmem:[%s7 + $0x94] sm:$0xf]
    %v6076 = vld [vmem:[%s7 + $0x98] sm:$0xf]
    %v6077 = vld [vmem:[%s7 + $0x9c] sm:$0xf]
    %v6078 = vld [vmem:[%s7 + $0xa0] sm:$0xf]
    %v6079 = vld [vmem:[%s7 + $0xa4] sm:$0xf]
    %v6080 = vld [vmem:[%s7 + $0xa8] sm:$0xf]
    %v6081 = vld [vmem:[%s7 + $0xac] sm:$0xf]
    %v6082 = vld [vmem:[%s7 + $0xb0] sm:$0xf]
    %v6083 = vld [vmem:[%s7 + $0xb4] sm:$0xf]
    %v6084 = vld [vmem:[%s7 + $0xb8] sm:$0xf]
    %v6085 = vld [vmem:[%s7 + $0xbc] sm:$0xf]
    %v6086 = vld [vmem:[%s7 + $0xc0] sm:$0xf]
    %v6087 = vld [vmem:[%s7 + $0xc4] sm:$0xf]
    %v6088 = vld [vmem:[%s7 + $0xc8] sm:$0xf]
    %v6089 = vld [vmem:[%s7 + $0xcc] sm:$0xf]
    %v6090 = vld [vmem:[%s7 + $0xd0] sm:$0xf]
    %v6091 = vld [vmem:[%s7 + $0xd4] sm:$0xf]
    %v6092 = vld [vmem:[%s7 + $0xd8] sm:$0xf]
    %v6093 = vld [vmem:[%s7 + $0xdc] sm:$0xf]
    %v6094 = vld [vmem:[%s7 + $0xe0] sm:$0xf]
    %v6095 = vld [vmem:[%s7 + $0xe4] sm:$0xf]
    %v6096 = vld [vmem:[%s7 + $0xe8] sm:$0xf]
    %v6097 = vld [vmem:[%s7 + $0xec] sm:$0xf]
    %v6098 = vld [vmem:[%s7 + $0xf0] sm:$0xf]
    %v6099 = vld [vmem:[%s7 + $0xf4] sm:$0xf]
    %v6100 = vld [vmem:[%s7 + $0xf8] sm:$0xf]
    %v6101 = vld [vmem:[%s7 + $0xfc] sm:$0xf]
    %v6102 = vld [vmem:[%s7 + $0x100] sm:$0xf]
    %v6103 = vld [vmem:[%s7 + $0x104] sm:$0xf]
    %v6104 = vld [vmem:[%s7 + $0x108] sm:$0xf]
    %v6105 = vld [vmem:[%s7 + $0x10c] sm:$0xf]
    %v6106 = vld [vmem:[%s7 + $0x110] sm:$0xf]
    %v6107 = vld [vmem:[%s7 + $0x114] sm:$0xf]
    %v6108 = vld [vmem:[%s7 + $0x118] sm:$0xf]
    %v6109 = vld [vmem:[%s7 + $0x11c] sm:$0xf]
    %v6110 = vld [vmem:[%s7 + $0x120] sm:$0xf]
    %v6111 = vld [vmem:[%s7 + $0x124] sm:$0xf]
    %v6112 = vld [vmem:[%s7 + $0x128] sm:$0xf]
    %v6113 = vld [vmem:[%s7 + $0x12c] sm:$0xf]
    %v6114 = vld [vmem:[%s7 + $0x130] sm:$0xf]
    %v6115 = vld [vmem:[%s7 + $0x134] sm:$0xf]
    %v6116 = vld [vmem:[%s7 + $0x138] sm:$0xf]
    %v6117 = vld [vmem:[%s7 + $0x13c] sm:$0xf]
    %v6118 = vld [vmem:[%s7 + $0x140] sm:$0xf]
    %v6119 = vld [vmem:[%s7 + $0x144] sm:$0xf]
    %v6120 = vld [vmem:[%s7 + $0x148] sm:$0xf]
    %v6121 = vld [vmem:[%s7 + $0x14c] sm:$0xf]
    %v6122 = vld [vmem:[%s7 + $0x150] sm:$0xf]
    %v6123 = vld [vmem:[%s7 + $0x154] sm:$0xf]
    %v6124 = vld [vmem:[%s7 + $0x158] sm:$0xf]
    %v6125 = vld [vmem:[%s7 + $0x15c] sm:$0xf]
    %v6126 = vld [vmem:[%s7 + $0x160] sm:$0xf]
    %v6127 = vld [vmem:[%s7 + $0x164] sm:$0xf]
    %v6128 = vld [vmem:[%s7 + $0x168] sm:$0xf]
    %v6129 = vld [vmem:[%s7 + $0x16c] sm:$0xf]
    %v6130 = vld [vmem:[%s7 + $0x170] sm:$0xf]
    %v6131 = vld [vmem:[%s7 + $0x174] sm:$0xf]
    %v6132 = vld [vmem:[%s7 + $0x178] sm:$0xf]
    %v6133 = vld [vmem:[%s7 + $0x17c] sm:$0xf]
    %v6134 = vld [vmem:[%s7 + $0x180] sm:$0xf]
    %v6135 = vld [vmem:[%s7 + $0x184] sm:$0xf]
    %v6136 = vld [vmem:[%s7 + $0x188] sm:$0xf]
    %v6137 = vld [vmem:[%s7 + $0x18c] sm:$0xf]
    %v6138 = vld [vmem:[%s7 + $0x190] sm:$0xf]
    %v6139 = vld [vmem:[%s7 + $0x194] sm:$0xf]
    %v6140 = vld [vmem:[%s7 + $0x198] sm:$0xf]
    %v6141 = vld [vmem:[%s7 + $0x19c] sm:$0xf]
    %v6142 = vld [vmem:[%s7 + $0x1a0] sm:$0xf]
    %v6143 = vld [vmem:[%s7 + $0x1a4] sm:$0xf]
    %v6144 = vld [vmem:[%s7 + $0x1a8] sm:$0xf]
    %v6145 = vld [vmem:[%s7 + $0x1ac] sm:$0xf]
    %v6146 = vld [vmem:[%s7 + $0x1b0] sm:$0xf]
    %v6147 = vld [vmem:[%s7 + $0x1b4] sm:$0xf]
    %v6148 = vld [vmem:[%s7 + $0x1b8] sm:$0xf]
    %v6149 = vld [vmem:[%s7 + $0x1bc] sm:$0xf]
    %v6150 = vld [vmem:[%s7 + $0x1c0] sm:$0xf]
    %v6151 = vld [vmem:[%s7 + $0x1c4] sm:$0xf]
    %v6152 = vld [vmem:[%s7 + $0x1c8] sm:$0xf]
    %v6153 = vld [vmem:[%s7 + $0x1cc] sm:$0xf]
    %v6154 = vld [vmem:[%s7 + $0x1d0] sm:$0xf]
    %v6155 = vld [vmem:[%s7 + $0x1d4] sm:$0xf]
    %v6156 = vld [vmem:[%s7 + $0x1d8] sm:$0xf]
    %v6157 = vld [vmem:[%s7 + $0x1dc] sm:$0xf]
    %v6158 = vld [vmem:[%s7 + $0x1e0] sm:$0xf]
    %v6159 = vld [vmem:[%s7 + $0x1e4] sm:$0xf]
    %v6160 = vld [vmem:[%s7 + $0x1e8] sm:$0xf]
    %v6161 = vld [vmem:[%s7 + $0x1ec] sm:$0xf]
    %v6162 = vld [vmem:[%s7 + $0x1f0] sm:$0xf]
    %v6163 = vld [vmem:[%s7 + $0x1f4] sm:$0xf]
    %v6164 = vld [vmem:[%s7 + $0x1f8] sm:$0xf]
    %v6165 = vld [vmem:[%s7 + $0x1fc] sm:$0xf]
    %v6166 = vld [vmem:[#allocation14] sm:$0x1]
    %v6168 = vlaneseq
    %v6169 = vshrl.u32 %v6168, 7
    %v6170 = vsub.s32 0, %v6169
    %v6171 = vrot.slane %v6166, %v6170
    %v6301 = vunpack.c.l.b16 %v6038
    %v6302 = vunpack.c.l.b16 %v6039
    %v6303 = vunpack.c.l.b16 %v6040
    %v6304 = vunpack.c.l.b16 %v6041
    %v6305 = vunpack.c.l.b16 %v6042
    %v6306 = vunpack.c.l.b16 %v6043
    %v6307 = vunpack.c.l.b16 %v6044
    %v6308 = vunpack.c.l.b16 %v6045
    %v6309 = vunpack.c.l.b16 %v6046
    %v6310 = vunpack.c.l.b16 %v6047
    %v6311 = vunpack.c.l.b16 %v6048
    %v6312 = vunpack.c.l.b16 %v6049
    %v6313 = vunpack.c.l.b16 %v6050
    %v6314 = vunpack.c.l.b16 %v6051
    %v6315 = vunpack.c.l.b16 %v6052
    %v6316 = vunpack.c.l.b16 %v6053
    %v6317 = vunpack.c.l.b16 %v6054
    %v6318 = vunpack.c.l.b16 %v6055
    %v6319 = vunpack.c.l.b16 %v6056
    %v6320 = vunpack.c.l.b16 %v6057
    %v6321 = vunpack.c.l.b16 %v6058
    %v6322 = vunpack.c.l.b16 %v6059
    %v6323 = vunpack.c.l.b16 %v6060
    %v6324 = vunpack.c.l.b16 %v6061
    %v6325 = vunpack.c.l.b16 %v6062
    %v6326 = vunpack.c.l.b16 %v6063
    %v6327 = vunpack.c.l.b16 %v6064
    %v6328 = vunpack.c.l.b16 %v6065
    %v6329 = vunpack.c.l.b16 %v6066
    %v6330 = vunpack.c.l.b16 %v6067
    %v6331 = vunpack.c.l.b16 %v6068
    %v6332 = vunpack.c.l.b16 %v6069
    %v6333 = vunpack.c.l.b16 %v6070
    %v6334 = vunpack.c.l.b16 %v6071
    %v6335 = vunpack.c.l.b16 %v6072
    %v6336 = vunpack.c.l.b16 %v6073
    %v6337 = vunpack.c.l.b16 %v6074
    %v6338 = vunpack.c.l.b16 %v6075
    %v6339 = vunpack.c.l.b16 %v6076
    %v6340 = vunpack.c.l.b16 %v6077
    %v6341 = vunpack.c.l.b16 %v6078
    %v6342 = vunpack.c.l.b16 %v6079
    %v6343 = vunpack.c.l.b16 %v6080
    %v6344 = vunpack.c.l.b16 %v6081
    %v6345 = vunpack.c.l.b16 %v6082
    %v6346 = vunpack.c.l.b16 %v6083
    %v6347 = vunpack.c.l.b16 %v6084
    %v6348 = vunpack.c.l.b16 %v6085
    %v6349 = vunpack.c.l.b16 %v6086
    %v6350 = vunpack.c.l.b16 %v6087
    %v6351 = vunpack.c.l.b16 %v6088
    %v6352 = vunpack.c.l.b16 %v6089
    %v6353 = vunpack.c.l.b16 %v6090
    %v6354 = vunpack.c.l.b16 %v6091
    %v6355 = vunpack.c.l.b16 %v6092
    %v6356 = vunpack.c.l.b16 %v6093
    %v6357 = vunpack.c.l.b16 %v6094
    %v6358 = vunpack.c.l.b16 %v6095
    %v6359 = vunpack.c.l.b16 %v6096
    %v6360 = vunpack.c.l.b16 %v6097
    %v6361 = vunpack.c.l.b16 %v6098
    %v6362 = vunpack.c.l.b16 %v6099
    %v6363 = vunpack.c.l.b16 %v6100
    %v6364 = vunpack.c.l.b16 %v6101
    %v6365 = vunpack.c.l.b16 %v6102
    %v6366 = vunpack.c.l.b16 %v6103
    %v6367 = vunpack.c.l.b16 %v6104
    %v6368 = vunpack.c.l.b16 %v6105
    %v6369 = vunpack.c.l.b16 %v6106
    %v6370 = vunpack.c.l.b16 %v6107
    %v6371 = vunpack.c.l.b16 %v6108
    %v6372 = vunpack.c.l.b16 %v6109
    %v6373 = vunpack.c.l.b16 %v6110
    %v6374 = vunpack.c.l.b16 %v6111
    %v6375 = vunpack.c.l.b16 %v6112
    %v6376 = vunpack.c.l.b16 %v6113
    %v6377 = vunpack.c.l.b16 %v6114
    %v6378 = vunpack.c.l.b16 %v6115
    %v6379 = vunpack.c.l.b16 %v6116
    %v6380 = vunpack.c.l.b16 %v6117
    %v6381 = vunpack.c.l.b16 %v6118
    %v6382 = vunpack.c.l.b16 %v6119
    %v6383 = vunpack.c.l.b16 %v6120
    %v6384 = vunpack.c.l.b16 %v6121
    %v6385 = vunpack.c.l.b16 %v6122
    %v6386 = vunpack.c.l.b16 %v6123
    %v6387 = vunpack.c.l.b16 %v6124
    %v6388 = vunpack.c.l.b16 %v6125
    %v6389 = vunpack.c.l.b16 %v6126
    %v6390 = vunpack.c.l.b16 %v6127
    %v6391 = vunpack.c.l.b16 %v6128
    %v6392 = vunpack.c.l.b16 %v6129
    %v6393 = vunpack.c.l.b16 %v6130
    %v6394 = vunpack.c.l.b16 %v6131
    %v6395 = vunpack.c.l.b16 %v6132
    %v6396 = vunpack.c.l.b16 %v6133
    %v6397 = vunpack.c.l.b16 %v6134
    %v6398 = vunpack.c.l.b16 %v6135
    %v6399 = vunpack.c.l.b16 %v6136
    %v6400 = vunpack.c.l.b16 %v6137
    %v6401 = vunpack.c.l.b16 %v6138
    %v6402 = vunpack.c.l.b16 %v6139
    %v6403 = vunpack.c.l.b16 %v6140
    %v6404 = vunpack.c.l.b16 %v6141
    %v6405 = vunpack.c.l.b16 %v6142
    %v6406 = vunpack.c.l.b16 %v6143
    %v6407 = vunpack.c.l.b16 %v6144
    %v6408 = vunpack.c.l.b16 %v6145
    %v6409 = vunpack.c.l.b16 %v6146
    %v6410 = vunpack.c.l.b16 %v6147
    %v6411 = vunpack.c.l.b16 %v6148
    %v6412 = vunpack.c.l.b16 %v6149
    %v6413 = vunpack.c.l.b16 %v6150
    %v6414 = vunpack.c.l.b16 %v6151
    %v6415 = vunpack.c.l.b16 %v6152
    %v6416 = vunpack.c.l.b16 %v6153
    %v6417 = vunpack.c.l.b16 %v6154
    %v6418 = vunpack.c.l.b16 %v6155
    %v6419 = vunpack.c.l.b16 %v6156
    %v6420 = vunpack.c.l.b16 %v6157
    %v6421 = vunpack.c.l.b16 %v6158
    %v6422 = vunpack.c.l.b16 %v6159
    %v6423 = vunpack.c.l.b16 %v6160
    %v6424 = vunpack.c.l.b16 %v6161
    %v6425 = vunpack.c.l.b16 %v6162
    %v6426 = vunpack.c.l.b16 %v6163
    %v6427 = vunpack.c.l.b16 %v6164
    %v6428 = vunpack.c.l.b16 %v6165
    %v6429 = vpack.c.b16 %v6302, %v6301
    %v6430 = vpack.c.b16 %v6304, %v6303
    %v6431 = vpack.c.b16 %v6306, %v6305
    %v6432 = vpack.c.b16 %v6308, %v6307
    %v6433 = vpack.c.b16 %v6310, %v6309
    %v6434 = vpack.c.b16 %v6312, %v6311
    %v6435 = vpack.c.b16 %v6314, %v6313
    %v6436 = vpack.c.b16 %v6316, %v6315
    %v6437 = vpack.c.b16 %v6318, %v6317
    %v6438 = vpack.c.b16 %v6320, %v6319
    %v6439 = vpack.c.b16 %v6322, %v6321
    %v6440 = vpack.c.b16 %v6324, %v6323
    %v6441 = vpack.c.b16 %v6326, %v6325
    %v6442 = vpack.c.b16 %v6328, %v6327
    %v6443 = vpack.c.b16 %v6330, %v6329
    %v6444 = vpack.c.b16 %v6332, %v6331
    %v6445 = vpack.c.b16 %v6334, %v6333
    %v6446 = vpack.c.b16 %v6336, %v6335
    %v6447 = vpack.c.b16 %v6338, %v6337
    %v6448 = vpack.c.b16 %v6340, %v6339
    %v6449 = vpack.c.b16 %v6342, %v6341
    %v6450 = vpack.c.b16 %v6344, %v6343
    %v6451 = vpack.c.b16 %v6346, %v6345
    %v6452 = vpack.c.b16 %v6348, %v6347
    %v6453 = vpack.c.b16 %v6350, %v6349
    %v6454 = vpack.c.b16 %v6352, %v6351
    %v6455 = vpack.c.b16 %v6354, %v6353
    %v6456 = vpack.c.b16 %v6356, %v6355
    %v6457 = vpack.c.b16 %v6358, %v6357
    %v6458 = vpack.c.b16 %v6360, %v6359
    %v6459 = vpack.c.b16 %v6362, %v6361
    %v6460 = vpack.c.b16 %v6364, %v6363
    %v6461 = vpack.c.b16 %v6366, %v6365
    %v6462 = vpack.c.b16 %v6368, %v6367
    %v6463 = vpack.c.b16 %v6370, %v6369
    %v6464 = vpack.c.b16 %v6372, %v6371
    %v6465 = vpack.c.b16 %v6374, %v6373
    %v6466 = vpack.c.b16 %v6376, %v6375
    %v6467 = vpack.c.b16 %v6378, %v6377
    %v6468 = vpack.c.b16 %v6380, %v6379
    %v6469 = vpack.c.b16 %v6382, %v6381
    %v6470 = vpack.c.b16 %v6384, %v6383
    %v6471 = vpack.c.b16 %v6386, %v6385
    %v6472 = vpack.c.b16 %v6388, %v6387
    %v6473 = vpack.c.b16 %v6390, %v6389
    %v6474 = vpack.c.b16 %v6392, %v6391
    %v6475 = vpack.c.b16 %v6394, %v6393
    %v6476 = vpack.c.b16 %v6396, %v6395
    %v6477 = vpack.c.b16 %v6398, %v6397
    %v6478 = vpack.c.b16 %v6400, %v6399
    %v6479 = vpack.c.b16 %v6402, %v6401
    %v6480 = vpack.c.b16 %v6404, %v6403
    %v6481 = vpack.c.b16 %v6406, %v6405
    %v6482 = vpack.c.b16 %v6408, %v6407
    %v6483 = vpack.c.b16 %v6410, %v6409
    %v6484 = vpack.c.b16 %v6412, %v6411
    %v6485 = vpack.c.b16 %v6414, %v6413
    %v6486 = vpack.c.b16 %v6416, %v6415
    %v6487 = vpack.c.b16 %v6418, %v6417
    %v6488 = vpack.c.b16 %v6420, %v6419
    %v6489 = vpack.c.b16 %v6422, %v6421
    %v6490 = vpack.c.b16 %v6424, %v6423
    %v6491 = vpack.c.b16 %v6426, %v6425
    %v6492 = vpack.c.b16 %v6428, %v6427
    %6557 = vmatprep.subr.bf16.mxu0 0
    %6558 = vmatpush1.bf16.msra.mxu0 %v6429
    %6559 = vmatprep.subr.bf16.mxu0 0
    %6560 = vmatpush1.bf16.msra.mxu0 %v6430
    %6561 = vmatprep.subr.bf16.mxu0 0
    %6562 = vmatpush1.bf16.msra.mxu0 %v6431
    %6563 = vmatprep.subr.bf16.mxu0 0
    %6564 = vmatpush1.bf16.msra.mxu0 %v6432
    %6565 = vmatprep.subr.bf16.mxu0 0
    %6566 = vmatpush1.bf16.msra.mxu0 %v6433
    %6567 = vmatprep.subr.bf16.mxu0 0
    %6568 = vmatpush1.bf16.msra.mxu0 %v6434
    %6569 = vmatprep.subr.bf16.mxu0 0
    %6570 = vmatpush1.bf16.msra.mxu0 %v6435
    %6571 = vmatprep.subr.bf16.mxu0 0
    %6572 = vmatpush1.bf16.msra.mxu0 %v6436
    %6573 = vmatprep.subr.bf16.mxu0 0
    %6574 = vmatpush1.bf16.msra.mxu0 %v6437
    %6575 = vmatprep.subr.bf16.mxu0 0
    %6576 = vmatpush1.bf16.msra.mxu0 %v6438
    %6577 = vmatprep.subr.bf16.mxu0 0
    %6578 = vmatpush1.bf16.msra.mxu0 %v6439
    %6579 = vmatprep.subr.bf16.mxu0 0
    %6580 = vmatpush1.bf16.msra.mxu0 %v6440
    %6581 = vmatprep.subr.bf16.mxu0 0
    %6582 = vmatpush1.bf16.msra.mxu0 %v6441
    %6583 = vmatprep.subr.bf16.mxu0 0
    %6584 = vmatpush1.bf16.msra.mxu0 %v6442
    %6585 = vmatprep.subr.bf16.mxu0 0
    %6586 = vmatpush1.bf16.msra.mxu0 %v6443
    %6587 = vmatprep.subr.bf16.mxu0 0
    %6588 = vmatpush1.bf16.msra.mxu0 %v6444
    %6589 = vmatprep.mubr.bf16.mxu0 %v6031
    %6590 = vmatmul.mubr.bf16.gmra.mrb[0].mxu0 %v6030
    %v6591 = vpop.f32.mrb[0].mxu0
    %v6592 = vadd.f32 %v6171, %v6591
    %v6593 = vpop.f32.mrb[0].mxu0
    %v6594 = vpop.f32.mrb[0].mxu0
    %v6595 = vpop.f32.mrb[0].mxu0
    %6596 = vdwg.mxu0
    %6597 = vmatprep.subr.bf16.mxu0 0
    %6598 = vmatpush1.bf16.msra.mxu0 %v6445
    %6599 = vmatprep.subr.bf16.mxu0 0
    %6600 = vmatpush1.bf16.msra.mxu0 %v6446
    %6601 = vmatprep.subr.bf16.mxu0 0
    %6602 = vmatpush1.bf16.msra.mxu0 %v6447
    %6603 = vmatprep.subr.bf16.mxu0 0
    %6604 = vmatpush1.bf16.msra.mxu0 %v6448
    %6605 = vmatprep.subr.bf16.mxu0 0
    %6606 = vmatpush1.bf16.msra.mxu0 %v6449
    %6607 = vmatprep.subr.bf16.mxu0 0
    %6608 = vmatpush1.bf16.msra.mxu0 %v6450
    %6609 = vmatprep.subr.bf16.mxu0 0
    %6610 = vmatpush1.bf16.msra.mxu0 %v6451
    %6611 = vmatprep.subr.bf16.mxu0 0
    %6612 = vmatpush1.bf16.msra.mxu0 %v6452
    %6613 = vmatprep.subr.bf16.mxu0 0
    %6614 = vmatpush1.bf16.msra.mxu0 %v6453
    %6615 = vmatprep.subr.bf16.mxu0 0
    %6616 = vmatpush1.bf16.msra.mxu0 %v6454
    %6617 = vmatprep.subr.bf16.mxu0 0
    %6618 = vmatpush1.bf16.msra.mxu0 %v6455
    %6619 = vmatprep.subr.bf16.mxu0 0
    %6620 = vmatpush1.bf16.msra.mxu0 %v6456
    %6621 = vmatprep.subr.bf16.mxu0 0
    %6622 = vmatpush1.bf16.msra.mxu0 %v6457
    %6623 = vmatprep.subr.bf16.mxu0 0
    %6624 = vmatpush1.bf16.msra.mxu0 %v6458
    %6625 = vmatprep.subr.bf16.mxu0 0
    %6626 = vmatpush1.bf16.msra.mxu0 %v6459
    %6627 = vmatprep.subr.bf16.mxu0 0
    %6628 = vmatpush1.bf16.msra.mxu0 %v6460
    %6629 = vmatprep.mubr.bf16.mxu0 %v6033
    %6630 = vmatmul.mubr.bf16.gmra.mrb[0].mxu0 %v6032
    %v6631 = vpop.f32.mrb[0].mxu0
    %v6632 = vadd.f32 %v6592, %v6631
    %v6633 = vpop.f32.mrb[0].mxu0
    %v6634 = vpop.f32.mrb[0].mxu0
    %v6635 = vpop.f32.mrb[0].mxu0
    %6636 = vdwg.mxu0
    %6637 = vmatprep.subr.bf16.mxu0 0
    %6638 = vmatpush1.bf16.msra.mxu0 %v6461
    %6639 = vmatprep.subr.bf16.mxu0 0
    %6640 = vmatpush1.bf16.msra.mxu0 %v6462
    %6641 = vmatprep.subr.bf16.mxu0 0
    %6642 = vmatpush1.bf16.msra.mxu0 %v6463
    %6643 = vmatprep.subr.bf16.mxu0 0
    %6644 = vmatpush1.bf16.msra.mxu0 %v6464
    %6645 = vmatprep.subr.bf16.mxu0 0
    %6646 = vmatpush1.bf16.msra.mxu0 %v6465
    %6647 = vmatprep.subr.bf16.mxu0 0
    %6648 = vmatpush1.bf16.msra.mxu0 %v6466
    %6649 = vmatprep.subr.bf16.mxu0 0
    %6650 = vmatpush1.bf16.msra.mxu0 %v6467
    %6651 = vmatprep.subr.bf16.mxu0 0
    %6652 = vmatpush1.bf16.msra.mxu0 %v6468
    %6653 = vmatprep.subr.bf16.mxu0 0
    %6654 = vmatpush1.bf16.msra.mxu0 %v6469
    %6655 = vmatprep.subr.bf16.mxu0 0
    %6656 = vmatpush1.bf16.msra.mxu0 %v6470
    %6657 = vmatprep.subr.bf16.mxu0 0
    %6658 = vmatpush1.bf16.msra.mxu0 %v6471
    %6659 = vmatprep.subr.bf16.mxu0 0
    %6660 = vmatpush1.bf16.msra.mxu0 %v6472
    %6661 = vmatprep.subr.bf16.mxu0 0
    %6662 = vmatpush1.bf16.msra.mxu0 %v6473
    %6663 = vmatprep.subr.bf16.mxu0 0
    %6664 = vmatpush1.bf16.msra.mxu0 %v6474
    %6665 = vmatprep.subr.bf16.mxu0 0
    %6666 = vmatpush1.bf16.msra.mxu0 %v6475
    %6667 = vmatprep.subr.bf16.mxu0 0
    %6668 = vmatpush1.bf16.msra.mxu0 %v6476
    %6669 = vmatprep.mubr.bf16.mxu0 %v6035
    %6670 = vmatmul.mubr.bf16.gmra.mrb[0].mxu0 %v6034
    %v6671 = vpop.f32.mrb[0].mxu0
    %v6672 = vadd.f32 %v6632, %v6671
    %v6673 = vpop.f32.mrb[0].mxu0
    %v6674 = vpop.f32.mrb[0].mxu0
    %v6675 = vpop.f32.mrb[0].mxu0
    %6676 = vdwg.mxu0
    %6677 = vmatprep.subr.bf16.mxu0 0
    %6678 = vmatpush1.bf16.msra.mxu0 %v6477
    %6679 = vmatprep.subr.bf16.mxu0 0
    %6680 = vmatpush1.bf16.msra.mxu0 %v6478
    %6681 = vmatprep.subr.bf16.mxu0 0
    %6682 = vmatpush1.bf16.msra.mxu0 %v6479
    %6683 = vmatprep.subr.bf16.mxu0 0
    %6684 = vmatpush1.bf16.msra.mxu0 %v6480
    %6685 = vmatprep.subr.bf16.mxu0 0
    %6686 = vmatpush1.bf16.msra.mxu0 %v6481
    %6687 = vmatprep.subr.bf16.mxu0 0
    %6688 = vmatpush1.bf16.msra.mxu0 %v6482
    %6689 = vmatprep.subr.bf16.mxu0 0
    %6690 = vmatpush1.bf16.msra.mxu0 %v6483
    %6691 = vmatprep.subr.bf16.mxu0 0
    %6692 = vmatpush1.bf16.msra.mxu0 %v6484
    %6693 = vmatprep.subr.bf16.mxu0 0
    %6694 = vmatpush1.bf16.msra.mxu0 %v6485
    %6695 = vmatprep.subr.bf16.mxu0 0
    %6696 = vmatpush1.bf16.msra.mxu0 %v6486
    %6697 = vmatprep.subr.bf16.mxu0 0
    %6698 = vmatpush1.bf16.msra.mxu0 %v6487
    %6699 = vmatprep.subr.bf16.mxu0 0
    %6700 = vmatpush1.bf16.msra.mxu0 %v6488
    %6701 = vmatprep.subr.bf16.mxu0 0
    %6702 = vmatpush1.bf16.msra.mxu0 %v6489
    %6703 = vmatprep.subr.bf16.mxu0 0
    %6704 = vmatpush1.bf16.msra.mxu0 %v6490
    %6705 = vmatprep.subr.bf16.mxu0 0
    %6706 = vmatpush1.bf16.msra.mxu0 %v6491
    %6707 = vmatprep.subr.bf16.mxu0 0
    %6708 = vmatpush1.bf16.msra.mxu0 %v6492
    %6709 = vmatprep.mubr.bf16.mxu0 %v6037
    %6710 = vmatmul.mubr.bf16.gmra.mrb[0].mxu0 %v6036
    %v6711 = vpop.f32.mrb[0].mxu0
    %v6712 = vadd.f32 %v6672, %v6711
    %v6713 = vpop.f32.mrb[0].mxu0
    %v6714 = vpop.f32.mrb[0].mxu0
    %v6715 = vpop.f32.mrb[0].mxu0
    %6716 = vdwg.mxu0
    %v6717 = vmax.f32 %v6712, 0.0
    %v6718 = vpack.c.bf16 %v6717, %v6717
    %v6719 = vld [vmem:[#allocation16] sm:$0xf]
    %v6720 = vld [vmem:[#allocation16 + $0x4] sm:$0xf]
    %v6721 = vld [vmem:[#allocation16 + $0x8] sm:$0xf]
    %v6722 = vld [vmem:[#allocation16 + $0xc] sm:$0xf]
    %v6723 = vld [vmem:[#allocation16 + $0x10] sm:$0xf]
    %v6724 = vld [vmem:[#allocation16 + $0x14] sm:$0xf]
    %v6725 = vld [vmem:[#allocation16 + $0x18] sm:$0xf]
    %v6726 = vld [vmem:[#allocation16 + $0x1c] sm:$0xf]
    %v6727 = vld [vmem:[#allocation17] sm:$0x1]
    %v6729 = vlaneseq
    %v6730 = vshrl.u32 %v6729, 7
    %v6731 = vsub.s32 0, %v6730
    %v6732 = vrot.slane %v6727, %v6731
    %v6742 = vunpack.c.l.b16 %v6719
    %v6743 = vunpack.c.l.b16 %v6720
    %v6744 = vunpack.c.l.b16 %v6721
    %v6745 = vunpack.c.l.b16 %v6722
    %v6746 = vunpack.c.l.b16 %v6723
    %v6747 = vunpack.c.l.b16 %v6724
    %v6748 = vunpack.c.l.b16 %v6725
    %v6749 = vunpack.c.l.b16 %v6726
    %v6750 = vpack.c.b16 %v6743, %v6742
    %v6751 = vpack.c.b16 %v6745, %v6744
    %v6752 = vpack.c.b16 %v6747, %v6746
    %v6753 = vpack.c.b16 %v6749, %v6748
    %vm6758 = vcmask 523264
    %v6760 = vsel %vm6758, %v6718, 0
    %6762 = vmatprep.subr.bf16.mxu0 0
    %6763 = vmatpush1.bf16.msra.mxu0 %v6750
    %6764 = vmatprep.subr.bf16.mxu0 0
    %6765 = vmatpush1.bf16.msra.mxu0 %v6751
    %6766 = vmatprep.subr.bf16.mxu0 0
    %6767 = vmatpush1.bf16.msra.mxu0 %v6752
    %6768 = vmatprep.subr.bf16.mxu0 0
    %6769 = vmatpush1.bf16.msra.mxu0 %v6753
    %6770 = vmatprep.subr.bf16.mxu0 0
    %6771 = vmatpush1.bf16.msra.mxu0 0
    %6772 = vmatprep.subr.bf16.mxu0 0
    %6773 = vmatpush1.bf16.msra.mxu0 0
    %6774 = vmatprep.subr.bf16.mxu0 0
    %6775 = vmatpush1.bf16.msra.mxu0 0
    %6776 = vmatprep.subr.bf16.mxu0 0
    %6777 = vmatpush1.bf16.msra.mxu0 0
    %6778 = vmatprep.subr.bf16.mxu0 0
    %6779 = vmatpush1.bf16.msra.mxu0 0
    %6780 = vmatprep.subr.bf16.mxu0 0
    %6781 = vmatpush1.bf16.msra.mxu0 0
    %6782 = vmatprep.subr.bf16.mxu0 0
    %6783 = vmatpush1.bf16.msra.mxu0 0
    %6784 = vmatprep.subr.bf16.mxu0 0
    %6785 = vmatpush1.bf16.msra.mxu0 0
    %6786 = vmatprep.subr.bf16.mxu0 0
    %6787 = vmatpush1.bf16.msra.mxu0 0
    %6788 = vmatprep.subr.bf16.mxu0 0
    %6789 = vmatpush1.bf16.msra.mxu0 0
    %6790 = vmatprep.subr.bf16.mxu0 0
    %6791 = vmatpush1.bf16.msra.mxu0 0
    %6792 = vmatprep.subr.bf16.mxu0 0
    %6793 = vmatpush1.bf16.msra.mxu0 0
    %6794 = vmatprep.mubr.bf16.mxu0 0
    %6795 = vmatmul.mubr.bf16.gmra.mrb[0].mxu0 %v6760
    %v6796 = vpop.f32.mrb[0].mxu0
    %v6797 = vadd.f32 %v6732, %v6796
    %v6798 = vpop.f32.mrb[0].mxu0
    %v6799 = vpop.f32.mrb[0].mxu0
    %v6800 = vpop.f32.mrb[0].mxu0
    %6801 = vdwg.mxu0
    %6802 = vst [vmem:[#allocation19] sm:$0xff] %v6797
    // Predicated region
    $region86: #{_mlp_forward_padded.1} parent=1 // pred_check
      _
    $region87: #{_mlp_forward_padded.1} parent=1 // pred_check_branch
      %6804 = sbr.rel (0) target = $region89
    $region88: #{_mlp_forward_padded.1} parent=1 // pred_region
      %s6806 = ssub.s32 128, 128
      %6807 = vsyncadd [#allocation4], %s6806
      %s6809 = sshll.u32 [#allocation19], 4
      %s6810 = int_to_ptr.vmem [resolvable:$true] %s6809
      %6812 = dma.vmem_to_hbm [thread:$0]  %s6810, 128, %s11, [#allocation4]
    $region89: #{_mlp_forward_padded.1} parent=1 // pred_fallthru
      _
    // Predicated region
    $region90: #{_mlp_forward_padded.1} parent=1 // pred_check
      _
    $region91: #{_mlp_forward_padded.1} parent=1 // pred_check_branch
      %6814 = sbr.rel (0) target = $region93
    $region92: #{_mlp_forward_padded.1} parent=1 // pred_region
      %6815 = dma.done [#allocation4], 128
    $region93: #{_mlp_forward_padded.1} parent=1 // pred_fallthru
      _
    %6816 = vsyncpa [#allocation3], 1
    %6817 = vsyncpa [#allocation6], 1
    %6818 = vsyncpa [#allocation9], 1
    %6819 = vsyncpa [#allocation12], 1
    %6820 = vsyncpa [#allocation15], 1
    %6821 = vsyncpa [#allocation18], 1
    %6822 = vsyncpa [#allocation4], 1

</llo_original>
